<compile_context>
chip_gen: v7x
topology: tpu7x:2x2x1
jax: 0.10.0
libtpu: 0.0.40
codegen_flags: <defaults>
</compile_context>

<pallas_src>
import functools

import jax
import jax.numpy as jnp
from jax.experimental import pallas as pl
from jax.experimental.pallas import tpu as pltpu

BN_EPS = 1e-5
LANE = 128        # pad channel-like / contraction dims to multiples of the lane width
_HALO_OFF = 8     # interior offset in the stage-2 halo scratch (f32 sublane tile -> aligned store)


def _round_up(v, m):
    return (v + m - 1) // m * m


def _bn(y, gamma, beta, eps):
    """Training-mode BatchNorm over rows of (M, Cp), folded into one scale/shift.
    Two-pass variance (stable); conv bias is intentionally absent (it cancels)."""
    mean = jnp.mean(y, axis=0, keepdims=True)
    c = y - mean
    var = jnp.mean(c * c, axis=0, keepdims=True)
    return c * (gamma * jax.lax.rsqrt(var + eps)) + beta


def _resblock_kernel(cols1_ref, w1_ref, g1_ref, bt1_ref,
                     w2_ref, g2_ref, bt2_ref, res_ref, alpha_ref,
                     out_ref, hpad_ref, *,
                     N, Hout, Wout, KH, KW, pad, eps):
    Cp = w1_ref.shape[1]
    M = cols1_ref.shape[0]
    cdt = w2_ref.dtype                      # conv compute dtype (bf16 or f32)
    alpha = alpha_ref[0, 0]                 # shared PReLU scalar (reused, like self.prelu)

    # ---------------- stage 1: conv1 as ONE im2col matmul on the MXU ----------------
    y1 = jnp.dot(cols1_ref[...], w1_ref[...], preferred_element_type=jnp.float32)
    h = _bn(y1, g1_ref[...], bt1_ref[...], eps)           # BN1 (batch stats) folded
    h = jnp.where(h >= 0, h, alpha * h)                   # PReLU

    # --------- stage 2: intermediate stays in VMEM (no HBM round trip) --------------
    # Zero the halo scratch, drop h in at an (8,128)-aligned offset, then slice the
    # KH*KW shifted windows (each a full-lane (M, Cp) slab), lane-concat them and do
    # ONE matmul with the pre-flattened (KH*KW*Cp, Cp) weight.
    hpad_ref[...] = jnp.zeros_like(hpad_ref)
    hpad_ref[:, _HALO_OFF:_HALO_OFF + Hout, _HALO_OFF:_HALO_OFF + Wout, :] = (
        h.reshape(N, Hout, Wout, Cp))

    hp = hpad_ref[...]
    taps = []
    for kh in range(KH):
        for kw in range(KW):
            r0 = _HALO_OFF - pad + kh
            c0 = _HALO_OFF - pad + kw
            taps.append(hp[:, r0:r0 + Hout, c0:c0 + Wout, :]
                        .reshape(M, Cp).astype(cdt))
    cols2 = jnp.concatenate(taps, axis=-1)                 # (M, KH*KW*Cp), lane-aligned
    y2 = jnp.dot(cols2, w2_ref[...], preferred_element_type=jnp.float32)

    # BN2 + identity shortcut + PReLU (same shared alpha).
    z = _bn(y2, g2_ref[...], bt2_ref[...], eps) + res_ref[...]
    z = jnp.where(z >= 0, z, alpha * z)
    out_ref[...] = z.astype(out_ref.dtype)                 # lane-dense (M, Cp) store


def resblock_forward_nhwc(x, params, *, stride=1, padding=1,
                          compute_dtype=jnp.bfloat16, eps=BN_EPS):
    """Fused ResBlock forward on NHWC activations.

    params: w1/w2 in HWIO = (KH, KW, Cin, Cout); g*/bt* = BatchNorm weight/bias;
    alpha = shared PReLU scalar. Conv biases b1/b2 are accepted but unused: with
    training-mode BatchNorm directly after each conv they cancel exactly.
    Only the downsample=None (identity shortcut) configuration is implemented.
    """
    N, H, W, Cin = x.shape
    KH, KW, _, Cout = params["w1"].shape
    if stride != 1 or Cin != Cout:
        raise ValueError("identity shortcut (downsample=None) requires stride==1 and Cin==Cout")
    if KH - 1 != 2 * padding or KW - 1 != 2 * padding or padding > _HALO_OFF:
        raise ValueError("expects 'same' padding (2*padding == kernel_size-1) and padding <= 8")

    Hout = (H + 2 * padding - KH) // stride + 1
    Wout = (W + 2 * padding - KW) // stride + 1
    M = N * Hout * Wout
    Cp = _round_up(Cout, LANE)
    K1 = KH * KW * Cin
    K1p = _round_up(K1, LANE)
    f32 = jnp.float32

    # --- stage-1 im2col (one HBM-side layout op) + lane-padded, pre-flattened weights ---
    xp = jnp.pad(x.astype(f32), ((0, 0), (padding, padding), (padding, padding), (0, 0)))
    taps = [xp[:, kh:kh + (Hout - 1) * stride + 1:stride,
                  kw:kw + (Wout - 1) * stride + 1:stride, :]
            for kh in range(KH) for kw in range(KW)]
    cols1 = jnp.concatenate(taps, axis=-1).reshape(M, K1)
    cols1 = jnp.pad(cols1, ((0, 0), (0, K1p - K1))).astype(compute_dtype)

    w1 = jnp.pad(params["w1"].astype(f32).reshape(K1, Cout),
                 ((0, K1p - K1), (0, Cp - Cout))).astype(compute_dtype)
    w2 = jnp.pad(params["w2"].astype(f32),
                 ((0, 0), (0, 0), (0, Cp - Cout), (0, Cp - Cout)))
    w2 = w2.reshape(KH * KW * Cp, Cp).astype(compute_dtype)

    def cpad(v):
        return jnp.pad(v.astype(f32).reshape(-1), (0, Cp - Cout)).reshape(1, Cp)

    g1, bt1, g2, bt2 = map(cpad, (params["g1"], params["bt1"], params["g2"], params["bt2"]))
    res = jnp.pad(x.astype(f32), ((0, 0),) * 3 + ((0, Cp - Cout),)).reshape(M, Cp)
    alpha = jnp.asarray(params["alpha"], f32).reshape(1, 1)

    inputs = (cols1, w1, g1, bt1, w2, g2, bt2, res, alpha)

    Hs = Hout + _HALO_OFF + padding
    Ws = Wout + _HALO_OFF + padding
    in_bytes = sum(int(a.size) * a.dtype.itemsize for a in inputs)
    out_bytes = M * Cp * 4
    scratch_bytes = N * Hs * Ws * Cp * 4
    vmem_limit = int(min(64 * 2**20,
                         max(32 * 2**20, 8 * (in_bytes + out_bytes + scratch_bytes))))

    kernel = functools.partial(_resblock_kernel, N=N, Hout=Hout, Wout=Wout,
                               KH=KH, KW=KW, pad=padding, eps=eps)
    vmem = pl.BlockSpec(memory_space=pltpu.MemorySpace.VMEM)
    smem = pl.BlockSpec(memory_space=pltpu.MemorySpace.SMEM)

    out2d = pl.pallas_call(
        kernel,
        out_shape=jax.ShapeDtypeStruct((M, Cp), jnp.float32),      # lane-dense output slab
        in_specs=[vmem, vmem, vmem, vmem, vmem, vmem, vmem, vmem, smem],
        out_specs=vmem,
        scratch_shapes=[pltpu.VMEM((N, Hs, Ws, Cp), jnp.float32)],
        compiler_params=pltpu.CompilerParams(vmem_limit_bytes=vmem_limit),
        cost_estimate=pl.CostEstimate(
            flops=int(2 * M * Cp * (K1p + KH * KW * Cp) + 12 * M * Cp),
            transcendentals=int(2 * Cp),
            bytes_accessed=int(in_bytes + out_bytes)),
    )(*inputs)

    return out2d.reshape(N, Hout, Wout, Cp)[..., :Cout]


# ------------------------- pure-JAX f32 reference (for checking) -------------------------
def _ref_stage(x, w, b, g, bt, alpha, stride, padding, residual=None):
    y = jax.lax.conv_general_dilated(
        x, w, (stride, stride), [(padding, padding)] * 2,
        dimension_numbers=("NHWC", "HWIO", "NHWC")) + b.reshape(1, 1, 1, -1)
    mean = jnp.mean(y, axis=(0, 1, 2), keepdims=True)
    var = jnp.mean((y - mean) ** 2, axis=(0, 1, 2), keepdims=True)
    y = (y - mean) * jax.lax.rsqrt(var + BN_EPS) * g.reshape(1, 1, 1, -1) \
        + bt.reshape(1, 1, 1, -1)
    if residual is not None:
        y = y + residual
    return jnp.where(y >= 0, y, alpha * y)


def ref_forward_nhwc(x, params, *, stride=1, padding=1):
    h = _ref_stage(x, params["w1"], params["b1"], params["g1"], params["bt1"],
                   params["alpha"], stride, padding)
    return _ref_stage(h, params["w2"], params["b2"], params["g2"], params["bt2"],
                      params["alpha"], 1, padding, residual=x)


if __name__ == "__main__":
    N, Cin, H, W = 2, 4, 16, 16
    Cout, K, stride, padding = 4, 3, 1, 1

    key = jax.random.PRNGKey(0)
    ks = jax.random.split(key, 9)

    # PyTorch-style inputs/params (NCHW activations, OIHW conv weights), converted once.
    x_nchw = jax.random.normal(ks[0], (N, Cin, H, W), jnp.float32)
    w1_oihw = 0.1 * jax.random.normal(ks[1], (Cout, Cin, K, K), jnp.float32)
    w2_oihw = 0.1 * jax.random.normal(ks[2], (Cout, Cout, K, K), jnp.float32)
    params = dict(
        w1=jnp.transpose(w1_oihw, (2, 3, 1, 0)),                     # OIHW -> HWIO
        b1=0.05 * jax.random.normal(ks[3], (Cout,), jnp.float32),    # cancels under BN
        g1=1.0 + 0.1 * jax.random.normal(ks[4], (Cout,), jnp.float32),
        bt1=0.1 * jax.random.normal(ks[5], (Cout,), jnp.float32),
        w2=jnp.transpose(w2_oihw, (2, 3, 1, 0)),
        b2=0.05 * jax.random.normal(ks[6], (Cout,), jnp.float32),    # cancels under BN
        g2=1.0 + 0.1 * jax.random.normal(ks[7], (Cout,), jnp.float32),
        bt2=0.1 * jax.random.normal(ks[8], (Cout,), jnp.float32),
        alpha=jnp.float32(0.25),                                     # PReLU default init
    )

    # Single NCHW -> NHWC conversion at the model boundary; everything else stays NHWC.
    x = jnp.transpose(x_nchw, (0, 2, 3, 1))

    ref = ref_forward_nhwc(x, params, stride=stride, padding=padding)

    # Exact-semantics check: f32 conv operands (reference includes the conv biases that
    # the kernel drops, which also validates the bias-cancellation optimization).
    out_f32 = resblock_forward_nhwc(x, params, stride=stride, padding=padding,
                                    compute_dtype=jnp.float32)
    out_f32 = jax.block_until_ready(out_f32)
    assert out_f32.shape == (N, H, W, Cout), out_f32.shape
    err_f32 = float(jnp.max(jnp.abs(out_f32 - ref)))
    assert jnp.allclose(out_f32, ref, atol=1e-3, rtol=1e-3), f"f32 max|err| = {err_f32}"

    # bf16 conv operands (v6e/v7x MXU path) with f32 accumulation/BN/PReLU: tolerance
    # reflects the ~2^-9 relative input rounding through two conv+BN stages.
    out_bf16 = resblock_forward_nhwc(x, params, stride=stride, padding=padding,
                                     compute_dtype=jnp.bfloat16)
    out_bf16 = jax.block_until_ready(out_bf16)
    err_bf16 = float(jnp.max(jnp.abs(out_bf16 - ref)))
    assert jnp.allclose(out_bf16, ref, atol=7.5e-2, rtol=7.5e-2), f"bf16 max|err| = {err_bf16}"

    print("KERNEL_OK")
</pallas_src>

<mosaic_0001>
module attributes {stable_mosaic.version = 11 : i64} {
  func.func @_resblock_kernel(%arg0: memref<512x128xf32, #tpu.memory_space<vmem>>, %arg1: memref<128x128xf32, #tpu.memory_space<vmem>>, %arg2: memref<1x128xf32, #tpu.memory_space<vmem>>, %arg3: memref<1x128xf32, #tpu.memory_space<vmem>>, %arg4: memref<1152x128xf32, #tpu.memory_space<vmem>>, %arg5: memref<1x128xf32, #tpu.memory_space<vmem>>, %arg6: memref<1x128xf32, #tpu.memory_space<vmem>>, %arg7: memref<512x128xf32, #tpu.memory_space<vmem>>, %arg8: memref<1x1xf32, #tpu.memory_space<smem>>, %arg9: memref<512x128xf32, #tpu.memory_space<vmem>>, %arg10: memref<2x25x25x128xf32, #tpu.memory_space<vmem>>) attributes {dimension_semantics = [], scalar_prefetch = 0 : i64, scratch_operands = 1 : i64, tpu.core_type = #tpu.core_type<tc>} {
    %c0 = arith.constant 0 : index
    %c0_0 = arith.constant 0 : index
    %0 = memref.load %arg8[%c0, %c0_0] : memref<1x1xf32, #tpu.memory_space<smem>>
    %c0_1 = arith.constant 0 : index
    %c0_2 = arith.constant 0 : index
    %1 = vector.load %arg0[%c0_1, %c0_2] : memref<512x128xf32, #tpu.memory_space<vmem>>, vector<512x128xf32>
    %c0_3 = arith.constant 0 : index
    %c0_4 = arith.constant 0 : index
    %2 = vector.load %arg1[%c0_3, %c0_4] : memref<128x128xf32, #tpu.memory_space<vmem>>, vector<128x128xf32>
    %cst = arith.constant dense<0.000000e+00> : vector<512x128xf32>
    %3 = tpu.matmul %1, %2, %cst {dimension_numbers = #tpu.dot_dimension_numbers<[1], [0], [0], [1], [0, 0, 1, 1], [], []>} : vector<512x128xf32>, vector<128x128xf32>, vector<512x128xf32> -> vector<512x128xf32>
    %c0_5 = arith.constant 0 : index
    %c0_6 = arith.constant 0 : index
    %4 = vector.load %arg2[%c0_5, %c0_6] : memref<1x128xf32, #tpu.memory_space<vmem>>, vector<1x128xf32>
    %c0_7 = arith.constant 0 : index
    %c0_8 = arith.constant 0 : index
    %5 = vector.load %arg3[%c0_7, %c0_8] : memref<1x128xf32, #tpu.memory_space<vmem>>, vector<1x128xf32>
    %cst_9 = arith.constant dense<0.000000e+00> : vector<128xf32>
    %6 = vector.multi_reduction <add>, %3, %cst_9 [0] : vector<512x128xf32> to vector<128xf32>
    %7 = vector.shape_cast %6 : vector<128xf32> to vector<1x128xf32>
    %cst_10 = arith.constant 5.120000e+02 : f32
    %8 = vector.broadcast %cst_10 : f32 to vector<1x128xf32>
    %9 = arith.divf %7, %8 : vector<1x128xf32>
    %10 = vector.broadcast %9 : vector<1x128xf32> to vector<512x128xf32>
    %11 = arith.subf %3, %10 : vector<512x128xf32>
    %12 = arith.mulf %11, %11 : vector<512x128xf32>
    %cst_11 = arith.constant dense<0.000000e+00> : vector<128xf32>
    %13 = vector.multi_reduction <add>, %12, %cst_11 [0] : vector<512x128xf32> to vector<128xf32>
    %14 = vector.shape_cast %13 : vector<128xf32> to vector<1x128xf32>
    %cst_12 = arith.constant 5.120000e+02 : f32
    %15 = vector.broadcast %cst_12 : f32 to vector<1x128xf32>
    %16 = arith.divf %14, %15 : vector<1x128xf32>
    %cst_13 = arith.constant 9.99999974E-6 : f32
    %17 = vector.broadcast %cst_13 : f32 to vector<1x128xf32>
    %18 = arith.addf %16, %17 : vector<1x128xf32>
    %19 = math.rsqrt %18 : vector<1x128xf32>
    %20 = arith.mulf %4, %19 : vector<1x128xf32>
    %21 = vector.broadcast %20 : vector<1x128xf32> to vector<512x128xf32>
    %22 = arith.mulf %11, %21 : vector<512x128xf32>
    %23 = vector.broadcast %5 : vector<1x128xf32> to vector<512x128xf32>
    %24 = arith.addf %22, %23 : vector<512x128xf32>
    %cst_14 = arith.constant 0.000000e+00 : f32
    %25 = vector.broadcast %cst_14 : f32 to vector<512x128xf32>
    %26 = arith.cmpf oge, %24, %25 : vector<512x128xf32>
    %27 = vector.broadcast %0 : f32 to vector<512x128xf32>
    %28 = arith.mulf %27, %24 : vector<512x128xf32>
    %29 = arith.select %26, %24, %28 : vector<512x128xi1>, vector<512x128xf32>
    %cst_15 = arith.constant 0.000000e+00 : f32
    %30 = vector.broadcast %cst_15 : f32 to vector<2x25x25x128xf32>
    %c0_16 = arith.constant 0 : index
    %c0_17 = arith.constant 0 : index
    %c0_18 = arith.constant 0 : index
    %c0_19 = arith.constant 0 : index
    %31 = vector.load %arg10[%c0_16, %c0_17, %c0_18, %c0_19] : memref<2x25x25x128xf32, #tpu.memory_space<vmem>>, vector<2x25x25x128xf32>
    tpu.vector_store %arg10[%c0_16, %c0_17, %c0_18, %c0_19], %30 {strides = array<i32>} : memref<2x25x25x128xf32, #tpu.memory_space<vmem>>, vector<2x25x25x128xf32>,
    %32 = vector.shape_cast %29 : vector<512x128xf32> to vector<2x16x16x128xf32>
    %c0_20 = arith.constant 0 : index
    %c8 = arith.constant 8 : index
    %c8_21 = arith.constant 8 : index
    %c0_22 = arith.constant 0 : index
    %33 = vector.load %arg10[%c0_20, %c8, %c8_21, %c0_22] : memref<2x25x25x128xf32, #tpu.memory_space<vmem>>, vector<2x16x16x128xf32>
    tpu.vector_store %arg10[%c0_20, %c8, %c8_21, %c0_22], %32 {strides = array<i32>} : memref<2x25x25x128xf32, #tpu.memory_space<vmem>>, vector<2x16x16x128xf32>,
    %c0_23 = arith.constant 0 : index
    %c0_24 = arith.constant 0 : index
    %c0_25 = arith.constant 0 : index
    %c0_26 = arith.constant 0 : index
    %34 = vector.load %arg10[%c0_23, %c0_24, %c0_25, %c0_26] : memref<2x25x25x128xf32, #tpu.memory_space<vmem>>, vector<2x25x25x128xf32>
    %35 = vector.extract_strided_slice %34 {offsets = [0, 7, 7, 0], sizes = [2, 16, 16, 128], strides = [1, 1, 1, 1]} : vector<2x25x25x128xf32> to vector<2x16x16x128xf32>
    %36 = vector.shape_cast %35 : vector<2x16x16x128xf32> to vector<512x128xf32>
    %37 = vector.extract_strided_slice %34 {offsets = [0, 7, 8, 0], sizes = [2, 16, 16, 128], strides = [1, 1, 1, 1]} : vector<2x25x25x128xf32> to vector<2x16x16x128xf32>
    %38 = vector.shape_cast %37 : vector<2x16x16x128xf32> to vector<512x128xf32>
    %39 = vector.extract_strided_slice %34 {offsets = [0, 7, 9, 0], sizes = [2, 16, 16, 128], strides = [1, 1, 1, 1]} : vector<2x25x25x128xf32> to vector<2x16x16x128xf32>
    %40 = vector.shape_cast %39 : vector<2x16x16x128xf32> to vector<512x128xf32>
    %41 = vector.extract_strided_slice %34 {offsets = [0, 8, 7, 0], sizes = [2, 16, 16, 128], strides = [1, 1, 1, 1]} : vector<2x25x25x128xf32> to vector<2x16x16x128xf32>
    %42 = vector.shape_cast %41 : vector<2x16x16x128xf32> to vector<512x128xf32>
    %43 = vector.extract_strided_slice %34 {offsets = [0, 8, 8, 0], sizes = [2, 16, 16, 128], strides = [1, 1, 1, 1]} : vector<2x25x25x128xf32> to vector<2x16x16x128xf32>
    %44 = vector.shape_cast %43 : vector<2x16x16x128xf32> to vector<512x128xf32>
    %45 = vector.extract_strided_slice %34 {offsets = [0, 8, 9, 0], sizes = [2, 16, 16, 128], strides = [1, 1, 1, 1]} : vector<2x25x25x128xf32> to vector<2x16x16x128xf32>
    %46 = vector.shape_cast %45 : vector<2x16x16x128xf32> to vector<512x128xf32>
    %47 = vector.extract_strided_slice %34 {offsets = [0, 9, 7, 0], sizes = [2, 16, 16, 128], strides = [1, 1, 1, 1]} : vector<2x25x25x128xf32> to vector<2x16x16x128xf32>
    %48 = vector.shape_cast %47 : vector<2x16x16x128xf32> to vector<512x128xf32>
    %49 = vector.extract_strided_slice %34 {offsets = [0, 9, 8, 0], sizes = [2, 16, 16, 128], strides = [1, 1, 1, 1]} : vector<2x25x25x128xf32> to vector<2x16x16x128xf32>
    %50 = vector.shape_cast %49 : vector<2x16x16x128xf32> to vector<512x128xf32>
    %51 = vector.extract_strided_slice %34 {offsets = [0, 9, 9, 0], sizes = [2, 16, 16, 128], strides = [1, 1, 1, 1]} : vector<2x25x25x128xf32> to vector<2x16x16x128xf32>
    %52 = vector.shape_cast %51 : vector<2x16x16x128xf32> to vector<512x128xf32>
    %53 = tpu.concatenate %36, %38, %40, %42, %44, %46, %48, %50, %52 in 1 : vector<512x128xf32>, vector<512x128xf32>, vector<512x128xf32>, vector<512x128xf32>, vector<512x128xf32>, vector<512x128xf32>, vector<512x128xf32>, vector<512x128xf32>, vector<512x128xf32> -> vector<512x1152xf32>
    %c0_27 = arith.constant 0 : index
    %c0_28 = arith.constant 0 : index
    %54 = vector.load %arg4[%c0_27, %c0_28] : memref<1152x128xf32, #tpu.memory_space<vmem>>, vector<1152x128xf32>
    %cst_29 = arith.constant dense<0.000000e+00> : vector<512x128xf32>
    %55 = tpu.matmul %53, %54, %cst_29 {dimension_numbers = #tpu.dot_dimension_numbers<[1], [0], [0], [1], [0, 0, 1, 1], [], []>} : vector<512x1152xf32>, vector<1152x128xf32>, vector<512x128xf32> -> vector<512x128xf32>
    %c0_30 = arith.constant 0 : index
    %c0_31 = arith.constant 0 : index
    %56 = vector.load %arg5[%c0_30, %c0_31] : memref<1x128xf32, #tpu.memory_space<vmem>>, vector<1x128xf32>
    %c0_32 = arith.constant 0 : index
    %c0_33 = arith.constant 0 : index
    %57 = vector.load %arg6[%c0_32, %c0_33] : memref<1x128xf32, #tpu.memory_space<vmem>>, vector<1x128xf32>
    %cst_34 = arith.constant dense<0.000000e+00> : vector<128xf32>
    %58 = vector.multi_reduction <add>, %55, %cst_34 [0] : vector<512x128xf32> to vector<128xf32>
    %59 = vector.shape_cast %58 : vector<128xf32> to vector<1x128xf32>
    %cst_35 = arith.constant 5.120000e+02 : f32
    %60 = vector.broadcast %cst_35 : f32 to vector<1x128xf32>
    %61 = arith.divf %59, %60 : vector<1x128xf32>
    %62 = vector.broadcast %61 : vector<1x128xf32> to vector<512x128xf32>
    %63 = arith.subf %55, %62 : vector<512x128xf32>
    %64 = arith.mulf %63, %63 : vector<512x128xf32>
    %cst_36 = arith.constant dense<0.000000e+00> : vector<128xf32>
    %65 = vector.multi_reduction <add>, %64, %cst_36 [0] : vector<512x128xf32> to vector<128xf32>
    %66 = vector.shape_cast %65 : vector<128xf32> to vector<1x128xf32>
    %cst_37 = arith.constant 5.120000e+02 : f32
    %67 = vector.broadcast %cst_37 : f32 to vector<1x128xf32>
    %68 = arith.divf %66, %67 : vector<1x128xf32>
    %cst_38 = arith.constant 9.99999974E-6 : f32
    %69 = vector.broadcast %cst_38 : f32 to vector<1x128xf32>
    %70 = arith.addf %68, %69 : vector<1x128xf32>
    %71 = math.rsqrt %70 : vector<1x128xf32>
    %72 = arith.mulf %56, %71 : vector<1x128xf32>
    %73 = vector.broadcast %72 : vector<1x128xf32> to vector<512x128xf32>
    %74 = arith.mulf %63, %73 : vector<512x128xf32>
    %75 = vector.broadcast %57 : vector<1x128xf32> to vector<512x128xf32>
    %76 = arith.addf %74, %75 : vector<512x128xf32>
    %c0_39 = arith.constant 0 : index
    %c0_40 = arith.constant 0 : index
    %77 = vector.load %arg7[%c0_39, %c0_40] : memref<512x128xf32, #tpu.memory_space<vmem>>, vector<512x128xf32>
    %78 = arith.addf %76, %77 : vector<512x128xf32>
    %cst_41 = arith.constant 0.000000e+00 : f32
    %79 = vector.broadcast %cst_41 : f32 to vector<512x128xf32>
    %80 = arith.cmpf oge, %78, %79 : vector<512x128xf32>
    %81 = vector.broadcast %0 : f32 to vector<512x128xf32>
    %82 = arith.mulf %81, %78 : vector<512x128xf32>
    %83 = arith.select %80, %78, %82 : vector<512x128xi1>, vector<512x128xf32>
    %c0_42 = arith.constant 0 : index
    %c0_43 = arith.constant 0 : index
    %84 = vector.load %arg9[%c0_42, %c0_43] : memref<512x128xf32, #tpu.memory_space<vmem>>, vector<512x128xf32>
    tpu.vector_store %arg9[%c0_42, %c0_43], %83 {strides = array<i32>} : memref<512x128xf32, #tpu.memory_space<vmem>>, vector<512x128xf32>,
    return
  }
}

</mosaic_0001>

<llo_original>
// kernel: tpu_custom_call.1
$region0: #{tpu_custom_call.1}
  #allocation0 [shape = 'u32[]', space=smem, size = 0x4, offset = 0x4, fixed_abs, tag = 'smem constant byte address 0x4 - core index']
  #allocation1 [shape = 'u32[144,128]{1,0:T(1,128)}', space=vmem, size = 0x12000, scoped, tag = 'internal scratch']
  #allocation2 [shape = 'f32[2,25,25,128]{3,2,1,0:T(8,128)}', space=vmem, size = 0xc8000, scoped, tag = 'scratch operand']
  #allocation3 [shape = 'f32[1,1]{1,0:T(1,128)S(6)}', space=smem, size = 0x200, scoped, tag = 'scoped memory for tpu_custom_call.1']
  %s0 = inlined_call_operand.hbm [shape: f32[512,128], index: 0, kind: input, shape index: {}]
  %s1 = inlined_call_operand.hbm [shape: f32[128,128], index: 1, kind: input, shape index: {}]
  %s2 = inlined_call_operand.vmem [shape: f32[1,128], index: 2, kind: input, shape index: {}]
  %s3 = inlined_call_operand.vmem [shape: f32[1,128], index: 3, kind: input, shape index: {}]
  %s4 = inlined_call_operand.hbm [shape: f32[1152,128], index: 4, kind: input, shape index: {}]
  %s5 = inlined_call_operand.vmem [shape: f32[1,128], index: 5, kind: input, shape index: {}]
  %s6 = inlined_call_operand.vmem [shape: f32[1,128], index: 6, kind: input, shape index: {}]
  %s7 = inlined_call_operand.hbm [shape: f32[512,128], index: 7, kind: input, shape index: {}]
  %s8 = inlined_call_operand.<no memory space> [shape: f32[1,1], index: 8, kind: input, shape index: {}]
  %s9 = inlined_call_operand.hbm [shape: f32[512,128], index: 9, kind: output, shape index: {}]
  %s10 = sld [smem:[#allocation0]]
  $region62: #{tpu_custom_call.1} parent=0
    _
  %s12 = ssub.s32 1, %s10
  %s13 = scalar_select 0, %s12, %s10
  %14 = sst [smem:[#allocation3]] %s8
  $region1: #{tpu_custom_call.1} parent=0
    #allocation4 [shape = 'u8[262144]{0}', space=vmem, size = 0x40000, scoped, tag = 'input window, operand 0, single buffered']
    #allocation5 [shape = 's32[1]{0}', space=sflag, size = 0x4, scoped, tag = 'scoped memory for tpu_custom_call.1']
    #allocation6 [shape = 's32[1]{0}', space=sflag, size = 0x4, scoped, tag = 'scoped memory for tpu_custom_call.1']
    #allocation7 [shape = 'u8[65536]{0}', space=vmem, size = 0x10000, scoped, tag = 'input window, operand 1, single buffered']
    #allocation8 [shape = 's32[1]{0}', space=sflag, size = 0x4, scoped, tag = 'scoped memory for tpu_custom_call.1']
    #allocation9 [shape = 'u8[589824]{0}', space=vmem, size = 0x90000, scoped, tag = 'input window, operand 4, single buffered']
    #allocation10 [shape = 'u8[262144]{0}', space=vmem, size = 0x40000, scoped, tag = 'input window, operand 7, single buffered']
    #allocation11 [shape = 's32[1]{0}', space=sflag, size = 0x4, scoped, tag = 'scoped memory for tpu_custom_call.1']
    #allocation12 [shape = 'u8[262144]{0}', space=vmem, size = 0x40000, scoped, tag = 'output window, operand 0, single buffered']
    %15 = vsyncpa [#allocation5], 0
    %16 = vsyncpa [#allocation8], 0
    %17 = vsyncpa [#allocation11], 0
    %18 = vsyncpa [#allocation6], 0
    // Predicated region
    $region2: #{tpu_custom_call.1} parent=1 // pred_check
      _
    $region3: #{tpu_custom_call.1} parent=1 // pred_check_branch
      %20 = sbr.rel (0) target = $region5
    $region4: #{tpu_custom_call.1} parent=1 // pred_region
      %s22 = ssub.s32 8192, 8192
      %23 = vsyncadd [#allocation5], %s22
      %s24 = sshll.u32 [#allocation4], 4
      %s25 = int_to_ptr.vmem [resolvable:$true] %s24
      %30 = dma.hbm_to_vmem [thread:$0]  %s0, 8192, %s25, [#allocation5], 128, 128, 8
    $region5: #{tpu_custom_call.1} parent=1 // pred_fallthru
      _
    // Predicated region
    $region6: #{tpu_custom_call.1} parent=1 // pred_check
      _
    $region7: #{tpu_custom_call.1} parent=1 // pred_check_branch
      %32 = sbr.rel (0) target = $region9
    $region8: #{tpu_custom_call.1} parent=1 // pred_region
      %s34 = ssub.s32 2048, 2048
      %35 = vsyncadd [#allocation8], %s34
      %s36 = sshll.u32 [#allocation7], 4
      %s37 = int_to_ptr.vmem [resolvable:$true] %s36
      %42 = dma.hbm_to_vmem [thread:$0]  %s1, 2048, %s37, [#allocation8], 128, 128, 8
    $region9: #{tpu_custom_call.1} parent=1 // pred_fallthru
      _
    // Predicated region
    $region10: #{tpu_custom_call.1} parent=1 // pred_check
      _
    $region11: #{tpu_custom_call.1} parent=1 // pred_check_branch
      %44 = sbr.rel (0) target = $region13
    $region12: #{tpu_custom_call.1} parent=1 // pred_region
      _
    $region13: #{tpu_custom_call.1} parent=1 // pred_fallthru
      _
    // Predicated region
    $region14: #{tpu_custom_call.1} parent=1 // pred_check
      _
    $region15: #{tpu_custom_call.1} parent=1 // pred_check_branch
      %46 = sbr.rel (0) target = $region17
    $region16: #{tpu_custom_call.1} parent=1 // pred_region
      _
    $region17: #{tpu_custom_call.1} parent=1 // pred_fallthru
      _
    // Predicated region
    $region18: #{tpu_custom_call.1} parent=1 // pred_check
      _
    $region19: #{tpu_custom_call.1} parent=1 // pred_check_branch
      %48 = sbr.rel (0) target = $region21
    $region20: #{tpu_custom_call.1} parent=1 // pred_region
      %s50 = ssub.s32 18432, 18432
      %51 = vsyncadd [#allocation8], %s50
      %s52 = sshll.u32 [#allocation9], 4
      %s53 = int_to_ptr.vmem [resolvable:$true] %s52
      %58 = dma.hbm_to_vmem [thread:$0]  %s4, 18432, %s53, [#allocation8], 128, 128, 8
    $region21: #{tpu_custom_call.1} parent=1 // pred_fallthru
      _
    // Predicated region
    $region22: #{tpu_custom_call.1} parent=1 // pred_check
      _
    $region23: #{tpu_custom_call.1} parent=1 // pred_check_branch
      %60 = sbr.rel (0) target = $region25
    $region24: #{tpu_custom_call.1} parent=1 // pred_region
      _
    $region25: #{tpu_custom_call.1} parent=1 // pred_fallthru
      _
    // Predicated region
    $region26: #{tpu_custom_call.1} parent=1 // pred_check
      _
    $region27: #{tpu_custom_call.1} parent=1 // pred_check_branch
      %62 = sbr.rel (0) target = $region29
    $region28: #{tpu_custom_call.1} parent=1 // pred_region
      _
    $region29: #{tpu_custom_call.1} parent=1 // pred_fallthru
      _
    // Predicated region
    $region30: #{tpu_custom_call.1} parent=1 // pred_check
      _
    $region31: #{tpu_custom_call.1} parent=1 // pred_check_branch
      %64 = sbr.rel (0) target = $region33
    $region32: #{tpu_custom_call.1} parent=1 // pred_region
      %s66 = ssub.s32 8192, 8192
      %67 = vsyncadd [#allocation11], %s66
      %s68 = sshll.u32 [#allocation10], 4
      %s69 = int_to_ptr.vmem [resolvable:$true] %s68
      %74 = dma.hbm_to_vmem [thread:$0]  %s7, 8192, %s69, [#allocation11], 128, 128, 8
    $region33: #{tpu_custom_call.1} parent=1 // pred_fallthru
      _
    // Predicated region
    $region34: #{tpu_custom_call.1} parent=1 // pred_check
      _
    $region35: #{tpu_custom_call.1} parent=1 // pred_check_branch
      %76 = sbr.rel (0) target = $region37
    $region36: #{tpu_custom_call.1} parent=1 // pred_region
      _
    $region37: #{tpu_custom_call.1} parent=1 // pred_fallthru
      _
    // Predicated region
    $region38: #{tpu_custom_call.1} parent=1 // pred_check
      _
    $region39: #{tpu_custom_call.1} parent=1 // pred_check_branch
      %78 = sbr.rel (0) target = $region41
    $region40: #{tpu_custom_call.1} parent=1 // pred_region
      %79 = dma.done [#allocation5], 8192
    $region41: #{tpu_custom_call.1} parent=1 // pred_fallthru
      _
    // Predicated region
    $region42: #{tpu_custom_call.1} parent=1 // pred_check
      _
    $region43: #{tpu_custom_call.1} parent=1 // pred_check_branch
      %81 = sbr.rel (0) target = $region45
    $region44: #{tpu_custom_call.1} parent=1 // pred_region
      %82 = dma.done [#allocation8], 2048
    $region45: #{tpu_custom_call.1} parent=1 // pred_fallthru
      _
    // Predicated region
    $region46: #{tpu_custom_call.1} parent=1 // pred_check
      _
    $region47: #{tpu_custom_call.1} parent=1 // pred_check_branch
      %84 = sbr.rel (0) target = $region49
    $region48: #{tpu_custom_call.1} parent=1 // pred_region
      %85 = dma.done [#allocation8], 18432
    $region49: #{tpu_custom_call.1} parent=1 // pred_fallthru
      _
    // Predicated region
    $region50: #{tpu_custom_call.1} parent=1 // pred_check
      _
    $region51: #{tpu_custom_call.1} parent=1 // pred_check_branch
      %87 = sbr.rel (0) target = $region53
    $region52: #{tpu_custom_call.1} parent=1 // pred_region
      %88 = dma.done [#allocation11], 8192
    $region53: #{tpu_custom_call.1} parent=1 // pred_fallthru
      _
    %s89 = sld [smem:[#allocation3]]
    %v90 = vld [vmem:[#allocation4] sm:$0xff]
    %v91 = vld [vmem:[#allocation4 + $0x8] sm:$0xff]
    %v92 = vld [vmem:[#allocation4 + $0x10] sm:$0xff]
    %v93 = vld [vmem:[#allocation4 + $0x18] sm:$0xff]
    %v94 = vld [vmem:[#allocation4 + $0x20] sm:$0xff]
    %v95 = vld [vmem:[#allocation4 + $0x28] sm:$0xff]
    %v96 = vld [vmem:[#allocation4 + $0x30] sm:$0xff]
    %v97 = vld [vmem:[#allocation4 + $0x38] sm:$0xff]
    %v98 = vld [vmem:[#allocation4 + $0x40] sm:$0xff]
    %v99 = vld [vmem:[#allocation4 + $0x48] sm:$0xff]
    %v100 = vld [vmem:[#allocation4 + $0x50] sm:$0xff]
    %v101 = vld [vmem:[#allocation4 + $0x58] sm:$0xff]
    %v102 = vld [vmem:[#allocation4 + $0x60] sm:$0xff]
    %v103 = vld [vmem:[#allocation4 + $0x68] sm:$0xff]
    %v104 = vld [vmem:[#allocation4 + $0x70] sm:$0xff]
    %v105 = vld [vmem:[#allocation4 + $0x78] sm:$0xff]
    %v106 = vld [vmem:[#allocation4 + $0x80] sm:$0xff]
    %v107 = vld [vmem:[#allocation4 + $0x88] sm:$0xff]
    %v108 = vld [vmem:[#allocation4 + $0x90] sm:$0xff]
    %v109 = vld [vmem:[#allocation4 + $0x98] sm:$0xff]
    %v110 = vld [vmem:[#allocation4 + $0xa0] sm:$0xff]
    %v111 = vld [vmem:[#allocation4 + $0xa8] sm:$0xff]
    %v112 = vld [vmem:[#allocation4 + $0xb0] sm:$0xff]
    %v113 = vld [vmem:[#allocation4 + $0xb8] sm:$0xff]
    %v114 = vld [vmem:[#allocation4 + $0xc0] sm:$0xff]
    %v115 = vld [vmem:[#allocation4 + $0xc8] sm:$0xff]
    %v116 = vld [vmem:[#allocation4 + $0xd0] sm:$0xff]
    %v117 = vld [vmem:[#allocation4 + $0xd8] sm:$0xff]
    %v118 = vld [vmem:[#allocation4 + $0xe0] sm:$0xff]
    %v119 = vld [vmem:[#allocation4 + $0xe8] sm:$0xff]
    %v120 = vld [vmem:[#allocation4 + $0xf0] sm:$0xff]
    %v121 = vld [vmem:[#allocation4 + $0xf8] sm:$0xff]
    %v122 = vld [vmem:[#allocation4 + $0x100] sm:$0xff]
    %v123 = vld [vmem:[#allocation4 + $0x108] sm:$0xff]
    %v124 = vld [vmem:[#allocation4 + $0x110] sm:$0xff]
    %v125 = vld [vmem:[#allocation4 + $0x118] sm:$0xff]
    %v126 = vld [vmem:[#allocation4 + $0x120] sm:$0xff]
    %v127 = vld [vmem:[#allocation4 + $0x128] sm:$0xff]
    %v128 = vld [vmem:[#allocation4 + $0x130] sm:$0xff]
    %v129 = vld [vmem:[#allocation4 + $0x138] sm:$0xff]
    %v130 = vld [vmem:[#allocation4 + $0x140] sm:$0xff]
    %v131 = vld [vmem:[#allocation4 + $0x148] sm:$0xff]
    %v132 = vld [vmem:[#allocation4 + $0x150] sm:$0xff]
    %v133 = vld [vmem:[#allocation4 + $0x158] sm:$0xff]
    %v134 = vld [vmem:[#allocation4 + $0x160] sm:$0xff]
    %v135 = vld [vmem:[#allocation4 + $0x168] sm:$0xff]
    %v136 = vld [vmem:[#allocation4 + $0x170] sm:$0xff]
    %v137 = vld [vmem:[#allocation4 + $0x178] sm:$0xff]
    %v138 = vld [vmem:[#allocation4 + $0x180] sm:$0xff]
    %v139 = vld [vmem:[#allocation4 + $0x188] sm:$0xff]
    %v140 = vld [vmem:[#allocation4 + $0x190] sm:$0xff]
    %v141 = vld [vmem:[#allocation4 + $0x198] sm:$0xff]
    %v142 = vld [vmem:[#allocation4 + $0x1a0] sm:$0xff]
    %v143 = vld [vmem:[#allocation4 + $0x1a8] sm:$0xff]
    %v144 = vld [vmem:[#allocation4 + $0x1b0] sm:$0xff]
    %v145 = vld [vmem:[#allocation4 + $0x1b8] sm:$0xff]
    %v146 = vld [vmem:[#allocation4 + $0x1c0] sm:$0xff]
    %v147 = vld [vmem:[#allocation4 + $0x1c8] sm:$0xff]
    %v148 = vld [vmem:[#allocation4 + $0x1d0] sm:$0xff]
    %v149 = vld [vmem:[#allocation4 + $0x1d8] sm:$0xff]
    %v150 = vld [vmem:[#allocation4 + $0x1e0] sm:$0xff]
    %v151 = vld [vmem:[#allocation4 + $0x1e8] sm:$0xff]
    %v152 = vld [vmem:[#allocation4 + $0x1f0] sm:$0xff]
    %v153 = vld [vmem:[#allocation4 + $0x1f8] sm:$0xff]
    %v154 = vld [vmem:[#allocation7] sm:$0xff]
    %v155 = vld [vmem:[#allocation7 + $0x8] sm:$0xff]
    %v156 = vld [vmem:[#allocation7 + $0x10] sm:$0xff]
    %v157 = vld [vmem:[#allocation7 + $0x18] sm:$0xff]
    %v158 = vld [vmem:[#allocation7 + $0x20] sm:$0xff]
    %v159 = vld [vmem:[#allocation7 + $0x28] sm:$0xff]
    %v160 = vld [vmem:[#allocation7 + $0x30] sm:$0xff]
    %v161 = vld [vmem:[#allocation7 + $0x38] sm:$0xff]
    %v162 = vld [vmem:[#allocation7 + $0x40] sm:$0xff]
    %v163 = vld [vmem:[#allocation7 + $0x48] sm:$0xff]
    %v164 = vld [vmem:[#allocation7 + $0x50] sm:$0xff]
    %v165 = vld [vmem:[#allocation7 + $0x58] sm:$0xff]
    %v166 = vld [vmem:[#allocation7 + $0x60] sm:$0xff]
    %v167 = vld [vmem:[#allocation7 + $0x68] sm:$0xff]
    %v168 = vld [vmem:[#allocation7 + $0x70] sm:$0xff]
    %v169 = vld [vmem:[#allocation7 + $0x78] sm:$0xff]
    %170 = vmatprep.subr.mxu0 0.0
    %171 = vmatpush1.msra.mxu0 %v154
    %172 = vmatprep.subr.mxu0 0.0
    %173 = vmatpush1.msra.mxu0 %v155
    %174 = vmatprep.subr.mxu0 0.0
    %175 = vmatpush1.msra.mxu0 %v156
    %176 = vmatprep.subr.mxu0 0.0
    %177 = vmatpush1.msra.mxu0 %v157
    %178 = vmatprep.subr.mxu0 0.0
    %179 = vmatpush1.msra.mxu0 %v158
    %180 = vmatprep.subr.mxu0 0.0
    %181 = vmatpush1.msra.mxu0 %v159
    %182 = vmatprep.subr.mxu0 0.0
    %183 = vmatpush1.msra.mxu0 %v160
    %184 = vmatprep.subr.mxu0 0.0
    %185 = vmatpush1.msra.mxu0 %v161
    %186 = vmatprep.subr.mxu0 0.0
    %187 = vmatpush1.msra.mxu0 %v162
    %188 = vmatprep.subr.mxu0 0.0
    %189 = vmatpush1.msra.mxu0 %v163
    %190 = vmatprep.subr.mxu0 0.0
    %191 = vmatpush1.msra.mxu0 %v164
    %192 = vmatprep.subr.mxu0 0.0
    %193 = vmatpush1.msra.mxu0 %v165
    %194 = vmatprep.subr.mxu0 0.0
    %195 = vmatpush1.msra.mxu0 %v166
    %196 = vmatprep.subr.mxu0 0.0
    %197 = vmatpush1.msra.mxu0 %v167
    %198 = vmatprep.subr.mxu0 0.0
    %199 = vmatpush1.msra.mxu0 %v168
    %200 = vmatprep.subr.mxu0 0.0
    %201 = vmatpush1.msra.mxu0 %v169
    %202 = vmatprep.subr.mxu0 0.0
    %203 = vmatpush1.msra.mxu0 0.0
    %204 = vmatprep.subr.mxu0 0.0
    %205 = vmatpush1.msra.mxu0 0.0
    %206 = vmatprep.subr.mxu0 0.0
    %207 = vmatpush1.msra.mxu0 0.0
    %208 = vmatprep.subr.mxu0 0.0
    %209 = vmatpush1.msra.mxu0 0.0
    %210 = vmatprep.subr.mxu0 0.0
    %211 = vmatpush1.msra.mxu0 0.0
    %212 = vmatprep.subr.mxu0 0.0
    %213 = vmatpush1.msra.mxu0 0.0
    %214 = vmatprep.subr.mxu0 0.0
    %215 = vmatpush1.msra.mxu0 0.0
    %216 = vmatprep.subr.mxu0 0.0
    %217 = vmatpush1.msra.mxu0 0.0
    %218 = vmatprep.subr.mxu0 0.0
    %219 = vmatpush1.msra.mxu0 0.0
    %220 = vmatprep.subr.mxu0 0.0
    %221 = vmatpush1.msra.mxu0 0.0
    %222 = vmatprep.subr.mxu0 0.0
    %223 = vmatpush1.msra.mxu0 0.0
    %224 = vmatprep.subr.mxu0 0.0
    %225 = vmatpush1.msra.mxu0 0.0
    %226 = vmatprep.subr.mxu0 0.0
    %227 = vmatpush1.msra.mxu0 0.0
    %228 = vmatprep.subr.mxu0 0.0
    %229 = vmatpush1.msra.mxu0 0.0
    %230 = vmatprep.subr.mxu0 0.0
    %231 = vmatpush1.msra.mxu0 0.0
    %232 = vmatprep.subr.mxu0 0.0
    %233 = vmatpush1.msra.mxu0 0.0
    %234 = vmatprep.mubr.f32.mxu0 0.0
    %235 = vmatmul.mubr.f32.gmra.mrb[0].mxu0 %v90
    %v236 = vpop.f32.mrb[0].mxu0
    %v237 = vadd.f32 0.0, %v236
    %v238 = vpop.f32.mrb[0].mxu0
    %239 = vmatprep.mubr.f32.mxu0 0.0
    %240 = vmatmul.mubr.f32.gmra.mrb[0].mxu0 %v91
    %v241 = vpop.f32.mrb[0].mxu0
    %v242 = vadd.f32 0.0, %v241
    %v243 = vpop.f32.mrb[0].mxu0
    %244 = vmatprep.mubr.f32.mxu0 0.0
    %245 = vmatmul.mubr.f32.gmra.mrb[0].mxu0 %v92
    %v246 = vpop.f32.mrb[0].mxu0
    %v247 = vadd.f32 0.0, %v246
    %v248 = vpop.f32.mrb[0].mxu0
    %249 = vmatprep.mubr.f32.mxu0 0.0
    %250 = vmatmul.mubr.f32.gmra.mrb[0].mxu0 %v93
    %v251 = vpop.f32.mrb[0].mxu0
    %v252 = vadd.f32 0.0, %v251
    %v253 = vpop.f32.mrb[0].mxu0
    %254 = vmatprep.mubr.f32.mxu0 0.0
    %255 = vmatmul.mubr.f32.gmra.mrb[0].mxu0 %v94
    %v256 = vpop.f32.mrb[0].mxu0
    %v257 = vadd.f32 0.0, %v256
    %v258 = vpop.f32.mrb[0].mxu0
    %259 = vmatprep.mubr.f32.mxu0 0.0
    %260 = vmatmul.mubr.f32.gmra.mrb[0].mxu0 %v95
    %v261 = vpop.f32.mrb[0].mxu0
    %v262 = vadd.f32 0.0, %v261
    %v263 = vpop.f32.mrb[0].mxu0
    %264 = vmatprep.mubr.f32.mxu0 0.0
    %265 = vmatmul.mubr.f32.gmra.mrb[0].mxu0 %v96
    %v266 = vpop.f32.mrb[0].mxu0
    %v267 = vadd.f32 0.0, %v266
    %v268 = vpop.f32.mrb[0].mxu0
    %269 = vmatprep.mubr.f32.mxu0 0.0
    %270 = vmatmul.mubr.f32.gmra.mrb[0].mxu0 %v97
    %v271 = vpop.f32.mrb[0].mxu0
    %v272 = vadd.f32 0.0, %v271
    %v273 = vpop.f32.mrb[0].mxu0
    %274 = vmatprep.mubr.f32.mxu0 0.0
    %275 = vmatmul.mubr.f32.gmra.mrb[0].mxu0 %v98
    %v276 = vpop.f32.mrb[0].mxu0
    %v277 = vadd.f32 0.0, %v276
    %v278 = vpop.f32.mrb[0].mxu0
    %279 = vmatprep.mubr.f32.mxu0 0.0
    %280 = vmatmul.mubr.f32.gmra.mrb[0].mxu0 %v99
    %v281 = vpop.f32.mrb[0].mxu0
    %v282 = vadd.f32 0.0, %v281
    %v283 = vpop.f32.mrb[0].mxu0
    %284 = vmatprep.mubr.f32.mxu0 0.0
    %285 = vmatmul.mubr.f32.gmra.mrb[0].mxu0 %v100
    %v286 = vpop.f32.mrb[0].mxu0
    %v287 = vadd.f32 0.0, %v286
    %v288 = vpop.f32.mrb[0].mxu0
    %289 = vmatprep.mubr.f32.mxu0 0.0
    %290 = vmatmul.mubr.f32.gmra.mrb[0].mxu0 %v101
    %v291 = vpop.f32.mrb[0].mxu0
    %v292 = vadd.f32 0.0, %v291
    %v293 = vpop.f32.mrb[0].mxu0
    %294 = vmatprep.mubr.f32.mxu0 0.0
    %295 = vmatmul.mubr.f32.gmra.mrb[0].mxu0 %v102
    %v296 = vpop.f32.mrb[0].mxu0
    %v297 = vadd.f32 0.0, %v296
    %v298 = vpop.f32.mrb[0].mxu0
    %299 = vmatprep.mubr.f32.mxu0 0.0
    %300 = vmatmul.mubr.f32.gmra.mrb[0].mxu0 %v103
    %v301 = vpop.f32.mrb[0].mxu0
    %v302 = vadd.f32 0.0, %v301
    %v303 = vpop.f32.mrb[0].mxu0
    %304 = vmatprep.mubr.f32.mxu0 0.0
    %305 = vmatmul.mubr.f32.gmra.mrb[0].mxu0 %v104
    %v306 = vpop.f32.mrb[0].mxu0
    %v307 = vadd.f32 0.0, %v306
    %v308 = vpop.f32.mrb[0].mxu0
    %309 = vmatprep.mubr.f32.mxu0 0.0
    %310 = vmatmul.mubr.f32.gmra.mrb[0].mxu0 %v105
    %v311 = vpop.f32.mrb[0].mxu0
    %v312 = vadd.f32 0.0, %v311
    %v313 = vpop.f32.mrb[0].mxu0
    %314 = vmatprep.mubr.f32.mxu0 0.0
    %315 = vmatmul.mubr.f32.gmra.mrb[0].mxu0 %v106
    %v316 = vpop.f32.mrb[0].mxu0
    %v317 = vadd.f32 0.0, %v316
    %v318 = vpop.f32.mrb[0].mxu0
    %319 = vmatprep.mubr.f32.mxu0 0.0
    %320 = vmatmul.mubr.f32.gmra.mrb[0].mxu0 %v107
    %v321 = vpop.f32.mrb[0].mxu0
    %v322 = vadd.f32 0.0, %v321
    %v323 = vpop.f32.mrb[0].mxu0
    %324 = vmatprep.mubr.f32.mxu0 0.0
    %325 = vmatmul.mubr.f32.gmra.mrb[0].mxu0 %v108
    %v326 = vpop.f32.mrb[0].mxu0
    %v327 = vadd.f32 0.0, %v326
    %v328 = vpop.f32.mrb[0].mxu0
    %329 = vmatprep.mubr.f32.mxu0 0.0
    %330 = vmatmul.mubr.f32.gmra.mrb[0].mxu0 %v109
    %v331 = vpop.f32.mrb[0].mxu0
    %v332 = vadd.f32 0.0, %v331
    %v333 = vpop.f32.mrb[0].mxu0
    %334 = vmatprep.mubr.f32.mxu0 0.0
    %335 = vmatmul.mubr.f32.gmra.mrb[0].mxu0 %v110
    %v336 = vpop.f32.mrb[0].mxu0
    %v337 = vadd.f32 0.0, %v336
    %v338 = vpop.f32.mrb[0].mxu0
    %339 = vmatprep.mubr.f32.mxu0 0.0
    %340 = vmatmul.mubr.f32.gmra.mrb[0].mxu0 %v111
    %v341 = vpop.f32.mrb[0].mxu0
    %v342 = vadd.f32 0.0, %v341
    %v343 = vpop.f32.mrb[0].mxu0
    %344 = vmatprep.mubr.f32.mxu0 0.0
    %345 = vmatmul.mubr.f32.gmra.mrb[0].mxu0 %v112
    %v346 = vpop.f32.mrb[0].mxu0
    %v347 = vadd.f32 0.0, %v346
    %v348 = vpop.f32.mrb[0].mxu0
    %349 = vmatprep.mubr.f32.mxu0 0.0
    %350 = vmatmul.mubr.f32.gmra.mrb[0].mxu0 %v113
    %v351 = vpop.f32.mrb[0].mxu0
    %v352 = vadd.f32 0.0, %v351
    %v353 = vpop.f32.mrb[0].mxu0
    %354 = vmatprep.mubr.f32.mxu0 0.0
    %355 = vmatmul.mubr.f32.gmra.mrb[0].mxu0 %v114
    %v356 = vpop.f32.mrb[0].mxu0
    %v357 = vadd.f32 0.0, %v356
    %v358 = vpop.f32.mrb[0].mxu0
    %359 = vmatprep.mubr.f32.mxu0 0.0
    %360 = vmatmul.mubr.f32.gmra.mrb[0].mxu0 %v115
    %v361 = vpop.f32.mrb[0].mxu0
    %v362 = vadd.f32 0.0, %v361
    %v363 = vpop.f32.mrb[0].mxu0
    %364 = vmatprep.mubr.f32.mxu0 0.0
    %365 = vmatmul.mubr.f32.gmra.mrb[0].mxu0 %v116
    %v366 = vpop.f32.mrb[0].mxu0
    %v367 = vadd.f32 0.0, %v366
    %v368 = vpop.f32.mrb[0].mxu0
    %369 = vmatprep.mubr.f32.mxu0 0.0
    %370 = vmatmul.mubr.f32.gmra.mrb[0].mxu0 %v117
    %v371 = vpop.f32.mrb[0].mxu0
    %v372 = vadd.f32 0.0, %v371
    %v373 = vpop.f32.mrb[0].mxu0
    %374 = vmatprep.mubr.f32.mxu0 0.0
    %375 = vmatmul.mubr.f32.gmra.mrb[0].mxu0 %v118
    %v376 = vpop.f32.mrb[0].mxu0
    %v377 = vadd.f32 0.0, %v376
    %v378 = vpop.f32.mrb[0].mxu0
    %379 = vmatprep.mubr.f32.mxu0 0.0
    %380 = vmatmul.mubr.f32.gmra.mrb[0].mxu0 %v119
    %v381 = vpop.f32.mrb[0].mxu0
    %v382 = vadd.f32 0.0, %v381
    %v383 = vpop.f32.mrb[0].mxu0
    %384 = vmatprep.mubr.f32.mxu0 0.0
    %385 = vmatmul.mubr.f32.gmra.mrb[0].mxu0 %v120
    %v386 = vpop.f32.mrb[0].mxu0
    %v387 = vadd.f32 0.0, %v386
    %v388 = vpop.f32.mrb[0].mxu0
    %389 = vmatprep.mubr.f32.mxu0 0.0
    %390 = vmatmul.mubr.f32.gmra.mrb[0].mxu0 %v121
    %v391 = vpop.f32.mrb[0].mxu0
    %v392 = vadd.f32 0.0, %v391
    %v393 = vpop.f32.mrb[0].mxu0
    %394 = vmatprep.mubr.f32.mxu0 0.0
    %395 = vmatmul.mubr.f32.gmra.mrb[0].mxu0 %v122
    %v396 = vpop.f32.mrb[0].mxu0
    %v397 = vadd.f32 0.0, %v396
    %v398 = vpop.f32.mrb[0].mxu0
    %399 = vmatprep.mubr.f32.mxu0 0.0
    %400 = vmatmul.mubr.f32.gmra.mrb[0].mxu0 %v123
    %v401 = vpop.f32.mrb[0].mxu0
    %v402 = vadd.f32 0.0, %v401
    %v403 = vpop.f32.mrb[0].mxu0
    %404 = vmatprep.mubr.f32.mxu0 0.0
    %405 = vmatmul.mubr.f32.gmra.mrb[0].mxu0 %v124
    %v406 = vpop.f32.mrb[0].mxu0
    %v407 = vadd.f32 0.0, %v406
    %v408 = vpop.f32.mrb[0].mxu0
    %409 = vmatprep.mubr.f32.mxu0 0.0
    %410 = vmatmul.mubr.f32.gmra.mrb[0].mxu0 %v125
    %v411 = vpop.f32.mrb[0].mxu0
    %v412 = vadd.f32 0.0, %v411
    %v413 = vpop.f32.mrb[0].mxu0
    %414 = vmatprep.mubr.f32.mxu0 0.0
    %415 = vmatmul.mubr.f32.gmra.mrb[0].mxu0 %v126
    %v416 = vpop.f32.mrb[0].mxu0
    %v417 = vadd.f32 0.0, %v416
    %v418 = vpop.f32.mrb[0].mxu0
    %419 = vmatprep.mubr.f32.mxu0 0.0
    %420 = vmatmul.mubr.f32.gmra.mrb[0].mxu0 %v127
    %v421 = vpop.f32.mrb[0].mxu0
    %v422 = vadd.f32 0.0, %v421
    %v423 = vpop.f32.mrb[0].mxu0
    %424 = vmatprep.mubr.f32.mxu0 0.0
    %425 = vmatmul.mubr.f32.gmra.mrb[0].mxu0 %v128
    %v426 = vpop.f32.mrb[0].mxu0
    %v427 = vadd.f32 0.0, %v426
    %v428 = vpop.f32.mrb[0].mxu0
    %429 = vmatprep.mubr.f32.mxu0 0.0
    %430 = vmatmul.mubr.f32.gmra.mrb[0].mxu0 %v129
    %v431 = vpop.f32.mrb[0].mxu0
    %v432 = vadd.f32 0.0, %v431
    %v433 = vpop.f32.mrb[0].mxu0
    %434 = vmatprep.mubr.f32.mxu0 0.0
    %435 = vmatmul.mubr.f32.gmra.mrb[0].mxu0 %v130
    %v436 = vpop.f32.mrb[0].mxu0
    %v437 = vadd.f32 0.0, %v436
    %v438 = vpop.f32.mrb[0].mxu0
    %439 = vmatprep.mubr.f32.mxu0 0.0
    %440 = vmatmul.mubr.f32.gmra.mrb[0].mxu0 %v131
    %v441 = vpop.f32.mrb[0].mxu0
    %v442 = vadd.f32 0.0, %v441
    %v443 = vpop.f32.mrb[0].mxu0
    %444 = vmatprep.mubr.f32.mxu0 0.0
    %445 = vmatmul.mubr.f32.gmra.mrb[0].mxu0 %v132
    %v446 = vpop.f32.mrb[0].mxu0
    %v447 = vadd.f32 0.0, %v446
    %v448 = vpop.f32.mrb[0].mxu0
    %449 = vmatprep.mubr.f32.mxu0 0.0
    %450 = vmatmul.mubr.f32.gmra.mrb[0].mxu0 %v133
    %v451 = vpop.f32.mrb[0].mxu0
    %v452 = vadd.f32 0.0, %v451
    %v453 = vpop.f32.mrb[0].mxu0
    %454 = vmatprep.mubr.f32.mxu0 0.0
    %455 = vmatmul.mubr.f32.gmra.mrb[0].mxu0 %v134
    %v456 = vpop.f32.mrb[0].mxu0
    %v457 = vadd.f32 0.0, %v456
    %v458 = vpop.f32.mrb[0].mxu0
    %459 = vmatprep.mubr.f32.mxu0 0.0
    %460 = vmatmul.mubr.f32.gmra.mrb[0].mxu0 %v135
    %v461 = vpop.f32.mrb[0].mxu0
    %v462 = vadd.f32 0.0, %v461
    %v463 = vpop.f32.mrb[0].mxu0
    %464 = vmatprep.mubr.f32.mxu0 0.0
    %465 = vmatmul.mubr.f32.gmra.mrb[0].mxu0 %v136
    %v466 = vpop.f32.mrb[0].mxu0
    %v467 = vadd.f32 0.0, %v466
    %v468 = vpop.f32.mrb[0].mxu0
    %469 = vmatprep.mubr.f32.mxu0 0.0
    %470 = vmatmul.mubr.f32.gmra.mrb[0].mxu0 %v137
    %v471 = vpop.f32.mrb[0].mxu0
    %v472 = vadd.f32 0.0, %v471
    %v473 = vpop.f32.mrb[0].mxu0
    %474 = vmatprep.mubr.f32.mxu0 0.0
    %475 = vmatmul.mubr.f32.gmra.mrb[0].mxu0 %v138
    %v476 = vpop.f32.mrb[0].mxu0
    %v477 = vadd.f32 0.0, %v476
    %v478 = vpop.f32.mrb[0].mxu0
    %479 = vmatprep.mubr.f32.mxu0 0.0
    %480 = vmatmul.mubr.f32.gmra.mrb[0].mxu0 %v139
    %v481 = vpop.f32.mrb[0].mxu0
    %v482 = vadd.f32 0.0, %v481
    %v483 = vpop.f32.mrb[0].mxu0
    %484 = vmatprep.mubr.f32.mxu0 0.0
    %485 = vmatmul.mubr.f32.gmra.mrb[0].mxu0 %v140
    %v486 = vpop.f32.mrb[0].mxu0
    %v487 = vadd.f32 0.0, %v486
    %v488 = vpop.f32.mrb[0].mxu0
    %489 = vmatprep.mubr.f32.mxu0 0.0
    %490 = vmatmul.mubr.f32.gmra.mrb[0].mxu0 %v141
    %v491 = vpop.f32.mrb[0].mxu0
    %v492 = vadd.f32 0.0, %v491
    %v493 = vpop.f32.mrb[0].mxu0
    %494 = vmatprep.mubr.f32.mxu0 0.0
    %495 = vmatmul.mubr.f32.gmra.mrb[0].mxu0 %v142
    %v496 = vpop.f32.mrb[0].mxu0
    %v497 = vadd.f32 0.0, %v496
    %v498 = vpop.f32.mrb[0].mxu0
    %499 = vmatprep.mubr.f32.mxu0 0.0
    %500 = vmatmul.mubr.f32.gmra.mrb[0].mxu0 %v143
    %v501 = vpop.f32.mrb[0].mxu0
    %v502 = vadd.f32 0.0, %v501
    %v503 = vpop.f32.mrb[0].mxu0
    %504 = vmatprep.mubr.f32.mxu0 0.0
    %505 = vmatmul.mubr.f32.gmra.mrb[0].mxu0 %v144
    %v506 = vpop.f32.mrb[0].mxu0
    %v507 = vadd.f32 0.0, %v506
    %v508 = vpop.f32.mrb[0].mxu0
    %509 = vmatprep.mubr.f32.mxu0 0.0
    %510 = vmatmul.mubr.f32.gmra.mrb[0].mxu0 %v145
    %v511 = vpop.f32.mrb[0].mxu0
    %v512 = vadd.f32 0.0, %v511
    %v513 = vpop.f32.mrb[0].mxu0
    %514 = vmatprep.mubr.f32.mxu0 0.0
    %515 = vmatmul.mubr.f32.gmra.mrb[0].mxu0 %v146
    %v516 = vpop.f32.mrb[0].mxu0
    %v517 = vadd.f32 0.0, %v516
    %v518 = vpop.f32.mrb[0].mxu0
    %519 = vmatprep.mubr.f32.mxu0 0.0
    %520 = vmatmul.mubr.f32.gmra.mrb[0].mxu0 %v147
    %v521 = vpop.f32.mrb[0].mxu0
    %v522 = vadd.f32 0.0, %v521
    %v523 = vpop.f32.mrb[0].mxu0
    %524 = vmatprep.mubr.f32.mxu0 0.0
    %525 = vmatmul.mubr.f32.gmra.mrb[0].mxu0 %v148
    %v526 = vpop.f32.mrb[0].mxu0
    %v527 = vadd.f32 0.0, %v526
    %v528 = vpop.f32.mrb[0].mxu0
    %529 = vmatprep.mubr.f32.mxu0 0.0
    %530 = vmatmul.mubr.f32.gmra.mrb[0].mxu0 %v149
    %v531 = vpop.f32.mrb[0].mxu0
    %v532 = vadd.f32 0.0, %v531
    %v533 = vpop.f32.mrb[0].mxu0
    %534 = vmatprep.mubr.f32.mxu0 0.0
    %535 = vmatmul.mubr.f32.gmra.mrb[0].mxu0 %v150
    %v536 = vpop.f32.mrb[0].mxu0
    %v537 = vadd.f32 0.0, %v536
    %v538 = vpop.f32.mrb[0].mxu0
    %539 = vmatprep.mubr.f32.mxu0 0.0
    %540 = vmatmul.mubr.f32.gmra.mrb[0].mxu0 %v151
    %v541 = vpop.f32.mrb[0].mxu0
    %v542 = vadd.f32 0.0, %v541
    %v543 = vpop.f32.mrb[0].mxu0
    %544 = vmatprep.mubr.f32.mxu0 0.0
    %545 = vmatmul.mubr.f32.gmra.mrb[0].mxu0 %v152
    %v546 = vpop.f32.mrb[0].mxu0
    %v547 = vadd.f32 0.0, %v546
    %v548 = vpop.f32.mrb[0].mxu0
    %549 = vmatprep.mubr.f32.mxu0 0.0
    %550 = vmatmul.mubr.f32.gmra.mrb[0].mxu0 %v153
    %v551 = vpop.f32.mrb[0].mxu0
    %v552 = vadd.f32 0.0, %v551
    %v553 = vpop.f32.mrb[0].mxu0
    %554 = vdwg.mxu0
    %v555 = vld [vmem:[%s2] sm:$0x1]
    %v556 = vld [vmem:[%s3] sm:$0x1]
    %v557 = vadd.f32 %v237, %v242
    %v558 = vadd.f32 %v557, %v247
    %v559 = vadd.f32 %v558, %v252
    %v560 = vadd.f32 %v559, %v257
    %v561 = vadd.f32 %v560, %v262
    %v562 = vadd.f32 %v561, %v267
    %v563 = vadd.f32 %v562, %v272
    %v564 = vadd.f32 %v563, %v277
    %v565 = vadd.f32 %v564, %v282
    %v566 = vadd.f32 %v565, %v287
    %v567 = vadd.f32 %v566, %v292
    %v568 = vadd.f32 %v567, %v297
    %v569 = vadd.f32 %v568, %v302
    %v570 = vadd.f32 %v569, %v307
    %v571 = vadd.f32 %v570, %v312
    %v572 = vadd.f32 %v571, %v317
    %v573 = vadd.f32 %v572, %v322
    %v574 = vadd.f32 %v573, %v327
    %v575 = vadd.f32 %v574, %v332
    %v576 = vadd.f32 %v575, %v337
    %v577 = vadd.f32 %v576, %v342
    %v578 = vadd.f32 %v577, %v347
    %v579 = vadd.f32 %v578, %v352
    %v580 = vadd.f32 %v579, %v357
    %v581 = vadd.f32 %v580, %v362
    %v582 = vadd.f32 %v581, %v367
    %v583 = vadd.f32 %v582, %v372
    %v584 = vadd.f32 %v583, %v377
    %v585 = vadd.f32 %v584, %v382
    %v586 = vadd.f32 %v585, %v387
    %v587 = vadd.f32 %v586, %v392
    %v588 = vadd.f32 %v587, %v397
    %v589 = vadd.f32 %v588, %v402
    %v590 = vadd.f32 %v589, %v407
    %v591 = vadd.f32 %v590, %v412
    %v592 = vadd.f32 %v591, %v417
    %v593 = vadd.f32 %v592, %v422
    %v594 = vadd.f32 %v593, %v427
    %v595 = vadd.f32 %v594, %v432
    %v596 = vadd.f32 %v595, %v437
    %v597 = vadd.f32 %v596, %v442
    %v598 = vadd.f32 %v597, %v447
    %v599 = vadd.f32 %v598, %v452
    %v600 = vadd.f32 %v599, %v457
    %v601 = vadd.f32 %v600, %v462
    %v602 = vadd.f32 %v601, %v467
    %v603 = vadd.f32 %v602, %v472
    %v604 = vadd.f32 %v603, %v477
    %v605 = vadd.f32 %v604, %v482
    %v606 = vadd.f32 %v605, %v487
    %v607 = vadd.f32 %v606, %v492
    %v608 = vadd.f32 %v607, %v497
    %v609 = vadd.f32 %v608, %v502
    %v610 = vadd.f32 %v609, %v507
    %v611 = vadd.f32 %v610, %v512
    %v612 = vadd.f32 %v611, %v517
    %v613 = vadd.f32 %v612, %v522
    %v614 = vadd.f32 %v613, %v527
    %v615 = vadd.f32 %v614, %v532
    %v616 = vadd.f32 %v615, %v537
    %v617 = vadd.f32 %v616, %v542
    %v618 = vadd.f32 %v617, %v547
    %v619 = vadd.f32 %v618, %v552
    %v620 = vrot.slane %v619, 4
    %v621 = vadd.f32 %v619, %v620
    %v622 = vrot.slane %v621, 2
    %v623 = vadd.f32 %v621, %v622
    %v624 = vrot.slane %v623, 1
    %v625 = vadd.f32 %v623, %v624
    %v626 = vrcp.pop 512.0
    %v627 = vmul.f32 %v625, %v626
    %v628 = vsub.f32 %v237, %v627
    %v629 = vsub.f32 %v242, %v627
    %v630 = vsub.f32 %v247, %v627
    %v631 = vsub.f32 %v252, %v627
    %v632 = vsub.f32 %v257, %v627
    %v633 = vsub.f32 %v262, %v627
    %v634 = vsub.f32 %v267, %v627
    %v635 = vsub.f32 %v272, %v627
    %v636 = vsub.f32 %v277, %v627
    %v637 = vsub.f32 %v282, %v627
    %v638 = vsub.f32 %v287, %v627
    %v639 = vsub.f32 %v292, %v627
    %v640 = vsub.f32 %v297, %v627
    %v641 = vsub.f32 %v302, %v627
    %v642 = vsub.f32 %v307, %v627
    %v643 = vsub.f32 %v312, %v627
    %v644 = vsub.f32 %v317, %v627
    %v645 = vsub.f32 %v322, %v627
    %v646 = vsub.f32 %v327, %v627
    %v647 = vsub.f32 %v332, %v627
    %v648 = vsub.f32 %v337, %v627
    %v649 = vsub.f32 %v342, %v627
    %v650 = vsub.f32 %v347, %v627
    %v651 = vsub.f32 %v352, %v627
    %v652 = vsub.f32 %v357, %v627
    %v653 = vsub.f32 %v362, %v627
    %v654 = vsub.f32 %v367, %v627
    %v655 = vsub.f32 %v372, %v627
    %v656 = vsub.f32 %v377, %v627
    %v657 = vsub.f32 %v382, %v627
    %v658 = vsub.f32 %v387, %v627
    %v659 = vsub.f32 %v392, %v627
    %v660 = vsub.f32 %v397, %v627
    %v661 = vsub.f32 %v402, %v627
    %v662 = vsub.f32 %v407, %v627
    %v663 = vsub.f32 %v412, %v627
    %v664 = vsub.f32 %v417, %v627
    %v665 = vsub.f32 %v422, %v627
    %v666 = vsub.f32 %v427, %v627
    %v667 = vsub.f32 %v432, %v627
    %v668 = vsub.f32 %v437, %v627
    %v669 = vsub.f32 %v442, %v627
    %v670 = vsub.f32 %v447, %v627
    %v671 = vsub.f32 %v452, %v627
    %v672 = vsub.f32 %v457, %v627
    %v673 = vsub.f32 %v462, %v627
    %v674 = vsub.f32 %v467, %v627
    %v675 = vsub.f32 %v472, %v627
    %v676 = vsub.f32 %v477, %v627
    %v677 = vsub.f32 %v482, %v627
    %v678 = vsub.f32 %v487, %v627
    %v679 = vsub.f32 %v492, %v627
    %v680 = vsub.f32 %v497, %v627
    %v681 = vsub.f32 %v502, %v627
    %v682 = vsub.f32 %v507, %v627
    %v683 = vsub.f32 %v512, %v627
    %v684 = vsub.f32 %v517, %v627
    %v685 = vsub.f32 %v522, %v627
    %v686 = vsub.f32 %v527, %v627
    %v687 = vsub.f32 %v532, %v627
    %v688 = vsub.f32 %v537, %v627
    %v689 = vsub.f32 %v542, %v627
    %v690 = vsub.f32 %v547, %v627
    %v691 = vsub.f32 %v552, %v627
    %v692 = vmul.f32 %v628, %v628
    %v693 = vmul.f32 %v629, %v629
    %v694 = vmul.f32 %v630, %v630
    %v695 = vmul.f32 %v631, %v631
    %v696 = vmul.f32 %v632, %v632
    %v697 = vmul.f32 %v633, %v633
    %v698 = vmul.f32 %v634, %v634
    %v699 = vmul.f32 %v635, %v635
    %v700 = vmul.f32 %v636, %v636
    %v701 = vmul.f32 %v637, %v637
    %v702 = vmul.f32 %v638, %v638
    %v703 = vmul.f32 %v639, %v639
    %v704 = vmul.f32 %v640, %v640
    %v705 = vmul.f32 %v641, %v641
    %v706 = vmul.f32 %v642, %v642
    %v707 = vmul.f32 %v643, %v643
    %v708 = vmul.f32 %v644, %v644
    %v709 = vmul.f32 %v645, %v645
    %v710 = vmul.f32 %v646, %v646
    %v711 = vmul.f32 %v647, %v647
    %v712 = vmul.f32 %v648, %v648
    %v713 = vmul.f32 %v649, %v649
    %v714 = vmul.f32 %v650, %v650
    %v715 = vmul.f32 %v651, %v651
    %v716 = vmul.f32 %v652, %v652
    %v717 = vmul.f32 %v653, %v653
    %v718 = vmul.f32 %v654, %v654
    %v719 = vmul.f32 %v655, %v655
    %v720 = vmul.f32 %v656, %v656
    %v721 = vmul.f32 %v657, %v657
    %v722 = vmul.f32 %v658, %v658
    %v723 = vmul.f32 %v659, %v659
    %v724 = vmul.f32 %v660, %v660
    %v725 = vmul.f32 %v661, %v661
    %v726 = vmul.f32 %v662, %v662
    %v727 = vmul.f32 %v663, %v663
    %v728 = vmul.f32 %v664, %v664
    %v729 = vmul.f32 %v665, %v665
    %v730 = vmul.f32 %v666, %v666
    %v731 = vmul.f32 %v667, %v667
    %v732 = vmul.f32 %v668, %v668
    %v733 = vmul.f32 %v669, %v669
    %v734 = vmul.f32 %v670, %v670
    %v735 = vmul.f32 %v671, %v671
    %v736 = vmul.f32 %v672, %v672
    %v737 = vmul.f32 %v673, %v673
    %v738 = vmul.f32 %v674, %v674
    %v739 = vmul.f32 %v675, %v675
    %v740 = vmul.f32 %v676, %v676
    %v741 = vmul.f32 %v677, %v677
    %v742 = vmul.f32 %v678, %v678
    %v743 = vmul.f32 %v679, %v679
    %v744 = vmul.f32 %v680, %v680
    %v745 = vmul.f32 %v681, %v681
    %v746 = vmul.f32 %v682, %v682
    %v747 = vmul.f32 %v683, %v683
    %v748 = vmul.f32 %v684, %v684
    %v749 = vmul.f32 %v685, %v685
    %v750 = vmul.f32 %v686, %v686
    %v751 = vmul.f32 %v687, %v687
    %v752 = vmul.f32 %v688, %v688
    %v753 = vmul.f32 %v689, %v689
    %v754 = vmul.f32 %v690, %v690
    %v755 = vmul.f32 %v691, %v691
    %v756 = vadd.f32 %v692, %v693
    %v757 = vadd.f32 %v756, %v694
    %v758 = vadd.f32 %v757, %v695
    %v759 = vadd.f32 %v758, %v696
    %v760 = vadd.f32 %v759, %v697
    %v761 = vadd.f32 %v760, %v698
    %v762 = vadd.f32 %v761, %v699
    %v763 = vadd.f32 %v762, %v700
    %v764 = vadd.f32 %v763, %v701
    %v765 = vadd.f32 %v764, %v702
    %v766 = vadd.f32 %v765, %v703
    %v767 = vadd.f32 %v766, %v704
    %v768 = vadd.f32 %v767, %v705
    %v769 = vadd.f32 %v768, %v706
    %v770 = vadd.f32 %v769, %v707
    %v771 = vadd.f32 %v770, %v708
    %v772 = vadd.f32 %v771, %v709
    %v773 = vadd.f32 %v772, %v710
    %v774 = vadd.f32 %v773, %v711
    %v775 = vadd.f32 %v774, %v712
    %v776 = vadd.f32 %v775, %v713
    %v777 = vadd.f32 %v776, %v714
    %v778 = vadd.f32 %v777, %v715
    %v779 = vadd.f32 %v778, %v716
    %v780 = vadd.f32 %v779, %v717
    %v781 = vadd.f32 %v780, %v718
    %v782 = vadd.f32 %v781, %v719
    %v783 = vadd.f32 %v782, %v720
    %v784 = vadd.f32 %v783, %v721
    %v785 = vadd.f32 %v784, %v722
    %v786 = vadd.f32 %v785, %v723
    %v787 = vadd.f32 %v786, %v724
    %v788 = vadd.f32 %v787, %v725
    %v789 = vadd.f32 %v788, %v726
    %v790 = vadd.f32 %v789, %v727
    %v791 = vadd.f32 %v790, %v728
    %v792 = vadd.f32 %v791, %v729
    %v793 = vadd.f32 %v792, %v730
    %v794 = vadd.f32 %v793, %v731
    %v795 = vadd.f32 %v794, %v732
    %v796 = vadd.f32 %v795, %v733
    %v797 = vadd.f32 %v796, %v734
    %v798 = vadd.f32 %v797, %v735
    %v799 = vadd.f32 %v798, %v736
    %v800 = vadd.f32 %v799, %v737
    %v801 = vadd.f32 %v800, %v738
    %v802 = vadd.f32 %v801, %v739
    %v803 = vadd.f32 %v802, %v740
    %v804 = vadd.f32 %v803, %v741
    %v805 = vadd.f32 %v804, %v742
    %v806 = vadd.f32 %v805, %v743
    %v807 = vadd.f32 %v806, %v744
    %v808 = vadd.f32 %v807, %v745
    %v809 = vadd.f32 %v808, %v746
    %v810 = vadd.f32 %v809, %v747
    %v811 = vadd.f32 %v810, %v748
    %v812 = vadd.f32 %v811, %v749
    %v813 = vadd.f32 %v812, %v750
    %v814 = vadd.f32 %v813, %v751
    %v815 = vadd.f32 %v814, %v752
    %v816 = vadd.f32 %v815, %v753
    %v817 = vadd.f32 %v816, %v754
    %v818 = vadd.f32 %v817, %v755
    %v819 = vrot.slane %v818, 4
    %v820 = vadd.f32 %v818, %v819
    %v821 = vrot.slane %v820, 2
    %v822 = vadd.f32 %v820, %v821
    %v823 = vrot.slane %v822, 1
    %v824 = vadd.f32 %v822, %v823
    %v825 = vmul.f32 %v824, %v626
    %v826 = vadd.f32 %v825, 1e-05
    %v827 = vrsqrt.pop %v826
    %v828 = vmul.f32 %v555, %v827
    %v830 = vlaneseq
    %v831 = vshrl.u32 %v830, 7
    %v832 = vsub.s32 0, %v831
    %v833 = vrot.slane %v828, %v832
    %v835 = vmul.f32 %v628, %v833
    %v836 = vmul.f32 %v629, %v833
    %v837 = vmul.f32 %v630, %v833
    %v838 = vmul.f32 %v631, %v833
    %v839 = vmul.f32 %v632, %v833
    %v840 = vmul.f32 %v633, %v833
    %v841 = vmul.f32 %v634, %v833
    %v842 = vmul.f32 %v635, %v833
    %v843 = vmul.f32 %v636, %v833
    %v844 = vmul.f32 %v637, %v833
    %v845 = vmul.f32 %v638, %v833
    %v846 = vmul.f32 %v639, %v833
    %v847 = vmul.f32 %v640, %v833
    %v848 = vmul.f32 %v641, %v833
    %v849 = vmul.f32 %v642, %v833
    %v850 = vmul.f32 %v643, %v833
    %v851 = vmul.f32 %v644, %v833
    %v852 = vmul.f32 %v645, %v833
    %v853 = vmul.f32 %v646, %v833
    %v854 = vmul.f32 %v647, %v833
    %v855 = vmul.f32 %v648, %v833
    %v856 = vmul.f32 %v649, %v833
    %v857 = vmul.f32 %v650, %v833
    %v858 = vmul.f32 %v651, %v833
    %v859 = vmul.f32 %v652, %v833
    %v860 = vmul.f32 %v653, %v833
    %v861 = vmul.f32 %v654, %v833
    %v862 = vmul.f32 %v655, %v833
    %v863 = vmul.f32 %v656, %v833
    %v864 = vmul.f32 %v657, %v833
    %v865 = vmul.f32 %v658, %v833
    %v866 = vmul.f32 %v659, %v833
    %v867 = vmul.f32 %v660, %v833
    %v868 = vmul.f32 %v661, %v833
    %v869 = vmul.f32 %v662, %v833
    %v870 = vmul.f32 %v663, %v833
    %v871 = vmul.f32 %v664, %v833
    %v872 = vmul.f32 %v665, %v833
    %v873 = vmul.f32 %v666, %v833
    %v874 = vmul.f32 %v667, %v833
    %v875 = vmul.f32 %v668, %v833
    %v876 = vmul.f32 %v669, %v833
    %v877 = vmul.f32 %v670, %v833
    %v878 = vmul.f32 %v671, %v833
    %v879 = vmul.f32 %v672, %v833
    %v880 = vmul.f32 %v673, %v833
    %v881 = vmul.f32 %v674, %v833
    %v882 = vmul.f32 %v675, %v833
    %v883 = vmul.f32 %v676, %v833
    %v884 = vmul.f32 %v677, %v833
    %v885 = vmul.f32 %v678, %v833
    %v886 = vmul.f32 %v679, %v833
    %v887 = vmul.f32 %v680, %v833
    %v888 = vmul.f32 %v681, %v833
    %v889 = vmul.f32 %v682, %v833
    %v890 = vmul.f32 %v683, %v833
    %v891 = vmul.f32 %v684, %v833
    %v892 = vmul.f32 %v685, %v833
    %v893 = vmul.f32 %v686, %v833
    %v894 = vmul.f32 %v687, %v833
    %v895 = vmul.f32 %v688, %v833
    %v896 = vmul.f32 %v689, %v833
    %v897 = vmul.f32 %v690, %v833
    %v898 = vmul.f32 %v691, %v833
    %v900 = vlaneseq
    %v901 = vshrl.u32 %v900, 7
    %v902 = vsub.s32 0, %v901
    %v903 = vrot.slane %v556, %v902
    %v905 = vadd.f32 %v835, %v903
    %v906 = vadd.f32 %v836, %v903
    %v907 = vadd.f32 %v837, %v903
    %v908 = vadd.f32 %v838, %v903
    %v909 = vadd.f32 %v839, %v903
    %v910 = vadd.f32 %v840, %v903
    %v911 = vadd.f32 %v841, %v903
    %v912 = vadd.f32 %v842, %v903
    %v913 = vadd.f32 %v843, %v903
    %v914 = vadd.f32 %v844, %v903
    %v915 = vadd.f32 %v845, %v903
    %v916 = vadd.f32 %v846, %v903
    %v917 = vadd.f32 %v847, %v903
    %v918 = vadd.f32 %v848, %v903
    %v919 = vadd.f32 %v849, %v903
    %v920 = vadd.f32 %v850, %v903
    %v921 = vadd.f32 %v851, %v903
    %v922 = vadd.f32 %v852, %v903
    %v923 = vadd.f32 %v853, %v903
    %v924 = vadd.f32 %v854, %v903
    %v925 = vadd.f32 %v855, %v903
    %v926 = vadd.f32 %v856, %v903
    %v927 = vadd.f32 %v857, %v903
    %v928 = vadd.f32 %v858, %v903
    %v929 = vadd.f32 %v859, %v903
    %v930 = vadd.f32 %v860, %v903
    %v931 = vadd.f32 %v861, %v903
    %v932 = vadd.f32 %v862, %v903
    %v933 = vadd.f32 %v863, %v903
    %v934 = vadd.f32 %v864, %v903
    %v935 = vadd.f32 %v865, %v903
    %v936 = vadd.f32 %v866, %v903
    %v937 = vadd.f32 %v867, %v903
    %v938 = vadd.f32 %v868, %v903
    %v939 = vadd.f32 %v869, %v903
    %v940 = vadd.f32 %v870, %v903
    %v941 = vadd.f32 %v871, %v903
    %v942 = vadd.f32 %v872, %v903
    %v943 = vadd.f32 %v873, %v903
    %v944 = vadd.f32 %v874, %v903
    %v945 = vadd.f32 %v875, %v903
    %v946 = vadd.f32 %v876, %v903
    %v947 = vadd.f32 %v877, %v903
    %v948 = vadd.f32 %v878, %v903
    %v949 = vadd.f32 %v879, %v903
    %v950 = vadd.f32 %v880, %v903
    %v951 = vadd.f32 %v881, %v903
    %v952 = vadd.f32 %v882, %v903
    %v953 = vadd.f32 %v883, %v903
    %v954 = vadd.f32 %v884, %v903
    %v955 = vadd.f32 %v885, %v903
    %v956 = vadd.f32 %v886, %v903
    %v957 = vadd.f32 %v887, %v903
    %v958 = vadd.f32 %v888, %v903
    %v959 = vadd.f32 %v889, %v903
    %v960 = vadd.f32 %v890, %v903
    %v961 = vadd.f32 %v891, %v903
    %v962 = vadd.f32 %v892, %v903
    %v963 = vadd.f32 %v893, %v903
    %v964 = vadd.f32 %v894, %v903
    %v965 = vadd.f32 %v895, %v903
    %v966 = vadd.f32 %v896, %v903
    %v967 = vadd.f32 %v897, %v903
    %v968 = vadd.f32 %v898, %v903
    %vm969 = vcmp.ge.f32.partialorder %v905, 0.0
    %vm970 = vcmp.ge.f32.partialorder %v906, 0.0
    %vm971 = vcmp.ge.f32.partialorder %v907, 0.0
    %vm972 = vcmp.ge.f32.partialorder %v908, 0.0
    %vm973 = vcmp.ge.f32.partialorder %v909, 0.0
    %vm974 = vcmp.ge.f32.partialorder %v910, 0.0
    %vm975 = vcmp.ge.f32.partialorder %v911, 0.0
    %vm976 = vcmp.ge.f32.partialorder %v912, 0.0
    %vm977 = vcmp.ge.f32.partialorder %v913, 0.0
    %vm978 = vcmp.ge.f32.partialorder %v914, 0.0
    %vm979 = vcmp.ge.f32.partialorder %v915, 0.0
    %vm980 = vcmp.ge.f32.partialorder %v916, 0.0
    %vm981 = vcmp.ge.f32.partialorder %v917, 0.0
    %vm982 = vcmp.ge.f32.partialorder %v918, 0.0
    %vm983 = vcmp.ge.f32.partialorder %v919, 0.0
    %vm984 = vcmp.ge.f32.partialorder %v920, 0.0
    %vm985 = vcmp.ge.f32.partialorder %v921, 0.0
    %vm986 = vcmp.ge.f32.partialorder %v922, 0.0
    %vm987 = vcmp.ge.f32.partialorder %v923, 0.0
    %vm988 = vcmp.ge.f32.partialorder %v924, 0.0
    %vm989 = vcmp.ge.f32.partialorder %v925, 0.0
    %vm990 = vcmp.ge.f32.partialorder %v926, 0.0
    %vm991 = vcmp.ge.f32.partialorder %v927, 0.0
    %vm992 = vcmp.ge.f32.partialorder %v928, 0.0
    %vm993 = vcmp.ge.f32.partialorder %v929, 0.0
    %vm994 = vcmp.ge.f32.partialorder %v930, 0.0
    %vm995 = vcmp.ge.f32.partialorder %v931, 0.0
    %vm996 = vcmp.ge.f32.partialorder %v932, 0.0
    %vm997 = vcmp.ge.f32.partialorder %v933, 0.0
    %vm998 = vcmp.ge.f32.partialorder %v934, 0.0
    %vm999 = vcmp.ge.f32.partialorder %v935, 0.0
    %vm1000 = vcmp.ge.f32.partialorder %v936, 0.0
    %vm1001 = vcmp.ge.f32.partialorder %v937, 0.0
    %vm1002 = vcmp.ge.f32.partialorder %v938, 0.0
    %vm1003 = vcmp.ge.f32.partialorder %v939, 0.0
    %vm1004 = vcmp.ge.f32.partialorder %v940, 0.0
    %vm1005 = vcmp.ge.f32.partialorder %v941, 0.0
    %vm1006 = vcmp.ge.f32.partialorder %v942, 0.0
    %vm1007 = vcmp.ge.f32.partialorder %v943, 0.0
    %vm1008 = vcmp.ge.f32.partialorder %v944, 0.0
    %vm1009 = vcmp.ge.f32.partialorder %v945, 0.0
    %vm1010 = vcmp.ge.f32.partialorder %v946, 0.0
    %vm1011 = vcmp.ge.f32.partialorder %v947, 0.0
    %vm1012 = vcmp.ge.f32.partialorder %v948, 0.0
    %vm1013 = vcmp.ge.f32.partialorder %v949, 0.0
    %vm1014 = vcmp.ge.f32.partialorder %v950, 0.0
    %vm1015 = vcmp.ge.f32.partialorder %v951, 0.0
    %vm1016 = vcmp.ge.f32.partialorder %v952, 0.0
    %vm1017 = vcmp.ge.f32.partialorder %v953, 0.0
    %vm1018 = vcmp.ge.f32.partialorder %v954, 0.0
    %vm1019 = vcmp.ge.f32.partialorder %v955, 0.0
    %vm1020 = vcmp.ge.f32.partialorder %v956, 0.0
    %vm1021 = vcmp.ge.f32.partialorder %v957, 0.0
    %vm1022 = vcmp.ge.f32.partialorder %v958, 0.0
    %vm1023 = vcmp.ge.f32.partialorder %v959, 0.0
    %vm1024 = vcmp.ge.f32.partialorder %v960, 0.0
    %vm1025 = vcmp.ge.f32.partialorder %v961, 0.0
    %vm1026 = vcmp.ge.f32.partialorder %v962, 0.0
    %vm1027 = vcmp.ge.f32.partialorder %v963, 0.0
    %vm1028 = vcmp.ge.f32.partialorder %v964, 0.0
    %vm1029 = vcmp.ge.f32.partialorder %v965, 0.0
    %vm1030 = vcmp.ge.f32.partialorder %v966, 0.0
    %vm1031 = vcmp.ge.f32.partialorder %v967, 0.0
    %vm1032 = vcmp.ge.f32.partialorder %v968, 0.0
    %v1033 = vstv %s89
    %v1034 = vmul.f32 %v1033, %v905
    %v1035 = vmul.f32 %v1033, %v906
    %v1036 = vmul.f32 %v1033, %v907
    %v1037 = vmul.f32 %v1033, %v908
    %v1038 = vmul.f32 %v1033, %v909
    %v1039 = vmul.f32 %v1033, %v910
    %v1040 = vmul.f32 %v1033, %v911
    %v1041 = vmul.f32 %v1033, %v912
    %v1042 = vmul.f32 %v1033, %v913
    %v1043 = vmul.f32 %v1033, %v914
    %v1044 = vmul.f32 %v1033, %v915
    %v1045 = vmul.f32 %v1033, %v916
    %v1046 = vmul.f32 %v1033, %v917
    %v1047 = vmul.f32 %v1033, %v918
    %v1048 = vmul.f32 %v1033, %v919
    %v1049 = vmul.f32 %v1033, %v920
    %v1050 = vmul.f32 %v1033, %v921
    %v1051 = vmul.f32 %v1033, %v922
    %v1052 = vmul.f32 %v1033, %v923
    %v1053 = vmul.f32 %v1033, %v924
    %v1054 = vmul.f32 %v1033, %v925
    %v1055 = vmul.f32 %v1033, %v926
    %v1056 = vmul.f32 %v1033, %v927
    %v1057 = vmul.f32 %v1033, %v928
    %v1058 = vmul.f32 %v1033, %v929
    %v1059 = vmul.f32 %v1033, %v930
    %v1060 = vmul.f32 %v1033, %v931
    %v1061 = vmul.f32 %v1033, %v932
    %v1062 = vmul.f32 %v1033, %v933
    %v1063 = vmul.f32 %v1033, %v934
    %v1064 = vmul.f32 %v1033, %v935
    %v1065 = vmul.f32 %v1033, %v936
    %v1066 = vmul.f32 %v1033, %v937
    %v1067 = vmul.f32 %v1033, %v938
    %v1068 = vmul.f32 %v1033, %v939
    %v1069 = vmul.f32 %v1033, %v940
    %v1070 = vmul.f32 %v1033, %v941
    %v1071 = vmul.f32 %v1033, %v942
    %v1072 = vmul.f32 %v1033, %v943
    %v1073 = vmul.f32 %v1033, %v944
    %v1074 = vmul.f32 %v1033, %v945
    %v1075 = vmul.f32 %v1033, %v946
    %v1076 = vmul.f32 %v1033, %v947
    %v1077 = vmul.f32 %v1033, %v948
    %v1078 = vmul.f32 %v1033, %v949
    %v1079 = vmul.f32 %v1033, %v950
    %v1080 = vmul.f32 %v1033, %v951
    %v1081 = vmul.f32 %v1033, %v952
    %v1082 = vmul.f32 %v1033, %v953
    %v1083 = vmul.f32 %v1033, %v954
    %v1084 = vmul.f32 %v1033, %v955
    %v1085 = vmul.f32 %v1033, %v956
    %v1086 = vmul.f32 %v1033, %v957
    %v1087 = vmul.f32 %v1033, %v958
    %v1088 = vmul.f32 %v1033, %v959
    %v1089 = vmul.f32 %v1033, %v960
    %v1090 = vmul.f32 %v1033, %v961
    %v1091 = vmul.f32 %v1033, %v962
    %v1092 = vmul.f32 %v1033, %v963
    %v1093 = vmul.f32 %v1033, %v964
    %v1094 = vmul.f32 %v1033, %v965
    %v1095 = vmul.f32 %v1033, %v966
    %v1096 = vmul.f32 %v1033, %v967
    %v1097 = vmul.f32 %v1033, %v968
    %v1098 = vsel %vm969, %v905, %v1034
    %v1099 = vsel %vm970, %v906, %v1035
    %v1100 = vsel %vm971, %v907, %v1036
    %v1101 = vsel %vm972, %v908, %v1037
    %v1102 = vsel %vm973, %v909, %v1038
    %v1103 = vsel %vm974, %v910, %v1039
    %v1104 = vsel %vm975, %v911, %v1040
    %v1105 = vsel %vm976, %v912, %v1041
    %v1106 = vsel %vm977, %v913, %v1042
    %v1107 = vsel %vm978, %v914, %v1043
    %v1108 = vsel %vm979, %v915, %v1044
    %v1109 = vsel %vm980, %v916, %v1045
    %v1110 = vsel %vm981, %v917, %v1046
    %v1111 = vsel %vm982, %v918, %v1047
    %v1112 = vsel %vm983, %v919, %v1048
    %v1113 = vsel %vm984, %v920, %v1049
    %v1114 = vsel %vm985, %v921, %v1050
    %v1115 = vsel %vm986, %v922, %v1051
    %v1116 = vsel %vm987, %v923, %v1052
    %v1117 = vsel %vm988, %v924, %v1053
    %v1118 = vsel %vm989, %v925, %v1054
    %v1119 = vsel %vm990, %v926, %v1055
    %v1120 = vsel %vm991, %v927, %v1056
    %v1121 = vsel %vm992, %v928, %v1057
    %v1122 = vsel %vm993, %v929, %v1058
    %v1123 = vsel %vm994, %v930, %v1059
    %v1124 = vsel %vm995, %v931, %v1060
    %v1125 = vsel %vm996, %v932, %v1061
    %v1126 = vsel %vm997, %v933, %v1062
    %v1127 = vsel %vm998, %v934, %v1063
    %v1128 = vsel %vm999, %v935, %v1064
    %v1129 = vsel %vm1000, %v936, %v1065
    %v1130 = vsel %vm1001, %v937, %v1066
    %v1131 = vsel %vm1002, %v938, %v1067
    %v1132 = vsel %vm1003, %v939, %v1068
    %v1133 = vsel %vm1004, %v940, %v1069
    %v1134 = vsel %vm1005, %v941, %v1070
    %v1135 = vsel %vm1006, %v942, %v1071
    %v1136 = vsel %vm1007, %v943, %v1072
    %v1137 = vsel %vm1008, %v944, %v1073
    %v1138 = vsel %vm1009, %v945, %v1074
    %v1139 = vsel %vm1010, %v946, %v1075
    %v1140 = vsel %vm1011, %v947, %v1076
    %v1141 = vsel %vm1012, %v948, %v1077
    %v1142 = vsel %vm1013, %v949, %v1078
    %v1143 = vsel %vm1014, %v950, %v1079
    %v1144 = vsel %vm1015, %v951, %v1080
    %v1145 = vsel %vm1016, %v952, %v1081
    %v1146 = vsel %vm1017, %v953, %v1082
    %v1147 = vsel %vm1018, %v954, %v1083
    %v1148 = vsel %vm1019, %v955, %v1084
    %v1149 = vsel %vm1020, %v956, %v1085
    %v1150 = vsel %vm1021, %v957, %v1086
    %v1151 = vsel %vm1022, %v958, %v1087
    %v1152 = vsel %vm1023, %v959, %v1088
    %v1153 = vsel %vm1024, %v960, %v1089
    %v1154 = vsel %vm1025, %v961, %v1090
    %v1155 = vsel %vm1026, %v962, %v1091
    %v1156 = vsel %vm1027, %v963, %v1092
    %v1157 = vsel %vm1028, %v964, %v1093
    %v1158 = vsel %vm1029, %v965, %v1094
    %v1159 = vsel %vm1030, %v966, %v1095
    %v1160 = vsel %vm1031, %v967, %v1096
    %v1161 = vsel %vm1032, %v968, %v1097
    %1162 = vst [vmem:[#allocation2] sm:$0xff] 0.0
    %1163 = vst [vmem:[#allocation2 + $0x8] sm:$0xff] 0.0
    %1164 = vst [vmem:[#allocation2 + $0x10] sm:$0xff] 0.0
    %1165 = vst [vmem:[#allocation2 + $0x18] sm:$0x1] 0.0
    %1166 = vst [vmem:[#allocation2 + $0x20] sm:$0xff] 0.0
    %1167 = vst [vmem:[#allocation2 + $0x28] sm:$0xff] 0.0
    %1168 = vst [vmem:[#allocation2 + $0x30] sm:$0xff] 0.0
    %1169 = vst [vmem:[#allocation2 + $0x38] sm:$0x1] 0.0
    %1170 = vst [vmem:[#allocation2 + $0x40] sm:$0xff] 0.0
    %1171 = vst [vmem:[#allocation2 + $0x48] sm:$0xff] 0.0
    %1172 = vst [vmem:[#allocation2 + $0x50] sm:$0xff] 0.0
    %1173 = vst [vmem:[#allocation2 + $0x58] sm:$0x1] 0.0
    %1174 = vst [vmem:[#allocation2 + $0x60] sm:$0xff] 0.0
    %1175 = vst [vmem:[#allocation2 + $0x68] sm:$0xff] 0.0
    %1176 = vst [vmem:[#allocation2 + $0x70] sm:$0xff] 0.0
    %1177 = vst [vmem:[#allocation2 + $0x78] sm:$0x1] 0.0
    %1178 = vst [vmem:[#allocation2 + $0x80] sm:$0xff] 0.0
    %1179 = vst [vmem:[#allocation2 + $0x88] sm:$0xff] 0.0
    %1180 = vst [vmem:[#allocation2 + $0x90] sm:$0xff] 0.0
    %1181 = vst [vmem:[#allocation2 + $0x98] sm:$0x1] 0.0
    %1182 = vst [vmem:[#allocation2 + $0xa0] sm:$0xff] 0.0
    %1183 = vst [vmem:[#allocation2 + $0xa8] sm:$0xff] 0.0
    %1184 = vst [vmem:[#allocation2 + $0xb0] sm:$0xff] 0.0
    %1185 = vst [vmem:[#allocation2 + $0xb8] sm:$0x1] 0.0
    %1186 = vst [vmem:[#allocation2 + $0xc0] sm:$0xff] 0.0
    %1187 = vst [vmem:[#allocation2 + $0xc8] sm:$0xff] 0.0
    %1188 = vst [vmem:[#allocation2 + $0xd0] sm:$0xff] 0.0
    %1189 = vst [vmem:[#allocation2 + $0xd8] sm:$0x1] 0.0
    %1190 = vst [vmem:[#allocation2 + $0xe0] sm:$0xff] 0.0
    %1191 = vst [vmem:[#allocation2 + $0xe8] sm:$0xff] 0.0
    %1192 = vst [vmem:[#allocation2 + $0xf0] sm:$0xff] 0.0
    %1193 = vst [vmem:[#allocation2 + $0xf8] sm:$0x1] 0.0
    %1194 = vst [vmem:[#allocation2 + $0x100] sm:$0xff] 0.0
    %1195 = vst [vmem:[#allocation2 + $0x108] sm:$0xff] 0.0
    %1196 = vst [vmem:[#allocation2 + $0x110] sm:$0xff] 0.0
    %1197 = vst [vmem:[#allocation2 + $0x118] sm:$0x1] 0.0
    %1198 = vst [vmem:[#allocation2 + $0x120] sm:$0xff] 0.0
    %1199 = vst [vmem:[#allocation2 + $0x128] sm:$0xff] 0.0
    %1200 = vst [vmem:[#allocation2 + $0x130] sm:$0xff] 0.0
    %1201 = vst [vmem:[#allocation2 + $0x138] sm:$0x1] 0.0
    %1202 = vst [vmem:[#allocation2 + $0x140] sm:$0xff] 0.0
    %1203 = vst [vmem:[#allocation2 + $0x148] sm:$0xff] 0.0
    %1204 = vst [vmem:[#allocation2 + $0x150] sm:$0xff] 0.0
    %1205 = vst [vmem:[#allocation2 + $0x158] sm:$0x1] 0.0
    %1206 = vst [vmem:[#allocation2 + $0x160] sm:$0xff] 0.0
    %1207 = vst [vmem:[#allocation2 + $0x168] sm:$0xff] 0.0
    %1208 = vst [vmem:[#allocation2 + $0x170] sm:$0xff] 0.0
    %1209 = vst [vmem:[#allocation2 + $0x178] sm:$0x1] 0.0
    %1210 = vst [vmem:[#allocation2 + $0x180] sm:$0xff] 0.0
    %1211 = vst [vmem:[#allocation2 + $0x188] sm:$0xff] 0.0
    %1212 = vst [vmem:[#allocation2 + $0x190] sm:$0xff] 0.0
    %1213 = vst [vmem:[#allocation2 + $0x198] sm:$0x1] 0.0
    %1214 = vst [vmem:[#allocation2 + $0x1a0] sm:$0xff] 0.0
    %1215 = vst [vmem:[#allocation2 + $0x1a8] sm:$0xff] 0.0
    %1216 = vst [vmem:[#allocation2 + $0x1b0] sm:$0xff] 0.0
    %1217 = vst [vmem:[#allocation2 + $0x1b8] sm:$0x1] 0.0
    %1218 = vst [vmem:[#allocation2 + $0x1c0] sm:$0xff] 0.0
    %1219 = vst [vmem:[#allocation2 + $0x1c8] sm:$0xff] 0.0
    %1220 = vst [vmem:[#allocation2 + $0x1d0] sm:$0xff] 0.0
    %1221 = vst [vmem:[#allocation2 + $0x1d8] sm:$0x1] 0.0
    %1222 = vst [vmem:[#allocation2 + $0x1e0] sm:$0xff] 0.0
    %1223 = vst [vmem:[#allocation2 + $0x1e8] sm:$0xff] 0.0
    %1224 = vst [vmem:[#allocation2 + $0x1f0] sm:$0xff] 0.0
    %1225 = vst [vmem:[#allocation2 + $0x1f8] sm:$0x1] 0.0
    %1226 = vst [vmem:[#allocation2 + $0x200] sm:$0xff] 0.0
    %1227 = vst [vmem:[#allocation2 + $0x208] sm:$0xff] 0.0
    %1228 = vst [vmem:[#allocation2 + $0x210] sm:$0xff] 0.0
    %1229 = vst [vmem:[#allocation2 + $0x218] sm:$0x1] 0.0
    %1230 = vst [vmem:[#allocation2 + $0x220] sm:$0xff] 0.0
    %1231 = vst [vmem:[#allocation2 + $0x228] sm:$0xff] 0.0
    %1232 = vst [vmem:[#allocation2 + $0x230] sm:$0xff] 0.0
    %1233 = vst [vmem:[#allocation2 + $0x238] sm:$0x1] 0.0
    %1234 = vst [vmem:[#allocation2 + $0x240] sm:$0xff] 0.0
    %1235 = vst [vmem:[#allocation2 + $0x248] sm:$0xff] 0.0
    %1236 = vst [vmem:[#allocation2 + $0x250] sm:$0xff] 0.0
    %1237 = vst [vmem:[#allocation2 + $0x258] sm:$0x1] 0.0
    %1238 = vst [vmem:[#allocation2 + $0x260] sm:$0xff] 0.0
    %1239 = vst [vmem:[#allocation2 + $0x268] sm:$0xff] 0.0
    %1240 = vst [vmem:[#allocation2 + $0x270] sm:$0xff] 0.0
    %1241 = vst [vmem:[#allocation2 + $0x278] sm:$0x1] 0.0
    %1242 = vst [vmem:[#allocation2 + $0x280] sm:$0xff] 0.0
    %1243 = vst [vmem:[#allocation2 + $0x288] sm:$0xff] 0.0
    %1244 = vst [vmem:[#allocation2 + $0x290] sm:$0xff] 0.0
    %1245 = vst [vmem:[#allocation2 + $0x298] sm:$0x1] 0.0
    %1246 = vst [vmem:[#allocation2 + $0x2a0] sm:$0xff] 0.0
    %1247 = vst [vmem:[#allocation2 + $0x2a8] sm:$0xff] 0.0
    %1248 = vst [vmem:[#allocation2 + $0x2b0] sm:$0xff] 0.0
    %1249 = vst [vmem:[#allocation2 + $0x2b8] sm:$0x1] 0.0
    %1250 = vst [vmem:[#allocation2 + $0x2c0] sm:$0xff] 0.0
    %1251 = vst [vmem:[#allocation2 + $0x2c8] sm:$0xff] 0.0
    %1252 = vst [vmem:[#allocation2 + $0x2d0] sm:$0xff] 0.0
    %1253 = vst [vmem:[#allocation2 + $0x2d8] sm:$0x1] 0.0
    %1254 = vst [vmem:[#allocation2 + $0x2e0] sm:$0xff] 0.0
    %1255 = vst [vmem:[#allocation2 + $0x2e8] sm:$0xff] 0.0
    %1256 = vst [vmem:[#allocation2 + $0x2f0] sm:$0xff] 0.0
    %1257 = vst [vmem:[#allocation2 + $0x2f8] sm:$0x1] 0.0
    %1258 = vst [vmem:[#allocation2 + $0x300] sm:$0xff] 0.0
    %1259 = vst [vmem:[#allocation2 + $0x308] sm:$0xff] 0.0
    %1260 = vst [vmem:[#allocation2 + $0x310] sm:$0xff] 0.0
    %1261 = vst [vmem:[#allocation2 + $0x318] sm:$0x1] 0.0
    %1262 = vst [vmem:[#allocation2 + $0x320] sm:$0xff] 0.0
    %1263 = vst [vmem:[#allocation2 + $0x328] sm:$0xff] 0.0
    %1264 = vst [vmem:[#allocation2 + $0x330] sm:$0xff] 0.0
    %1265 = vst [vmem:[#allocation2 + $0x338] sm:$0x1] 0.0
    %1266 = vst [vmem:[#allocation2 + $0x340] sm:$0xff] 0.0
    %1267 = vst [vmem:[#allocation2 + $0x348] sm:$0xff] 0.0
    %1268 = vst [vmem:[#allocation2 + $0x350] sm:$0xff] 0.0
    %1269 = vst [vmem:[#allocation2 + $0x358] sm:$0x1] 0.0
    %1270 = vst [vmem:[#allocation2 + $0x360] sm:$0xff] 0.0
    %1271 = vst [vmem:[#allocation2 + $0x368] sm:$0xff] 0.0
    %1272 = vst [vmem:[#allocation2 + $0x370] sm:$0xff] 0.0
    %1273 = vst [vmem:[#allocation2 + $0x378] sm:$0x1] 0.0
    %1274 = vst [vmem:[#allocation2 + $0x380] sm:$0xff] 0.0
    %1275 = vst [vmem:[#allocation2 + $0x388] sm:$0xff] 0.0
    %1276 = vst [vmem:[#allocation2 + $0x390] sm:$0xff] 0.0
    %1277 = vst [vmem:[#allocation2 + $0x398] sm:$0x1] 0.0
    %1278 = vst [vmem:[#allocation2 + $0x3a0] sm:$0xff] 0.0
    %1279 = vst [vmem:[#allocation2 + $0x3a8] sm:$0xff] 0.0
    %1280 = vst [vmem:[#allocation2 + $0x3b0] sm:$0xff] 0.0
    %1281 = vst [vmem:[#allocation2 + $0x3b8] sm:$0x1] 0.0
    %1282 = vst [vmem:[#allocation2 + $0x3c0] sm:$0xff] 0.0
    %1283 = vst [vmem:[#allocation2 + $0x3c8] sm:$0xff] 0.0
    %1284 = vst [vmem:[#allocation2 + $0x3d0] sm:$0xff] 0.0
    %1285 = vst [vmem:[#allocation2 + $0x3d8] sm:$0x1] 0.0
    %1286 = vst [vmem:[#allocation2 + $0x3e0] sm:$0xff] 0.0
    %1287 = vst [vmem:[#allocation2 + $0x3e8] sm:$0xff] 0.0
    %1288 = vst [vmem:[#allocation2 + $0x3f0] sm:$0xff] 0.0
    %1289 = vst [vmem:[#allocation2 + $0x3f8] sm:$0x1] 0.0
    %1290 = vst [vmem:[#allocation2 + $0x400] sm:$0xff] 0.0
    %1291 = vst [vmem:[#allocation2 + $0x408] sm:$0xff] 0.0
    %1292 = vst [vmem:[#allocation2 + $0x410] sm:$0xff] 0.0
    %1293 = vst [vmem:[#allocation2 + $0x418] sm:$0x1] 0.0
    %1294 = vst [vmem:[#allocation2 + $0x420] sm:$0xff] 0.0
    %1295 = vst [vmem:[#allocation2 + $0x428] sm:$0xff] 0.0
    %1296 = vst [vmem:[#allocation2 + $0x430] sm:$0xff] 0.0
    %1297 = vst [vmem:[#allocation2 + $0x438] sm:$0x1] 0.0
    %1298 = vst [vmem:[#allocation2 + $0x440] sm:$0xff] 0.0
    %1299 = vst [vmem:[#allocation2 + $0x448] sm:$0xff] 0.0
    %1300 = vst [vmem:[#allocation2 + $0x450] sm:$0xff] 0.0
    %1301 = vst [vmem:[#allocation2 + $0x458] sm:$0x1] 0.0
    %1302 = vst [vmem:[#allocation2 + $0x460] sm:$0xff] 0.0
    %1303 = vst [vmem:[#allocation2 + $0x468] sm:$0xff] 0.0
    %1304 = vst [vmem:[#allocation2 + $0x470] sm:$0xff] 0.0
    %1305 = vst [vmem:[#allocation2 + $0x478] sm:$0x1] 0.0
    %1306 = vst [vmem:[#allocation2 + $0x480] sm:$0xff] 0.0
    %1307 = vst [vmem:[#allocation2 + $0x488] sm:$0xff] 0.0
    %1308 = vst [vmem:[#allocation2 + $0x490] sm:$0xff] 0.0
    %1309 = vst [vmem:[#allocation2 + $0x498] sm:$0x1] 0.0
    %1310 = vst [vmem:[#allocation2 + $0x4a0] sm:$0xff] 0.0
    %1311 = vst [vmem:[#allocation2 + $0x4a8] sm:$0xff] 0.0
    %1312 = vst [vmem:[#allocation2 + $0x4b0] sm:$0xff] 0.0
    %1313 = vst [vmem:[#allocation2 + $0x4b8] sm:$0x1] 0.0
    %1314 = vst [vmem:[#allocation2 + $0x4c0] sm:$0xff] 0.0
    %1315 = vst [vmem:[#allocation2 + $0x4c8] sm:$0xff] 0.0
    %1316 = vst [vmem:[#allocation2 + $0x4d0] sm:$0xff] 0.0
    %1317 = vst [vmem:[#allocation2 + $0x4d8] sm:$0x1] 0.0
    %1318 = vst [vmem:[#allocation2 + $0x4e0] sm:$0xff] 0.0
    %1319 = vst [vmem:[#allocation2 + $0x4e8] sm:$0xff] 0.0
    %1320 = vst [vmem:[#allocation2 + $0x4f0] sm:$0xff] 0.0
    %1321 = vst [vmem:[#allocation2 + $0x4f8] sm:$0x1] 0.0
    %1322 = vst [vmem:[#allocation2 + $0x500] sm:$0xff] 0.0
    %1323 = vst [vmem:[#allocation2 + $0x508] sm:$0xff] 0.0
    %1324 = vst [vmem:[#allocation2 + $0x510] sm:$0xff] 0.0
    %1325 = vst [vmem:[#allocation2 + $0x518] sm:$0x1] 0.0
    %1326 = vst [vmem:[#allocation2 + $0x520] sm:$0xff] 0.0
    %1327 = vst [vmem:[#allocation2 + $0x528] sm:$0xff] 0.0
    %1328 = vst [vmem:[#allocation2 + $0x530] sm:$0xff] 0.0
    %1329 = vst [vmem:[#allocation2 + $0x538] sm:$0x1] 0.0
    %1330 = vst [vmem:[#allocation2 + $0x540] sm:$0xff] 0.0
    %1331 = vst [vmem:[#allocation2 + $0x548] sm:$0xff] 0.0
    %1332 = vst [vmem:[#allocation2 + $0x550] sm:$0xff] 0.0
    %1333 = vst [vmem:[#allocation2 + $0x558] sm:$0x1] 0.0
    %1334 = vst [vmem:[#allocation2 + $0x560] sm:$0xff] 0.0
    %1335 = vst [vmem:[#allocation2 + $0x568] sm:$0xff] 0.0
    %1336 = vst [vmem:[#allocation2 + $0x570] sm:$0xff] 0.0
    %1337 = vst [vmem:[#allocation2 + $0x578] sm:$0x1] 0.0
    %1338 = vst [vmem:[#allocation2 + $0x580] sm:$0xff] 0.0
    %1339 = vst [vmem:[#allocation2 + $0x588] sm:$0xff] 0.0
    %1340 = vst [vmem:[#allocation2 + $0x590] sm:$0xff] 0.0
    %1341 = vst [vmem:[#allocation2 + $0x598] sm:$0x1] 0.0
    %1342 = vst [vmem:[#allocation2 + $0x5a0] sm:$0xff] 0.0
    %1343 = vst [vmem:[#allocation2 + $0x5a8] sm:$0xff] 0.0
    %1344 = vst [vmem:[#allocation2 + $0x5b0] sm:$0xff] 0.0
    %1345 = vst [vmem:[#allocation2 + $0x5b8] sm:$0x1] 0.0
    %1346 = vst [vmem:[#allocation2 + $0x5c0] sm:$0xff] 0.0
    %1347 = vst [vmem:[#allocation2 + $0x5c8] sm:$0xff] 0.0
    %1348 = vst [vmem:[#allocation2 + $0x5d0] sm:$0xff] 0.0
    %1349 = vst [vmem:[#allocation2 + $0x5d8] sm:$0x1] 0.0
    %1350 = vst [vmem:[#allocation2 + $0x5e0] sm:$0xff] 0.0
    %1351 = vst [vmem:[#allocation2 + $0x5e8] sm:$0xff] 0.0
    %1352 = vst [vmem:[#allocation2 + $0x5f0] sm:$0xff] 0.0
    %1353 = vst [vmem:[#allocation2 + $0x5f8] sm:$0x1] 0.0
    %1354 = vst [vmem:[#allocation2 + $0x600] sm:$0xff] 0.0
    %1355 = vst [vmem:[#allocation2 + $0x608] sm:$0xff] 0.0
    %1356 = vst [vmem:[#allocation2 + $0x610] sm:$0xff] 0.0
    %1357 = vst [vmem:[#allocation2 + $0x618] sm:$0x1] 0.0
    %1358 = vst [vmem:[#allocation2 + $0x620] sm:$0xff] 0.0
    %1359 = vst [vmem:[#allocation2 + $0x628] sm:$0xff] 0.0
    %1360 = vst [vmem:[#allocation2 + $0x630] sm:$0xff] 0.0
    %1361 = vst [vmem:[#allocation2 + $0x638] sm:$0x1] 0.0
    %s1362 = scalar_lea.vmem [#allocation2], 256
    %1363 = vst [vmem:[%s1362 + $0x8] sm:$0xff] %v1098
    %1364 = vst [vmem:[%s1362 + $0x10] sm:$0xff] %v1099
    %1365 = vst [vmem:[%s1362 + $0x28] sm:$0xff] %v1100
    %1366 = vst [vmem:[%s1362 + $0x30] sm:$0xff] %v1101
    %1367 = vst [vmem:[%s1362 + $0x48] sm:$0xff] %v1102
    %1368 = vst [vmem:[%s1362 + $0x50] sm:$0xff] %v1103
    %1369 = vst [vmem:[%s1362 + $0x68] sm:$0xff] %v1104
    %1370 = vst [vmem:[%s1362 + $0x70] sm:$0xff] %v1105
    %1371 = vst [vmem:[%s1362 + $0x88] sm:$0xff] %v1106
    %1372 = vst [vmem:[%s1362 + $0x90] sm:$0xff] %v1107
    %1373 = vst [vmem:[%s1362 + $0xa8] sm:$0xff] %v1108
    %1374 = vst [vmem:[%s1362 + $0xb0] sm:$0xff] %v1109
    %1375 = vst [vmem:[%s1362 + $0xc8] sm:$0xff] %v1110
    %1376 = vst [vmem:[%s1362 + $0xd0] sm:$0xff] %v1111
    %1377 = vst [vmem:[%s1362 + $0xe8] sm:$0xff] %v1112
    %1378 = vst [vmem:[%s1362 + $0xf0] sm:$0xff] %v1113
    %1379 = vst [vmem:[%s1362 + $0x108] sm:$0xff] %v1114
    %1380 = vst [vmem:[%s1362 + $0x110] sm:$0xff] %v1115
    %1381 = vst [vmem:[%s1362 + $0x128] sm:$0xff] %v1116
    %1382 = vst [vmem:[%s1362 + $0x130] sm:$0xff] %v1117
    %1383 = vst [vmem:[%s1362 + $0x148] sm:$0xff] %v1118
    %1384 = vst [vmem:[%s1362 + $0x150] sm:$0xff] %v1119
    %1385 = vst [vmem:[%s1362 + $0x168] sm:$0xff] %v1120
    %1386 = vst [vmem:[%s1362 + $0x170] sm:$0xff] %v1121
    %1387 = vst [vmem:[%s1362 + $0x188] sm:$0xff] %v1122
    %1388 = vst [vmem:[%s1362 + $0x190] sm:$0xff] %v1123
    %1389 = vst [vmem:[%s1362 + $0x1a8] sm:$0xff] %v1124
    %1390 = vst [vmem:[%s1362 + $0x1b0] sm:$0xff] %v1125
    %1391 = vst [vmem:[%s1362 + $0x1c8] sm:$0xff] %v1126
    %1392 = vst [vmem:[%s1362 + $0x1d0] sm:$0xff] %v1127
    %1393 = vst [vmem:[%s1362 + $0x1e8] sm:$0xff] %v1128
    %1394 = vst [vmem:[%s1362 + $0x1f0] sm:$0xff] %v1129
    %1395 = vst [vmem:[%s1362 + $0x328] sm:$0xff] %v1130
    %1396 = vst [vmem:[%s1362 + $0x330] sm:$0xff] %v1131
    %1397 = vst [vmem:[%s1362 + $0x348] sm:$0xff] %v1132
    %1398 = vst [vmem:[%s1362 + $0x350] sm:$0xff] %v1133
    %1399 = vst [vmem:[%s1362 + $0x368] sm:$0xff] %v1134
    %1400 = vst [vmem:[%s1362 + $0x370] sm:$0xff] %v1135
    %1401 = vst [vmem:[%s1362 + $0x388] sm:$0xff] %v1136
    %1402 = vst [vmem:[%s1362 + $0x390] sm:$0xff] %v1137
    %1403 = vst [vmem:[%s1362 + $0x3a8] sm:$0xff] %v1138
    %1404 = vst [vmem:[%s1362 + $0x3b0] sm:$0xff] %v1139
    %1405 = vst [vmem:[%s1362 + $0x3c8] sm:$0xff] %v1140
    %1406 = vst [vmem:[%s1362 + $0x3d0] sm:$0xff] %v1141
    %1407 = vst [vmem:[%s1362 + $0x3e8] sm:$0xff] %v1142
    %1408 = vst [vmem:[%s1362 + $0x3f0] sm:$0xff] %v1143
    %1409 = vst [vmem:[%s1362 + $0x408] sm:$0xff] %v1144
    %1410 = vst [vmem:[%s1362 + $0x410] sm:$0xff] %v1145
    %1411 = vst [vmem:[%s1362 + $0x428] sm:$0xff] %v1146
    %1412 = vst [vmem:[%s1362 + $0x430] sm:$0xff] %v1147
    %1413 = vst [vmem:[%s1362 + $0x448] sm:$0xff] %v1148
    %1414 = vst [vmem:[%s1362 + $0x450] sm:$0xff] %v1149
    %1415 = vst [vmem:[%s1362 + $0x468] sm:$0xff] %v1150
    %1416 = vst [vmem:[%s1362 + $0x470] sm:$0xff] %v1151
    %1417 = vst [vmem:[%s1362 + $0x488] sm:$0xff] %v1152
    %1418 = vst [vmem:[%s1362 + $0x490] sm:$0xff] %v1153
    %1419 = vst [vmem:[%s1362 + $0x4a8] sm:$0xff] %v1154
    %1420 = vst [vmem:[%s1362 + $0x4b0] sm:$0xff] %v1155
    %1421 = vst [vmem:[%s1362 + $0x4c8] sm:$0xff] %v1156
    %1422 = vst [vmem:[%s1362 + $0x4d0] sm:$0xff] %v1157
    %1423 = vst [vmem:[%s1362 + $0x4e8] sm:$0xff] %v1158
    %1424 = vst [vmem:[%s1362 + $0x4f0] sm:$0xff] %v1159
    %1425 = vst [vmem:[%s1362 + $0x508] sm:$0xff] %v1160
    %1426 = vst [vmem:[%s1362 + $0x510] sm:$0xff] %v1161
    %v1427 = vld [vmem:[#allocation2 + $0xe0] sm:$0xff]
    %v1428 = vld [vmem:[#allocation2 + $0xe8] sm:$0xff]
    %v1429 = vld [vmem:[#allocation2 + $0xf0] sm:$0xff]
    %v1430 = vld [vmem:[#allocation2 + $0xf8] sm:$0x1]
    %v1431 = vld [vmem:[#allocation2 + $0x100] sm:$0xff]
    %v1432 = vld [vmem:[#allocation2 + $0x108] sm:$0xff]
    %v1433 = vld [vmem:[#allocation2 + $0x110] sm:$0xff]
    %v1434 = vld [vmem:[#allocation2 + $0x118] sm:$0x1]
    %v1435 = vld [vmem:[#allocation2 + $0x120] sm:$0xff]
    %v1436 = vld [vmem:[#allocation2 + $0x128] sm:$0xff]
    %v1437 = vld [vmem:[#allocation2 + $0x130] sm:$0xff]
    %v1438 = vld [vmem:[#allocation2 + $0x138] sm:$0x1]
    %v1439 = vld [vmem:[#allocation2 + $0x140] sm:$0xff]
    %v1440 = vld [vmem:[#allocation2 + $0x148] sm:$0xff]
    %v1441 = vld [vmem:[#allocation2 + $0x150] sm:$0xff]
    %v1442 = vld [vmem:[#allocation2 + $0x158] sm:$0x1]
    %v1443 = vld [vmem:[#allocation2 + $0x160] sm:$0xff]
    %v1444 = vld [vmem:[#allocation2 + $0x168] sm:$0xff]
    %v1445 = vld [vmem:[#allocation2 + $0x170] sm:$0xff]
    %v1446 = vld [vmem:[#allocation2 + $0x178] sm:$0x1]
    %v1447 = vld [vmem:[#allocation2 + $0x180] sm:$0xff]
    %v1448 = vld [vmem:[#allocation2 + $0x188] sm:$0xff]
    %v1449 = vld [vmem:[#allocation2 + $0x190] sm:$0xff]
    %v1450 = vld [vmem:[#allocation2 + $0x198] sm:$0x1]
    %v1451 = vld [vmem:[#allocation2 + $0x1a0] sm:$0xff]
    %v1452 = vld [vmem:[#allocation2 + $0x1a8] sm:$0xff]
    %v1453 = vld [vmem:[#allocation2 + $0x1b0] sm:$0xff]
    %v1454 = vld [vmem:[#allocation2 + $0x1b8] sm:$0x1]
    %v1455 = vld [vmem:[#allocation2 + $0x1c0] sm:$0xff]
    %v1456 = vld [vmem:[#allocation2 + $0x1c8] sm:$0xff]
    %v1457 = vld [vmem:[#allocation2 + $0x1d0] sm:$0xff]
    %v1458 = vld [vmem:[#allocation2 + $0x1d8] sm:$0x1]
    %v1459 = vld [vmem:[#allocation2 + $0x1e0] sm:$0xff]
    %v1460 = vld [vmem:[#allocation2 + $0x1e8] sm:$0xff]
    %v1461 = vld [vmem:[#allocation2 + $0x1f0] sm:$0xff]
    %v1462 = vld [vmem:[#allocation2 + $0x1f8] sm:$0x1]
    %v1463 = vld [vmem:[#allocation2 + $0x200] sm:$0xff]
    %v1464 = vld [vmem:[#allocation2 + $0x208] sm:$0xff]
    %v1465 = vld [vmem:[#allocation2 + $0x210] sm:$0xff]
    %v1466 = vld [vmem:[#allocation2 + $0x218] sm:$0x1]
    %v1467 = vld [vmem:[#allocation2 + $0x220] sm:$0xff]
    %v1468 = vld [vmem:[#allocation2 + $0x228] sm:$0xff]
    %v1469 = vld [vmem:[#allocation2 + $0x230] sm:$0xff]
    %v1470 = vld [vmem:[#allocation2 + $0x238] sm:$0x1]
    %v1471 = vld [vmem:[#allocation2 + $0x240] sm:$0xff]
    %v1472 = vld [vmem:[#allocation2 + $0x248] sm:$0xff]
    %v1473 = vld [vmem:[#allocation2 + $0x250] sm:$0xff]
    %v1474 = vld [vmem:[#allocation2 + $0x258] sm:$0x1]
    %v1475 = vld [vmem:[#allocation2 + $0x260] sm:$0xff]
    %v1476 = vld [vmem:[#allocation2 + $0x268] sm:$0xff]
    %v1477 = vld [vmem:[#allocation2 + $0x270] sm:$0xff]
    %v1478 = vld [vmem:[#allocation2 + $0x278] sm:$0x1]
    %v1479 = vld [vmem:[#allocation2 + $0x280] sm:$0xff]
    %v1480 = vld [vmem:[#allocation2 + $0x288] sm:$0xff]
    %v1481 = vld [vmem:[#allocation2 + $0x290] sm:$0xff]
    %v1482 = vld [vmem:[#allocation2 + $0x298] sm:$0x1]
    %v1483 = vld [vmem:[#allocation2 + $0x2a0] sm:$0xff]
    %v1484 = vld [vmem:[#allocation2 + $0x2a8] sm:$0xff]
    %v1485 = vld [vmem:[#allocation2 + $0x2b0] sm:$0xff]
    %v1486 = vld [vmem:[#allocation2 + $0x2b8] sm:$0x1]
    %v1487 = vld [vmem:[#allocation2 + $0x2c0] sm:$0xff]
    %v1488 = vld [vmem:[#allocation2 + $0x2c8] sm:$0xff]
    %v1489 = vld [vmem:[#allocation2 + $0x2d0] sm:$0xff]
    %v1490 = vld [vmem:[#allocation2 + $0x2d8] sm:$0x1]
    %v1491 = vld [vmem:[#allocation2 + $0x2e0] sm:$0xff]
    %v1492 = vld [vmem:[#allocation2 + $0x2e8] sm:$0xff]
    %v1493 = vld [vmem:[#allocation2 + $0x2f0] sm:$0xff]
    %v1494 = vld [vmem:[#allocation2 + $0x2f8] sm:$0x1]
    %v1495 = vld [vmem:[#allocation2 + $0x300] sm:$0xff]
    %v1496 = vld [vmem:[#allocation2 + $0x308] sm:$0xff]
    %v1497 = vld [vmem:[#allocation2 + $0x310] sm:$0xff]
    %v1498 = vld [vmem:[#allocation2 + $0x318] sm:$0x1]
    %v1499 = vld [vmem:[#allocation2 + $0x400] sm:$0xff]
    %v1500 = vld [vmem:[#allocation2 + $0x408] sm:$0xff]
    %v1501 = vld [vmem:[#allocation2 + $0x410] sm:$0xff]
    %v1502 = vld [vmem:[#allocation2 + $0x418] sm:$0x1]
    %v1503 = vld [vmem:[#allocation2 + $0x420] sm:$0xff]
    %v1504 = vld [vmem:[#allocation2 + $0x428] sm:$0xff]
    %v1505 = vld [vmem:[#allocation2 + $0x430] sm:$0xff]
    %v1506 = vld [vmem:[#allocation2 + $0x438] sm:$0x1]
    %v1507 = vld [vmem:[#allocation2 + $0x440] sm:$0xff]
    %v1508 = vld [vmem:[#allocation2 + $0x448] sm:$0xff]
    %v1509 = vld [vmem:[#allocation2 + $0x450] sm:$0xff]
    %v1510 = vld [vmem:[#allocation2 + $0x458] sm:$0x1]
    %v1511 = vld [vmem:[#allocation2 + $0x460] sm:$0xff]
    %v1512 = vld [vmem:[#allocation2 + $0x468] sm:$0xff]
    %v1513 = vld [vmem:[#allocation2 + $0x470] sm:$0xff]
    %v1514 = vld [vmem:[#allocation2 + $0x478] sm:$0x1]
    %v1515 = vld [vmem:[#allocation2 + $0x480] sm:$0xff]
    %v1516 = vld [vmem:[#allocation2 + $0x488] sm:$0xff]
    %v1517 = vld [vmem:[#allocation2 + $0x490] sm:$0xff]
    %v1518 = vld [vmem:[#allocation2 + $0x498] sm:$0x1]
    %v1519 = vld [vmem:[#allocation2 + $0x4a0] sm:$0xff]
    %v1520 = vld [vmem:[#allocation2 + $0x4a8] sm:$0xff]
    %v1521 = vld [vmem:[#allocation2 + $0x4b0] sm:$0xff]
    %v1522 = vld [vmem:[#allocation2 + $0x4b8] sm:$0x1]
    %v1523 = vld [vmem:[#allocation2 + $0x4c0] sm:$0xff]
    %v1524 = vld [vmem:[#allocation2 + $0x4c8] sm:$0xff]
    %v1525 = vld [vmem:[#allocation2 + $0x4d0] sm:$0xff]
    %v1526 = vld [vmem:[#allocation2 + $0x4d8] sm:$0x1]
    %v1527 = vld [vmem:[#allocation2 + $0x4e0] sm:$0xff]
    %v1528 = vld [vmem:[#allocation2 + $0x4e8] sm:$0xff]
    %v1529 = vld [vmem:[#allocation2 + $0x4f0] sm:$0xff]
    %v1530 = vld [vmem:[#allocation2 + $0x4f8] sm:$0x1]
    %v1531 = vld [vmem:[#allocation2 + $0x500] sm:$0xff]
    %v1532 = vld [vmem:[#allocation2 + $0x508] sm:$0xff]
    %v1533 = vld [vmem:[#allocation2 + $0x510] sm:$0xff]
    %v1534 = vld [vmem:[#allocation2 + $0x518] sm:$0x1]
    %v1535 = vld [vmem:[#allocation2 + $0x520] sm:$0xff]
    %v1536 = vld [vmem:[#allocation2 + $0x528] sm:$0xff]
    %v1537 = vld [vmem:[#allocation2 + $0x530] sm:$0xff]
    %v1538 = vld [vmem:[#allocation2 + $0x538] sm:$0x1]
    %v1539 = vld [vmem:[#allocation2 + $0x540] sm:$0xff]
    %v1540 = vld [vmem:[#allocation2 + $0x548] sm:$0xff]
    %v1541 = vld [vmem:[#allocation2 + $0x550] sm:$0xff]
    %v1542 = vld [vmem:[#allocation2 + $0x558] sm:$0x1]
    %v1543 = vld [vmem:[#allocation2 + $0x560] sm:$0xff]
    %v1544 = vld [vmem:[#allocation2 + $0x568] sm:$0xff]
    %v1545 = vld [vmem:[#allocation2 + $0x570] sm:$0xff]
    %v1546 = vld [vmem:[#allocation2 + $0x578] sm:$0x1]
    %v1547 = vld [vmem:[#allocation2 + $0x580] sm:$0xff]
    %v1548 = vld [vmem:[#allocation2 + $0x588] sm:$0xff]
    %v1549 = vld [vmem:[#allocation2 + $0x590] sm:$0xff]
    %v1550 = vld [vmem:[#allocation2 + $0x598] sm:$0x1]
    %v1551 = vld [vmem:[#allocation2 + $0x5a0] sm:$0xff]
    %v1552 = vld [vmem:[#allocation2 + $0x5a8] sm:$0xff]
    %v1553 = vld [vmem:[#allocation2 + $0x5b0] sm:$0xff]
    %v1554 = vld [vmem:[#allocation2 + $0x5b8] sm:$0x1]
    %v1555 = vld [vmem:[#allocation2 + $0x5c0] sm:$0xff]
    %v1556 = vld [vmem:[#allocation2 + $0x5c8] sm:$0xff]
    %v1557 = vld [vmem:[#allocation2 + $0x5d0] sm:$0xff]
    %v1558 = vld [vmem:[#allocation2 + $0x5d8] sm:$0x1]
    %v1559 = vld [vmem:[#allocation2 + $0x5e0] sm:$0xff]
    %v1560 = vld [vmem:[#allocation2 + $0x5e8] sm:$0xff]
    %v1561 = vld [vmem:[#allocation2 + $0x5f0] sm:$0xff]
    %v1562 = vld [vmem:[#allocation2 + $0x5f8] sm:$0x1]
    %v1563 = vld [vmem:[#allocation2 + $0x600] sm:$0xff]
    %v1564 = vld [vmem:[#allocation2 + $0x608] sm:$0xff]
    %v1565 = vld [vmem:[#allocation2 + $0x610] sm:$0xff]
    %v1566 = vld [vmem:[#allocation2 + $0x618] sm:$0x1]
    %v1567 = vld [vmem:[#allocation2 + $0x620] sm:$0xff]
    %v1568 = vld [vmem:[#allocation2 + $0x628] sm:$0xff]
    %v1569 = vld [vmem:[#allocation2 + $0x630] sm:$0xff]
    %v1570 = vld [vmem:[#allocation2 + $0x638] sm:$0x1]
    %vm1667 = vcmask 1040384
    %v1668 = vrot.slane %v1427, 7
    %v1669 = vrot.slane %v1428, 7
    %v1670 = vsel %vm1667, %v1668, %v1669
    %v1671 = vrot.slane %v1429, 7
    %v1672 = vsel %vm1667, %v1669, %v1671
    %v1673 = vrot.slane %v1431, 7
    %v1674 = vrot.slane %v1432, 7
    %v1675 = vsel %vm1667, %v1673, %v1674
    %v1676 = vrot.slane %v1433, 7
    %v1677 = vsel %vm1667, %v1674, %v1676
    %v1678 = vrot.slane %v1435, 7
    %v1679 = vrot.slane %v1436, 7
    %v1680 = vsel %vm1667, %v1678, %v1679
    %v1681 = vrot.slane %v1437, 7
    %v1682 = vsel %vm1667, %v1679, %v1681
    %v1683 = vrot.slane %v1439, 7
    %v1684 = vrot.slane %v1440, 7
    %v1685 = vsel %vm1667, %v1683, %v1684
    %v1686 = vrot.slane %v1441, 7
    %v1687 = vsel %vm1667, %v1684, %v1686
    %v1688 = vrot.slane %v1443, 7
    %v1689 = vrot.slane %v1444, 7
    %v1690 = vsel %vm1667, %v1688, %v1689
    %v1691 = vrot.slane %v1445, 7
    %v1692 = vsel %vm1667, %v1689, %v1691
    %v1693 = vrot.slane %v1447, 7
    %v1694 = vrot.slane %v1448, 7
    %v1695 = vsel %vm1667, %v1693, %v1694
    %v1696 = vrot.slane %v1449, 7
    %v1697 = vsel %vm1667, %v1694, %v1696
    %v1698 = vrot.slane %v1451, 7
    %v1699 = vrot.slane %v1452, 7
    %v1700 = vsel %vm1667, %v1698, %v1699
    %v1701 = vrot.slane %v1453, 7
    %v1702 = vsel %vm1667, %v1699, %v1701
    %v1703 = vrot.slane %v1455, 7
    %v1704 = vrot.slane %v1456, 7
    %v1705 = vsel %vm1667, %v1703, %v1704
    %v1706 = vrot.slane %v1457, 7
    %v1707 = vsel %vm1667, %v1704, %v1706
    %v1708 = vrot.slane %v1459, 7
    %v1709 = vrot.slane %v1460, 7
    %v1710 = vsel %vm1667, %v1708, %v1709
    %v1711 = vrot.slane %v1461, 7
    %v1712 = vsel %vm1667, %v1709, %v1711
    %v1713 = vrot.slane %v1463, 7
    %v1714 = vrot.slane %v1464, 7
    %v1715 = vsel %vm1667, %v1713, %v1714
    %v1716 = vrot.slane %v1465, 7
    %v1717 = vsel %vm1667, %v1714, %v1716
    %v1718 = vrot.slane %v1467, 7
    %v1719 = vrot.slane %v1468, 7
    %v1720 = vsel %vm1667, %v1718, %v1719
    %v1721 = vrot.slane %v1469, 7
    %v1722 = vsel %vm1667, %v1719, %v1721
    %v1723 = vrot.slane %v1471, 7
    %v1724 = vrot.slane %v1472, 7
    %v1725 = vsel %vm1667, %v1723, %v1724
    %v1726 = vrot.slane %v1473, 7
    %v1727 = vsel %vm1667, %v1724, %v1726
    %v1728 = vrot.slane %v1475, 7
    %v1729 = vrot.slane %v1476, 7
    %v1730 = vsel %vm1667, %v1728, %v1729
    %v1731 = vrot.slane %v1477, 7
    %v1732 = vsel %vm1667, %v1729, %v1731
    %v1733 = vrot.slane %v1479, 7
    %v1734 = vrot.slane %v1480, 7
    %v1735 = vsel %vm1667, %v1733, %v1734
    %v1736 = vrot.slane %v1481, 7
    %v1737 = vsel %vm1667, %v1734, %v1736
    %v1738 = vrot.slane %v1483, 7
    %v1739 = vrot.slane %v1484, 7
    %v1740 = vsel %vm1667, %v1738, %v1739
    %v1741 = vrot.slane %v1485, 7
    %v1742 = vsel %vm1667, %v1739, %v1741
    %v1743 = vrot.slane %v1487, 7
    %v1744 = vrot.slane %v1488, 7
    %v1745 = vsel %vm1667, %v1743, %v1744
    %v1746 = vrot.slane %v1489, 7
    %v1747 = vsel %vm1667, %v1744, %v1746
    %v1748 = vrot.slane %v1499, 7
    %v1749 = vrot.slane %v1500, 7
    %v1750 = vsel %vm1667, %v1748, %v1749
    %v1751 = vrot.slane %v1501, 7
    %v1752 = vsel %vm1667, %v1749, %v1751
    %v1753 = vrot.slane %v1503, 7
    %v1754 = vrot.slane %v1504, 7
    %v1755 = vsel %vm1667, %v1753, %v1754
    %v1756 = vrot.slane %v1505, 7
    %v1757 = vsel %vm1667, %v1754, %v1756
    %v1758 = vrot.slane %v1507, 7
    %v1759 = vrot.slane %v1508, 7
    %v1760 = vsel %vm1667, %v1758, %v1759
    %v1761 = vrot.slane %v1509, 7
    %v1762 = vsel %vm1667, %v1759, %v1761
    %v1763 = vrot.slane %v1511, 7
    %v1764 = vrot.slane %v1512, 7
    %v1765 = vsel %vm1667, %v1763, %v1764
    %v1766 = vrot.slane %v1513, 7
    %v1767 = vsel %vm1667, %v1764, %v1766
    %v1768 = vrot.slane %v1515, 7
    %v1769 = vrot.slane %v1516, 7
    %v1770 = vsel %vm1667, %v1768, %v1769
    %v1771 = vrot.slane %v1517, 7
    %v1772 = vsel %vm1667, %v1769, %v1771
    %v1773 = vrot.slane %v1519, 7
    %v1774 = vrot.slane %v1520, 7
    %v1775 = vsel %vm1667, %v1773, %v1774
    %v1776 = vrot.slane %v1521, 7
    %v1777 = vsel %vm1667, %v1774, %v1776
    %v1778 = vrot.slane %v1523, 7
    %v1779 = vrot.slane %v1524, 7
    %v1780 = vsel %vm1667, %v1778, %v1779
    %v1781 = vrot.slane %v1525, 7
    %v1782 = vsel %vm1667, %v1779, %v1781
    %v1783 = vrot.slane %v1527, 7
    %v1784 = vrot.slane %v1528, 7
    %v1785 = vsel %vm1667, %v1783, %v1784
    %v1786 = vrot.slane %v1529, 7
    %v1787 = vsel %vm1667, %v1784, %v1786
    %v1788 = vrot.slane %v1531, 7
    %v1789 = vrot.slane %v1532, 7
    %v1790 = vsel %vm1667, %v1788, %v1789
    %v1791 = vrot.slane %v1533, 7
    %v1792 = vsel %vm1667, %v1789, %v1791
    %v1793 = vrot.slane %v1535, 7
    %v1794 = vrot.slane %v1536, 7
    %v1795 = vsel %vm1667, %v1793, %v1794
    %v1796 = vrot.slane %v1537, 7
    %v1797 = vsel %vm1667, %v1794, %v1796
    %v1798 = vrot.slane %v1539, 7
    %v1799 = vrot.slane %v1540, 7
    %v1800 = vsel %vm1667, %v1798, %v1799
    %v1801 = vrot.slane %v1541, 7
    %v1802 = vsel %vm1667, %v1799, %v1801
    %v1803 = vrot.slane %v1543, 7
    %v1804 = vrot.slane %v1544, 7
    %v1805 = vsel %vm1667, %v1803, %v1804
    %v1806 = vrot.slane %v1545, 7
    %v1807 = vsel %vm1667, %v1804, %v1806
    %v1808 = vrot.slane %v1547, 7
    %v1809 = vrot.slane %v1548, 7
    %v1810 = vsel %vm1667, %v1808, %v1809
    %v1811 = vrot.slane %v1549, 7
    %v1812 = vsel %vm1667, %v1809, %v1811
    %v1813 = vrot.slane %v1551, 7
    %v1814 = vrot.slane %v1552, 7
    %v1815 = vsel %vm1667, %v1813, %v1814
    %v1816 = vrot.slane %v1553, 7
    %v1817 = vsel %vm1667, %v1814, %v1816
    %v1818 = vrot.slane %v1555, 7
    %v1819 = vrot.slane %v1556, 7
    %v1820 = vsel %vm1667, %v1818, %v1819
    %v1821 = vrot.slane %v1557, 7
    %v1822 = vsel %vm1667, %v1819, %v1821
    %v1823 = vrot.slane %v1559, 7
    %v1824 = vrot.slane %v1560, 7
    %v1825 = vsel %vm1667, %v1823, %v1824
    %v1826 = vrot.slane %v1561, 7
    %v1827 = vsel %vm1667, %v1824, %v1826
    %vm1924 = vcmask 1046528
    %v1925 = vrot.slane %v1428, 1
    %v1926 = vrot.slane %v1429, 1
    %v1927 = vsel %vm1924, %v1925, %v1926
    %v1928 = vrot.slane %v1430, 1
    %v1929 = vsel %vm1924, %v1926, %v1928
    %v1930 = vrot.slane %v1432, 1
    %v1931 = vrot.slane %v1433, 1
    %v1932 = vsel %vm1924, %v1930, %v1931
    %v1933 = vrot.slane %v1434, 1
    %v1934 = vsel %vm1924, %v1931, %v1933
    %v1935 = vrot.slane %v1436, 1
    %v1936 = vrot.slane %v1437, 1
    %v1937 = vsel %vm1924, %v1935, %v1936
    %v1938 = vrot.slane %v1438, 1
    %v1939 = vsel %vm1924, %v1936, %v1938
    %v1940 = vrot.slane %v1440, 1
    %v1941 = vrot.slane %v1441, 1
    %v1942 = vsel %vm1924, %v1940, %v1941
    %v1943 = vrot.slane %v1442, 1
    %v1944 = vsel %vm1924, %v1941, %v1943
    %v1945 = vrot.slane %v1444, 1
    %v1946 = vrot.slane %v1445, 1
    %v1947 = vsel %vm1924, %v1945, %v1946
    %v1948 = vrot.slane %v1446, 1
    %v1949 = vsel %vm1924, %v1946, %v1948
    %v1950 = vrot.slane %v1448, 1
    %v1951 = vrot.slane %v1449, 1
    %v1952 = vsel %vm1924, %v1950, %v1951
    %v1953 = vrot.slane %v1450, 1
    %v1954 = vsel %vm1924, %v1951, %v1953
    %v1955 = vrot.slane %v1452, 1
    %v1956 = vrot.slane %v1453, 1
    %v1957 = vsel %vm1924, %v1955, %v1956
    %v1958 = vrot.slane %v1454, 1
    %v1959 = vsel %vm1924, %v1956, %v1958
    %v1960 = vrot.slane %v1456, 1
    %v1961 = vrot.slane %v1457, 1
    %v1962 = vsel %vm1924, %v1960, %v1961
    %v1963 = vrot.slane %v1458, 1
    %v1964 = vsel %vm1924, %v1961, %v1963
    %v1965 = vrot.slane %v1460, 1
    %v1966 = vrot.slane %v1461, 1
    %v1967 = vsel %vm1924, %v1965, %v1966
    %v1968 = vrot.slane %v1462, 1
    %v1969 = vsel %vm1924, %v1966, %v1968
    %v1970 = vrot.slane %v1464, 1
    %v1971 = vrot.slane %v1465, 1
    %v1972 = vsel %vm1924, %v1970, %v1971
    %v1973 = vrot.slane %v1466, 1
    %v1974 = vsel %vm1924, %v1971, %v1973
    %v1975 = vrot.slane %v1468, 1
    %v1976 = vrot.slane %v1469, 1
    %v1977 = vsel %vm1924, %v1975, %v1976
    %v1978 = vrot.slane %v1470, 1
    %v1979 = vsel %vm1924, %v1976, %v1978
    %v1980 = vrot.slane %v1472, 1
    %v1981 = vrot.slane %v1473, 1
    %v1982 = vsel %vm1924, %v1980, %v1981
    %v1983 = vrot.slane %v1474, 1
    %v1984 = vsel %vm1924, %v1981, %v1983
    %v1985 = vrot.slane %v1476, 1
    %v1986 = vrot.slane %v1477, 1
    %v1987 = vsel %vm1924, %v1985, %v1986
    %v1988 = vrot.slane %v1478, 1
    %v1989 = vsel %vm1924, %v1986, %v1988
    %v1990 = vrot.slane %v1480, 1
    %v1991 = vrot.slane %v1481, 1
    %v1992 = vsel %vm1924, %v1990, %v1991
    %v1993 = vrot.slane %v1482, 1
    %v1994 = vsel %vm1924, %v1991, %v1993
    %v1995 = vrot.slane %v1484, 1
    %v1996 = vrot.slane %v1485, 1
    %v1997 = vsel %vm1924, %v1995, %v1996
    %v1998 = vrot.slane %v1486, 1
    %v1999 = vsel %vm1924, %v1996, %v1998
    %v2000 = vrot.slane %v1488, 1
    %v2001 = vrot.slane %v1489, 1
    %v2002 = vsel %vm1924, %v2000, %v2001
    %v2003 = vrot.slane %v1490, 1
    %v2004 = vsel %vm1924, %v2001, %v2003
    %v2005 = vrot.slane %v1500, 1
    %v2006 = vrot.slane %v1501, 1
    %v2007 = vsel %vm1924, %v2005, %v2006
    %v2008 = vrot.slane %v1502, 1
    %v2009 = vsel %vm1924, %v2006, %v2008
    %v2010 = vrot.slane %v1504, 1
    %v2011 = vrot.slane %v1505, 1
    %v2012 = vsel %vm1924, %v2010, %v2011
    %v2013 = vrot.slane %v1506, 1
    %v2014 = vsel %vm1924, %v2011, %v2013
    %v2015 = vrot.slane %v1508, 1
    %v2016 = vrot.slane %v1509, 1
    %v2017 = vsel %vm1924, %v2015, %v2016
    %v2018 = vrot.slane %v1510, 1
    %v2019 = vsel %vm1924, %v2016, %v2018
    %v2020 = vrot.slane %v1512, 1
    %v2021 = vrot.slane %v1513, 1
    %v2022 = vsel %vm1924, %v2020, %v2021
    %v2023 = vrot.slane %v1514, 1
    %v2024 = vsel %vm1924, %v2021, %v2023
    %v2025 = vrot.slane %v1516, 1
    %v2026 = vrot.slane %v1517, 1
    %v2027 = vsel %vm1924, %v2025, %v2026
    %v2028 = vrot.slane %v1518, 1
    %v2029 = vsel %vm1924, %v2026, %v2028
    %v2030 = vrot.slane %v1520, 1
    %v2031 = vrot.slane %v1521, 1
    %v2032 = vsel %vm1924, %v2030, %v2031
    %v2033 = vrot.slane %v1522, 1
    %v2034 = vsel %vm1924, %v2031, %v2033
    %v2035 = vrot.slane %v1524, 1
    %v2036 = vrot.slane %v1525, 1
    %v2037 = vsel %vm1924, %v2035, %v2036
    %v2038 = vrot.slane %v1526, 1
    %v2039 = vsel %vm1924, %v2036, %v2038
    %v2040 = vrot.slane %v1528, 1
    %v2041 = vrot.slane %v1529, 1
    %v2042 = vsel %vm1924, %v2040, %v2041
    %v2043 = vrot.slane %v1530, 1
    %v2044 = vsel %vm1924, %v2041, %v2043
    %v2045 = vrot.slane %v1532, 1
    %v2046 = vrot.slane %v1533, 1
    %v2047 = vsel %vm1924, %v2045, %v2046
    %v2048 = vrot.slane %v1534, 1
    %v2049 = vsel %vm1924, %v2046, %v2048
    %v2050 = vrot.slane %v1536, 1
    %v2051 = vrot.slane %v1537, 1
    %v2052 = vsel %vm1924, %v2050, %v2051
    %v2053 = vrot.slane %v1538, 1
    %v2054 = vsel %vm1924, %v2051, %v2053
    %v2055 = vrot.slane %v1540, 1
    %v2056 = vrot.slane %v1541, 1
    %v2057 = vsel %vm1924, %v2055, %v2056
    %v2058 = vrot.slane %v1542, 1
    %v2059 = vsel %vm1924, %v2056, %v2058
    %v2060 = vrot.slane %v1544, 1
    %v2061 = vrot.slane %v1545, 1
    %v2062 = vsel %vm1924, %v2060, %v2061
    %v2063 = vrot.slane %v1546, 1
    %v2064 = vsel %vm1924, %v2061, %v2063
    %v2065 = vrot.slane %v1548, 1
    %v2066 = vrot.slane %v1549, 1
    %v2067 = vsel %vm1924, %v2065, %v2066
    %v2068 = vrot.slane %v1550, 1
    %v2069 = vsel %vm1924, %v2066, %v2068
    %v2070 = vrot.slane %v1552, 1
    %v2071 = vrot.slane %v1553, 1
    %v2072 = vsel %vm1924, %v2070, %v2071
    %v2073 = vrot.slane %v1554, 1
    %v2074 = vsel %vm1924, %v2071, %v2073
    %v2075 = vrot.slane %v1556, 1
    %v2076 = vrot.slane %v1557, 1
    %v2077 = vsel %vm1924, %v2075, %v2076
    %v2078 = vrot.slane %v1558, 1
    %v2079 = vsel %vm1924, %v2076, %v2078
    %v2080 = vrot.slane %v1560, 1
    %v2081 = vrot.slane %v1561, 1
    %v2082 = vsel %vm1924, %v2080, %v2081
    %v2083 = vrot.slane %v1562, 1
    %v2084 = vsel %vm1924, %v2081, %v2083
    %v2155 = vrot.slane %v1491, 7
    %v2156 = vrot.slane %v1492, 7
    %v2157 = vsel %vm1667, %v2155, %v2156
    %v2158 = vrot.slane %v1493, 7
    %v2159 = vsel %vm1667, %v2156, %v2158
    %v2160 = vrot.slane %v1563, 7
    %v2161 = vrot.slane %v1564, 7
    %v2162 = vsel %vm1667, %v2160, %v2161
    %v2163 = vrot.slane %v1565, 7
    %v2164 = vsel %vm1667, %v2161, %v2163
    %v2171 = vrot.slane %v1492, 1
    %v2172 = vrot.slane %v1493, 1
    %v2173 = vsel %vm1924, %v2171, %v2172
    %v2174 = vrot.slane %v1494, 1
    %v2175 = vsel %vm1924, %v2172, %v2174
    %v2176 = vrot.slane %v1564, 1
    %v2177 = vrot.slane %v1565, 1
    %v2178 = vsel %vm1924, %v2176, %v2177
    %v2179 = vrot.slane %v1566, 1
    %v2180 = vsel %vm1924, %v2177, %v2179
    %v2191 = vrot.slane %v1495, 7
    %v2192 = vrot.slane %v1496, 7
    %v2193 = vsel %vm1667, %v2191, %v2192
    %v2194 = vrot.slane %v1497, 7
    %v2195 = vsel %vm1667, %v2192, %v2194
    %v2196 = vrot.slane %v1567, 7
    %v2197 = vrot.slane %v1568, 7
    %v2198 = vsel %vm1667, %v2196, %v2197
    %v2199 = vrot.slane %v1569, 7
    %v2200 = vsel %vm1667, %v2197, %v2199
    %v2207 = vrot.slane %v1496, 1
    %v2208 = vrot.slane %v1497, 1
    %v2209 = vsel %vm1924, %v2207, %v2208
    %v2210 = vrot.slane %v1498, 1
    %v2211 = vsel %vm1924, %v2208, %v2210
    %v2212 = vrot.slane %v1568, 1
    %v2213 = vrot.slane %v1569, 1
    %v2214 = vsel %vm1924, %v2212, %v2213
    %v2215 = vrot.slane %v1570, 1
    %v2216 = vsel %vm1924, %v2213, %v2215
    %v2221 = vld [vmem:[#allocation9] sm:$0xff]
    %v2222 = vld [vmem:[#allocation9 + $0x8] sm:$0xff]
    %v2223 = vld [vmem:[#allocation9 + $0x10] sm:$0xff]
    %v2224 = vld [vmem:[#allocation9 + $0x18] sm:$0xff]
    %v2225 = vld [vmem:[#allocation9 + $0x20] sm:$0xff]
    %v2226 = vld [vmem:[#allocation9 + $0x28] sm:$0xff]
    %v2227 = vld [vmem:[#allocation9 + $0x30] sm:$0xff]
    %v2228 = vld [vmem:[#allocation9 + $0x38] sm:$0xff]
    %v2229 = vld [vmem:[#allocation9 + $0x40] sm:$0xff]
    %v2230 = vld [vmem:[#allocation9 + $0x48] sm:$0xff]
    %v2231 = vld [vmem:[#allocation9 + $0x50] sm:$0xff]
    %v2232 = vld [vmem:[#allocation9 + $0x58] sm:$0xff]
    %v2233 = vld [vmem:[#allocation9 + $0x60] sm:$0xff]
    %v2234 = vld [vmem:[#allocation9 + $0x68] sm:$0xff]
    %v2235 = vld [vmem:[#allocation9 + $0x70] sm:$0xff]
    %v2236 = vld [vmem:[#allocation9 + $0x78] sm:$0xff]
    %v2237 = vld [vmem:[#allocation9 + $0x80] sm:$0xff]
    %v2238 = vld [vmem:[#allocation9 + $0x88] sm:$0xff]
    %v2239 = vld [vmem:[#allocation9 + $0x90] sm:$0xff]
    %v2240 = vld [vmem:[#allocation9 + $0x98] sm:$0xff]
    %v2241 = vld [vmem:[#allocation9 + $0xa0] sm:$0xff]
    %v2242 = vld [vmem:[#allocation9 + $0xa8] sm:$0xff]
    %v2243 = vld [vmem:[#allocation9 + $0xb0] sm:$0xff]
    %v2244 = vld [vmem:[#allocation9 + $0xb8] sm:$0xff]
    %v2245 = vld [vmem:[#allocation9 + $0xc0] sm:$0xff]
    %v2246 = vld [vmem:[#allocation9 + $0xc8] sm:$0xff]
    %v2247 = vld [vmem:[#allocation9 + $0xd0] sm:$0xff]
    %v2248 = vld [vmem:[#allocation9 + $0xd8] sm:$0xff]
    %v2249 = vld [vmem:[#allocation9 + $0xe0] sm:$0xff]
    %v2250 = vld [vmem:[#allocation9 + $0xe8] sm:$0xff]
    %v2251 = vld [vmem:[#allocation9 + $0xf0] sm:$0xff]
    %v2252 = vld [vmem:[#allocation9 + $0xf8] sm:$0xff]
    %v2253 = vld [vmem:[#allocation9 + $0x100] sm:$0xff]
    %v2254 = vld [vmem:[#allocation9 + $0x108] sm:$0xff]
    %v2255 = vld [vmem:[#allocation9 + $0x110] sm:$0xff]
    %v2256 = vld [vmem:[#allocation9 + $0x118] sm:$0xff]
    %v2257 = vld [vmem:[#allocation9 + $0x120] sm:$0xff]
    %v2258 = vld [vmem:[#allocation9 + $0x128] sm:$0xff]
    %v2259 = vld [vmem:[#allocation9 + $0x130] sm:$0xff]
    %v2260 = vld [vmem:[#allocation9 + $0x138] sm:$0xff]
    %v2261 = vld [vmem:[#allocation9 + $0x140] sm:$0xff]
    %v2262 = vld [vmem:[#allocation9 + $0x148] sm:$0xff]
    %v2263 = vld [vmem:[#allocation9 + $0x150] sm:$0xff]
    %v2264 = vld [vmem:[#allocation9 + $0x158] sm:$0xff]
    %v2265 = vld [vmem:[#allocation9 + $0x160] sm:$0xff]
    %v2266 = vld [vmem:[#allocation9 + $0x168] sm:$0xff]
    %v2267 = vld [vmem:[#allocation9 + $0x170] sm:$0xff]
    %v2268 = vld [vmem:[#allocation9 + $0x178] sm:$0xff]
    %v2269 = vld [vmem:[#allocation9 + $0x180] sm:$0xff]
    %v2270 = vld [vmem:[#allocation9 + $0x188] sm:$0xff]
    %v2271 = vld [vmem:[#allocation9 + $0x190] sm:$0xff]
    %v2272 = vld [vmem:[#allocation9 + $0x198] sm:$0xff]
    %v2273 = vld [vmem:[#allocation9 + $0x1a0] sm:$0xff]
    %v2274 = vld [vmem:[#allocation9 + $0x1a8] sm:$0xff]
    %v2275 = vld [vmem:[#allocation9 + $0x1b0] sm:$0xff]
    %v2276 = vld [vmem:[#allocation9 + $0x1b8] sm:$0xff]
    %v2277 = vld [vmem:[#allocation9 + $0x1c0] sm:$0xff]
    %v2278 = vld [vmem:[#allocation9 + $0x1c8] sm:$0xff]
    %v2279 = vld [vmem:[#allocation9 + $0x1d0] sm:$0xff]
    %v2280 = vld [vmem:[#allocation9 + $0x1d8] sm:$0xff]
    %v2281 = vld [vmem:[#allocation9 + $0x1e0] sm:$0xff]
    %v2282 = vld [vmem:[#allocation9 + $0x1e8] sm:$0xff]
    %v2283 = vld [vmem:[#allocation9 + $0x1f0] sm:$0xff]
    %v2284 = vld [vmem:[#allocation9 + $0x1f8] sm:$0xff]
    %v2285 = vld [vmem:[#allocation9 + $0x200] sm:$0xff]
    %v2286 = vld [vmem:[#allocation9 + $0x208] sm:$0xff]
    %v2287 = vld [vmem:[#allocation9 + $0x210] sm:$0xff]
    %v2288 = vld [vmem:[#allocation9 + $0x218] sm:$0xff]
    %v2289 = vld [vmem:[#allocation9 + $0x220] sm:$0xff]
    %v2290 = vld [vmem:[#allocation9 + $0x228] sm:$0xff]
    %v2291 = vld [vmem:[#allocation9 + $0x230] sm:$0xff]
    %v2292 = vld [vmem:[#allocation9 + $0x238] sm:$0xff]
    %v2293 = vld [vmem:[#allocation9 + $0x240] sm:$0xff]
    %v2294 = vld [vmem:[#allocation9 + $0x248] sm:$0xff]
    %v2295 = vld [vmem:[#allocation9 + $0x250] sm:$0xff]
    %v2296 = vld [vmem:[#allocation9 + $0x258] sm:$0xff]
    %v2297 = vld [vmem:[#allocation9 + $0x260] sm:$0xff]
    %v2298 = vld [vmem:[#allocation9 + $0x268] sm:$0xff]
    %v2299 = vld [vmem:[#allocation9 + $0x270] sm:$0xff]
    %v2300 = vld [vmem:[#allocation9 + $0x278] sm:$0xff]
    %v2301 = vld [vmem:[#allocation9 + $0x280] sm:$0xff]
    %v2302 = vld [vmem:[#allocation9 + $0x288] sm:$0xff]
    %v2303 = vld [vmem:[#allocation9 + $0x290] sm:$0xff]
    %v2304 = vld [vmem:[#allocation9 + $0x298] sm:$0xff]
    %v2305 = vld [vmem:[#allocation9 + $0x2a0] sm:$0xff]
    %v2306 = vld [vmem:[#allocation9 + $0x2a8] sm:$0xff]
    %v2307 = vld [vmem:[#allocation9 + $0x2b0] sm:$0xff]
    %v2308 = vld [vmem:[#allocation9 + $0x2b8] sm:$0xff]
    %v2309 = vld [vmem:[#allocation9 + $0x2c0] sm:$0xff]
    %v2310 = vld [vmem:[#allocation9 + $0x2c8] sm:$0xff]
    %v2311 = vld [vmem:[#allocation9 + $0x2d0] sm:$0xff]
    %v2312 = vld [vmem:[#allocation9 + $0x2d8] sm:$0xff]
    %v2313 = vld [vmem:[#allocation9 + $0x2e0] sm:$0xff]
    %v2314 = vld [vmem:[#allocation9 + $0x2e8] sm:$0xff]
    %v2315 = vld [vmem:[#allocation9 + $0x2f0] sm:$0xff]
    %v2316 = vld [vmem:[#allocation9 + $0x2f8] sm:$0xff]
    %v2317 = vld [vmem:[#allocation9 + $0x300] sm:$0xff]
    %v2318 = vld [vmem:[#allocation9 + $0x308] sm:$0xff]
    %v2319 = vld [vmem:[#allocation9 + $0x310] sm:$0xff]
    %v2320 = vld [vmem:[#allocation9 + $0x318] sm:$0xff]
    %v2321 = vld [vmem:[#allocation9 + $0x320] sm:$0xff]
    %v2322 = vld [vmem:[#allocation9 + $0x328] sm:$0xff]
    %v2323 = vld [vmem:[#allocation9 + $0x330] sm:$0xff]
    %v2324 = vld [vmem:[#allocation9 + $0x338] sm:$0xff]
    %v2325 = vld [vmem:[#allocation9 + $0x340] sm:$0xff]
    %v2326 = vld [vmem:[#allocation9 + $0x348] sm:$0xff]
    %v2327 = vld [vmem:[#allocation9 + $0x350] sm:$0xff]
    %v2328 = vld [vmem:[#allocation9 + $0x358] sm:$0xff]
    %v2329 = vld [vmem:[#allocation9 + $0x360] sm:$0xff]
    %v2330 = vld [vmem:[#allocation9 + $0x368] sm:$0xff]
    %v2331 = vld [vmem:[#allocation9 + $0x370] sm:$0xff]
    %v2332 = vld [vmem:[#allocation9 + $0x378] sm:$0xff]
    %v2333 = vld [vmem:[#allocation9 + $0x380] sm:$0xff]
    %v2334 = vld [vmem:[#allocation9 + $0x388] sm:$0xff]
    %v2335 = vld [vmem:[#allocation9 + $0x390] sm:$0xff]
    %v2336 = vld [vmem:[#allocation9 + $0x398] sm:$0xff]
    %v2337 = vld [vmem:[#allocation9 + $0x3a0] sm:$0xff]
    %v2338 = vld [vmem:[#allocation9 + $0x3a8] sm:$0xff]
    %v2339 = vld [vmem:[#allocation9 + $0x3b0] sm:$0xff]
    %v2340 = vld [vmem:[#allocation9 + $0x3b8] sm:$0xff]
    %v2341 = vld [vmem:[#allocation9 + $0x3c0] sm:$0xff]
    %v2342 = vld [vmem:[#allocation9 + $0x3c8] sm:$0xff]
    %v2343 = vld [vmem:[#allocation9 + $0x3d0] sm:$0xff]
    %v2344 = vld [vmem:[#allocation9 + $0x3d8] sm:$0xff]
    %v2345 = vld [vmem:[#allocation9 + $0x3e0] sm:$0xff]
    %v2346 = vld [vmem:[#allocation9 + $0x3e8] sm:$0xff]
    %v2347 = vld [vmem:[#allocation9 + $0x3f0] sm:$0xff]
    %v2348 = vld [vmem:[#allocation9 + $0x3f8] sm:$0xff]
    %v2349 = vld [vmem:[#allocation9 + $0x400] sm:$0xff]
    %v2350 = vld [vmem:[#allocation9 + $0x408] sm:$0xff]
    %v2351 = vld [vmem:[#allocation9 + $0x410] sm:$0xff]
    %v2352 = vld [vmem:[#allocation9 + $0x418] sm:$0xff]
    %v2353 = vld [vmem:[#allocation9 + $0x420] sm:$0xff]
    %v2354 = vld [vmem:[#allocation9 + $0x428] sm:$0xff]
    %v2355 = vld [vmem:[#allocation9 + $0x430] sm:$0xff]
    %v2356 = vld [vmem:[#allocation9 + $0x438] sm:$0xff]
    %v2357 = vld [vmem:[#allocation9 + $0x440] sm:$0xff]
    %v2358 = vld [vmem:[#allocation9 + $0x448] sm:$0xff]
    %v2359 = vld [vmem:[#allocation9 + $0x450] sm:$0xff]
    %v2360 = vld [vmem:[#allocation9 + $0x458] sm:$0xff]
    %v2361 = vld [vmem:[#allocation9 + $0x460] sm:$0xff]
    %v2362 = vld [vmem:[#allocation9 + $0x468] sm:$0xff]
    %v2363 = vld [vmem:[#allocation9 + $0x470] sm:$0xff]
    %v2364 = vld [vmem:[#allocation9 + $0x478] sm:$0xff]
    %2365 = vmatprep.subr.mxu0 0.0
    %2366 = vmatpush1.msra.mxu0 %v2221
    %2367 = vmatprep.subr.mxu0 0.0
    %2368 = vmatpush1.msra.mxu0 %v2222
    %2369 = vmatprep.subr.mxu0 0.0
    %2370 = vmatpush1.msra.mxu0 %v2223
    %2371 = vmatprep.subr.mxu0 0.0
    %2372 = vmatpush1.msra.mxu0 %v2224
    %2373 = vmatprep.subr.mxu0 0.0
    %2374 = vmatpush1.msra.mxu0 %v2225
    %2375 = vmatprep.subr.mxu0 0.0
    %2376 = vmatpush1.msra.mxu0 %v2226
    %2377 = vmatprep.subr.mxu0 0.0
    %2378 = vmatpush1.msra.mxu0 %v2227
    %2379 = vmatprep.subr.mxu0 0.0
    %2380 = vmatpush1.msra.mxu0 %v2228
    %2381 = vmatprep.subr.mxu0 0.0
    %2382 = vmatpush1.msra.mxu0 %v2229
    %2383 = vmatprep.subr.mxu0 0.0
    %2384 = vmatpush1.msra.mxu0 %v2230
    %2385 = vmatprep.subr.mxu0 0.0
    %2386 = vmatpush1.msra.mxu0 %v2231
    %2387 = vmatprep.subr.mxu0 0.0
    %2388 = vmatpush1.msra.mxu0 %v2232
    %2389 = vmatprep.subr.mxu0 0.0
    %2390 = vmatpush1.msra.mxu0 %v2233
    %2391 = vmatprep.subr.mxu0 0.0
    %2392 = vmatpush1.msra.mxu0 %v2234
    %2393 = vmatprep.subr.mxu0 0.0
    %2394 = vmatpush1.msra.mxu0 %v2235
    %2395 = vmatprep.subr.mxu0 0.0
    %2396 = vmatpush1.msra.mxu0 %v2236
    %2397 = vmatprep.subr.mxu0 0.0
    %2398 = vmatpush1.msra.mxu0 %v2237
    %2399 = vmatprep.subr.mxu0 0.0
    %2400 = vmatpush1.msra.mxu0 %v2238
    %2401 = vmatprep.subr.mxu0 0.0
    %2402 = vmatpush1.msra.mxu0 %v2239
    %2403 = vmatprep.subr.mxu0 0.0
    %2404 = vmatpush1.msra.mxu0 %v2240
    %2405 = vmatprep.subr.mxu0 0.0
    %2406 = vmatpush1.msra.mxu0 %v2241
    %2407 = vmatprep.subr.mxu0 0.0
    %2408 = vmatpush1.msra.mxu0 %v2242
    %2409 = vmatprep.subr.mxu0 0.0
    %2410 = vmatpush1.msra.mxu0 %v2243
    %2411 = vmatprep.subr.mxu0 0.0
    %2412 = vmatpush1.msra.mxu0 %v2244
    %2413 = vmatprep.subr.mxu0 0.0
    %2414 = vmatpush1.msra.mxu0 %v2245
    %2415 = vmatprep.subr.mxu0 0.0
    %2416 = vmatpush1.msra.mxu0 %v2246
    %2417 = vmatprep.subr.mxu0 0.0
    %2418 = vmatpush1.msra.mxu0 %v2247
    %2419 = vmatprep.subr.mxu0 0.0
    %2420 = vmatpush1.msra.mxu0 %v2248
    %2421 = vmatprep.subr.mxu0 0.0
    %2422 = vmatpush1.msra.mxu0 %v2249
    %2423 = vmatprep.subr.mxu0 0.0
    %2424 = vmatpush1.msra.mxu0 %v2250
    %2425 = vmatprep.subr.mxu0 0.0
    %2426 = vmatpush1.msra.mxu0 %v2251
    %2427 = vmatprep.subr.mxu0 0.0
    %2428 = vmatpush1.msra.mxu0 %v2252
    %2429 = vmatprep.mubr.f32.mxu0 %v1428
    %2430 = vmatmul.mubr.f32.gmra.mrb[0].mxu0 %v1670
    %v2431 = vpop.f32.mrb[0].mxu0
    %v2432 = vadd.f32 0.0, %v2431
    %v2433 = vpop.f32.mrb[0].mxu0
    %2434 = vmatprep.mubr.f32.mxu0 %v1429
    %2435 = vmatmul.mubr.f32.gmra.mrb[0].mxu0 %v1672
    %v2436 = vpop.f32.mrb[0].mxu0
    %v2437 = vadd.f32 0.0, %v2436
    %v2438 = vpop.f32.mrb[0].mxu0
    %2439 = vmatprep.mubr.f32.mxu0 %v1432
    %2440 = vmatmul.mubr.f32.gmra.mrb[0].mxu0 %v1675
    %v2441 = vpop.f32.mrb[0].mxu0
    %v2442 = vadd.f32 0.0, %v2441
    %v2443 = vpop.f32.mrb[0].mxu0
    %2444 = vmatprep.mubr.f32.mxu0 %v1433
    %2445 = vmatmul.mubr.f32.gmra.mrb[0].mxu0 %v1677
    %v2446 = vpop.f32.mrb[0].mxu0
    %v2447 = vadd.f32 0.0, %v2446
    %v2448 = vpop.f32.mrb[0].mxu0
    %2449 = vmatprep.mubr.f32.mxu0 %v1436
    %2450 = vmatmul.mubr.f32.gmra.mrb[0].mxu0 %v1680
    %v2451 = vpop.f32.mrb[0].mxu0
    %v2452 = vadd.f32 0.0, %v2451
    %v2453 = vpop.f32.mrb[0].mxu0
    %2454 = vmatprep.mubr.f32.mxu0 %v1437
    %2455 = vmatmul.mubr.f32.gmra.mrb[0].mxu0 %v1682
    %v2456 = vpop.f32.mrb[0].mxu0
    %v2457 = vadd.f32 0.0, %v2456
    %v2458 = vpop.f32.mrb[0].mxu0
    %2459 = vmatprep.mubr.f32.mxu0 %v1440
    %2460 = vmatmul.mubr.f32.gmra.mrb[0].mxu0 %v1685
    %v2461 = vpop.f32.mrb[0].mxu0
    %v2462 = vadd.f32 0.0, %v2461
    %v2463 = vpop.f32.mrb[0].mxu0
    %2464 = vmatprep.mubr.f32.mxu0 %v1441
    %2465 = vmatmul.mubr.f32.gmra.mrb[0].mxu0 %v1687
    %v2466 = vpop.f32.mrb[0].mxu0
    %v2467 = vadd.f32 0.0, %v2466
    %v2468 = vpop.f32.mrb[0].mxu0
    %2469 = vmatprep.mubr.f32.mxu0 %v1444
    %2470 = vmatmul.mubr.f32.gmra.mrb[0].mxu0 %v1690
    %v2471 = vpop.f32.mrb[0].mxu0
    %v2472 = vadd.f32 0.0, %v2471
    %v2473 = vpop.f32.mrb[0].mxu0
    %2474 = vmatprep.mubr.f32.mxu0 %v1445
    %2475 = vmatmul.mubr.f32.gmra.mrb[0].mxu0 %v1692
    %v2476 = vpop.f32.mrb[0].mxu0
    %v2477 = vadd.f32 0.0, %v2476
    %v2478 = vpop.f32.mrb[0].mxu0
    %2479 = vmatprep.mubr.f32.mxu0 %v1448
    %2480 = vmatmul.mubr.f32.gmra.mrb[0].mxu0 %v1695
    %v2481 = vpop.f32.mrb[0].mxu0
    %v2482 = vadd.f32 0.0, %v2481
    %v2483 = vpop.f32.mrb[0].mxu0
    %2484 = vmatprep.mubr.f32.mxu0 %v1449
    %2485 = vmatmul.mubr.f32.gmra.mrb[0].mxu0 %v1697
    %v2486 = vpop.f32.mrb[0].mxu0
    %v2487 = vadd.f32 0.0, %v2486
    %v2488 = vpop.f32.mrb[0].mxu0
    %2489 = vmatprep.mubr.f32.mxu0 %v1452
    %2490 = vmatmul.mubr.f32.gmra.mrb[0].mxu0 %v1700
    %v2491 = vpop.f32.mrb[0].mxu0
    %v2492 = vadd.f32 0.0, %v2491
    %v2493 = vpop.f32.mrb[0].mxu0
    %2494 = vmatprep.mubr.f32.mxu0 %v1453
    %2495 = vmatmul.mubr.f32.gmra.mrb[0].mxu0 %v1702
    %v2496 = vpop.f32.mrb[0].mxu0
    %v2497 = vadd.f32 0.0, %v2496
    %v2498 = vpop.f32.mrb[0].mxu0
    %2499 = vmatprep.mubr.f32.mxu0 %v1456
    %2500 = vmatmul.mubr.f32.gmra.mrb[0].mxu0 %v1705
    %v2501 = vpop.f32.mrb[0].mxu0
    %v2502 = vadd.f32 0.0, %v2501
    %v2503 = vpop.f32.mrb[0].mxu0
    %2504 = vmatprep.mubr.f32.mxu0 %v1457
    %2505 = vmatmul.mubr.f32.gmra.mrb[0].mxu0 %v1707
    %v2506 = vpop.f32.mrb[0].mxu0
    %v2507 = vadd.f32 0.0, %v2506
    %v2508 = vpop.f32.mrb[0].mxu0
    %2509 = vmatprep.mubr.f32.mxu0 %v1460
    %2510 = vmatmul.mubr.f32.gmra.mrb[0].mxu0 %v1710
    %v2511 = vpop.f32.mrb[0].mxu0
    %v2512 = vadd.f32 0.0, %v2511
    %v2513 = vpop.f32.mrb[0].mxu0
    %2514 = vmatprep.mubr.f32.mxu0 %v1461
    %2515 = vmatmul.mubr.f32.gmra.mrb[0].mxu0 %v1712
    %v2516 = vpop.f32.mrb[0].mxu0
    %v2517 = vadd.f32 0.0, %v2516
    %v2518 = vpop.f32.mrb[0].mxu0
    %2519 = vmatprep.mubr.f32.mxu0 %v1464
    %2520 = vmatmul.mubr.f32.gmra.mrb[0].mxu0 %v1715
    %v2521 = vpop.f32.mrb[0].mxu0
    %v2522 = vadd.f32 0.0, %v2521
    %v2523 = vpop.f32.mrb[0].mxu0
    %2524 = vmatprep.mubr.f32.mxu0 %v1465
    %2525 = vmatmul.mubr.f32.gmra.mrb[0].mxu0 %v1717
    %v2526 = vpop.f32.mrb[0].mxu0
    %v2527 = vadd.f32 0.0, %v2526
    %v2528 = vpop.f32.mrb[0].mxu0
    %2529 = vmatprep.mubr.f32.mxu0 %v1468
    %2530 = vmatmul.mubr.f32.gmra.mrb[0].mxu0 %v1720
    %v2531 = vpop.f32.mrb[0].mxu0
    %v2532 = vadd.f32 0.0, %v2531
    %v2533 = vpop.f32.mrb[0].mxu0
    %2534 = vmatprep.mubr.f32.mxu0 %v1469
    %2535 = vmatmul.mubr.f32.gmra.mrb[0].mxu0 %v1722
    %v2536 = vpop.f32.mrb[0].mxu0
    %v2537 = vadd.f32 0.0, %v2536
    %v2538 = vpop.f32.mrb[0].mxu0
    %2539 = vmatprep.mubr.f32.mxu0 %v1472
    %2540 = vmatmul.mubr.f32.gmra.mrb[0].mxu0 %v1725
    %v2541 = vpop.f32.mrb[0].mxu0
    %v2542 = vadd.f32 0.0, %v2541
    %v2543 = vpop.f32.mrb[0].mxu0
    %2544 = vmatprep.mubr.f32.mxu0 %v1473
    %2545 = vmatmul.mubr.f32.gmra.mrb[0].mxu0 %v1727
    %v2546 = vpop.f32.mrb[0].mxu0
    %v2547 = vadd.f32 0.0, %v2546
    %v2548 = vpop.f32.mrb[0].mxu0
    %2549 = vmatprep.mubr.f32.mxu0 %v1476
    %2550 = vmatmul.mubr.f32.gmra.mrb[0].mxu0 %v1730
    %v2551 = vpop.f32.mrb[0].mxu0
    %v2552 = vadd.f32 0.0, %v2551
    %v2553 = vpop.f32.mrb[0].mxu0
    %2554 = vmatprep.mubr.f32.mxu0 %v1477
    %2555 = vmatmul.mubr.f32.gmra.mrb[0].mxu0 %v1732
    %v2556 = vpop.f32.mrb[0].mxu0
    %v2557 = vadd.f32 0.0, %v2556
    %v2558 = vpop.f32.mrb[0].mxu0
    %2559 = vmatprep.mubr.f32.mxu0 %v1480
    %2560 = vmatmul.mubr.f32.gmra.mrb[0].mxu0 %v1735
    %v2561 = vpop.f32.mrb[0].mxu0
    %v2562 = vadd.f32 0.0, %v2561
    %v2563 = vpop.f32.mrb[0].mxu0
    %2564 = vmatprep.mubr.f32.mxu0 %v1481
    %2565 = vmatmul.mubr.f32.gmra.mrb[0].mxu0 %v1737
    %v2566 = vpop.f32.mrb[0].mxu0
    %v2567 = vadd.f32 0.0, %v2566
    %v2568 = vpop.f32.mrb[0].mxu0
    %2569 = vmatprep.mubr.f32.mxu0 %v1484
    %2570 = vmatmul.mubr.f32.gmra.mrb[0].mxu0 %v1740
    %v2571 = vpop.f32.mrb[0].mxu0
    %v2572 = vadd.f32 0.0, %v2571
    %v2573 = vpop.f32.mrb[0].mxu0
    %2574 = vmatprep.mubr.f32.mxu0 %v1485
    %2575 = vmatmul.mubr.f32.gmra.mrb[0].mxu0 %v1742
    %v2576 = vpop.f32.mrb[0].mxu0
    %v2577 = vadd.f32 0.0, %v2576
    %v2578 = vpop.f32.mrb[0].mxu0
    %2579 = vmatprep.mubr.f32.mxu0 %v1488
    %2580 = vmatmul.mubr.f32.gmra.mrb[0].mxu0 %v1745
    %v2581 = vpop.f32.mrb[0].mxu0
    %v2582 = vadd.f32 0.0, %v2581
    %v2583 = vpop.f32.mrb[0].mxu0
    %2584 = vmatprep.mubr.f32.mxu0 %v1489
    %2585 = vmatmul.mubr.f32.gmra.mrb[0].mxu0 %v1747
    %v2586 = vpop.f32.mrb[0].mxu0
    %v2587 = vadd.f32 0.0, %v2586
    %v2588 = vpop.f32.mrb[0].mxu0
    %2589 = vmatprep.mubr.f32.mxu0 %v1500
    %2590 = vmatmul.mubr.f32.gmra.mrb[0].mxu0 %v1750
    %v2591 = vpop.f32.mrb[0].mxu0
    %v2592 = vadd.f32 0.0, %v2591
    %v2593 = vpop.f32.mrb[0].mxu0
    %2594 = vmatprep.mubr.f32.mxu0 %v1501
    %2595 = vmatmul.mubr.f32.gmra.mrb[0].mxu0 %v1752
    %v2596 = vpop.f32.mrb[0].mxu0
    %v2597 = vadd.f32 0.0, %v2596
    %v2598 = vpop.f32.mrb[0].mxu0
    %2599 = vmatprep.mubr.f32.mxu0 %v1504
    %2600 = vmatmul.mubr.f32.gmra.mrb[0].mxu0 %v1755
    %v2601 = vpop.f32.mrb[0].mxu0
    %v2602 = vadd.f32 0.0, %v2601
    %v2603 = vpop.f32.mrb[0].mxu0
    %2604 = vmatprep.mubr.f32.mxu0 %v1505
    %2605 = vmatmul.mubr.f32.gmra.mrb[0].mxu0 %v1757
    %v2606 = vpop.f32.mrb[0].mxu0
    %v2607 = vadd.f32 0.0, %v2606
    %v2608 = vpop.f32.mrb[0].mxu0
    %2609 = vmatprep.mubr.f32.mxu0 %v1508
    %2610 = vmatmul.mubr.f32.gmra.mrb[0].mxu0 %v1760
    %v2611 = vpop.f32.mrb[0].mxu0
    %v2612 = vadd.f32 0.0, %v2611
    %v2613 = vpop.f32.mrb[0].mxu0
    %2614 = vmatprep.mubr.f32.mxu0 %v1509
    %2615 = vmatmul.mubr.f32.gmra.mrb[0].mxu0 %v1762
    %v2616 = vpop.f32.mrb[0].mxu0
    %v2617 = vadd.f32 0.0, %v2616
    %v2618 = vpop.f32.mrb[0].mxu0
    %2619 = vmatprep.mubr.f32.mxu0 %v1512
    %2620 = vmatmul.mubr.f32.gmra.mrb[0].mxu0 %v1765
    %v2621 = vpop.f32.mrb[0].mxu0
    %v2622 = vadd.f32 0.0, %v2621
    %v2623 = vpop.f32.mrb[0].mxu0
    %2624 = vmatprep.mubr.f32.mxu0 %v1513
    %2625 = vmatmul.mubr.f32.gmra.mrb[0].mxu0 %v1767
    %v2626 = vpop.f32.mrb[0].mxu0
    %v2627 = vadd.f32 0.0, %v2626
    %v2628 = vpop.f32.mrb[0].mxu0
    %2629 = vmatprep.mubr.f32.mxu0 %v1516
    %2630 = vmatmul.mubr.f32.gmra.mrb[0].mxu0 %v1770
    %v2631 = vpop.f32.mrb[0].mxu0
    %v2632 = vadd.f32 0.0, %v2631
    %v2633 = vpop.f32.mrb[0].mxu0
    %2634 = vmatprep.mubr.f32.mxu0 %v1517
    %2635 = vmatmul.mubr.f32.gmra.mrb[0].mxu0 %v1772
    %v2636 = vpop.f32.mrb[0].mxu0
    %v2637 = vadd.f32 0.0, %v2636
    %v2638 = vpop.f32.mrb[0].mxu0
    %2639 = vmatprep.mubr.f32.mxu0 %v1520
    %2640 = vmatmul.mubr.f32.gmra.mrb[0].mxu0 %v1775
    %v2641 = vpop.f32.mrb[0].mxu0
    %v2642 = vadd.f32 0.0, %v2641
    %v2643 = vpop.f32.mrb[0].mxu0
    %2644 = vmatprep.mubr.f32.mxu0 %v1521
    %2645 = vmatmul.mubr.f32.gmra.mrb[0].mxu0 %v1777
    %v2646 = vpop.f32.mrb[0].mxu0
    %v2647 = vadd.f32 0.0, %v2646
    %v2648 = vpop.f32.mrb[0].mxu0
    %2649 = vmatprep.mubr.f32.mxu0 %v1524
    %2650 = vmatmul.mubr.f32.gmra.mrb[0].mxu0 %v1780
    %v2651 = vpop.f32.mrb[0].mxu0
    %v2652 = vadd.f32 0.0, %v2651
    %v2653 = vpop.f32.mrb[0].mxu0
    %2654 = vmatprep.mubr.f32.mxu0 %v1525
    %2655 = vmatmul.mubr.f32.gmra.mrb[0].mxu0 %v1782
    %v2656 = vpop.f32.mrb[0].mxu0
    %v2657 = vadd.f32 0.0, %v2656
    %v2658 = vpop.f32.mrb[0].mxu0
    %2659 = vmatprep.mubr.f32.mxu0 %v1528
    %2660 = vmatmul.mubr.f32.gmra.mrb[0].mxu0 %v1785
    %v2661 = vpop.f32.mrb[0].mxu0
    %v2662 = vadd.f32 0.0, %v2661
    %v2663 = vpop.f32.mrb[0].mxu0
    %2664 = vmatprep.mubr.f32.mxu0 %v1529
    %2665 = vmatmul.mubr.f32.gmra.mrb[0].mxu0 %v1787
    %v2666 = vpop.f32.mrb[0].mxu0
    %v2667 = vadd.f32 0.0, %v2666
    %v2668 = vpop.f32.mrb[0].mxu0
    %2669 = vmatprep.mubr.f32.mxu0 %v1532
    %2670 = vmatmul.mubr.f32.gmra.mrb[0].mxu0 %v1790
    %v2671 = vpop.f32.mrb[0].mxu0
    %v2672 = vadd.f32 0.0, %v2671
    %v2673 = vpop.f32.mrb[0].mxu0
    %2674 = vmatprep.mubr.f32.mxu0 %v1533
    %2675 = vmatmul.mubr.f32.gmra.mrb[0].mxu0 %v1792
    %v2676 = vpop.f32.mrb[0].mxu0
    %v2677 = vadd.f32 0.0, %v2676
    %v2678 = vpop.f32.mrb[0].mxu0
    %2679 = vmatprep.mubr.f32.mxu0 %v1536
    %2680 = vmatmul.mubr.f32.gmra.mrb[0].mxu0 %v1795
    %v2681 = vpop.f32.mrb[0].mxu0
    %v2682 = vadd.f32 0.0, %v2681
    %v2683 = vpop.f32.mrb[0].mxu0
    %2684 = vmatprep.mubr.f32.mxu0 %v1537
    %2685 = vmatmul.mubr.f32.gmra.mrb[0].mxu0 %v1797
    %v2686 = vpop.f32.mrb[0].mxu0
    %v2687 = vadd.f32 0.0, %v2686
    %v2688 = vpop.f32.mrb[0].mxu0
    %2689 = vmatprep.mubr.f32.mxu0 %v1540
    %2690 = vmatmul.mubr.f32.gmra.mrb[0].mxu0 %v1800
    %v2691 = vpop.f32.mrb[0].mxu0
    %v2692 = vadd.f32 0.0, %v2691
    %v2693 = vpop.f32.mrb[0].mxu0
    %2694 = vmatprep.mubr.f32.mxu0 %v1541
    %2695 = vmatmul.mubr.f32.gmra.mrb[0].mxu0 %v1802
    %v2696 = vpop.f32.mrb[0].mxu0
    %v2697 = vadd.f32 0.0, %v2696
    %v2698 = vpop.f32.mrb[0].mxu0
    %2699 = vmatprep.mubr.f32.mxu0 %v1544
    %2700 = vmatmul.mubr.f32.gmra.mrb[0].mxu0 %v1805
    %v2701 = vpop.f32.mrb[0].mxu0
    %v2702 = vadd.f32 0.0, %v2701
    %v2703 = vpop.f32.mrb[0].mxu0
    %2704 = vmatprep.mubr.f32.mxu0 %v1545
    %2705 = vmatmul.mubr.f32.gmra.mrb[0].mxu0 %v1807
    %v2706 = vpop.f32.mrb[0].mxu0
    %v2707 = vadd.f32 0.0, %v2706
    %v2708 = vpop.f32.mrb[0].mxu0
    %2709 = vmatprep.mubr.f32.mxu0 %v1548
    %2710 = vmatmul.mubr.f32.gmra.mrb[0].mxu0 %v1810
    %v2711 = vpop.f32.mrb[0].mxu0
    %v2712 = vadd.f32 0.0, %v2711
    %v2713 = vpop.f32.mrb[0].mxu0
    %2714 = vmatprep.mubr.f32.mxu0 %v1549
    %2715 = vmatmul.mubr.f32.gmra.mrb[0].mxu0 %v1812
    %v2716 = vpop.f32.mrb[0].mxu0
    %v2717 = vadd.f32 0.0, %v2716
    %v2718 = vpop.f32.mrb[0].mxu0
    %2719 = vmatprep.mubr.f32.mxu0 %v1552
    %2720 = vmatmul.mubr.f32.gmra.mrb[0].mxu0 %v1815
    %v2721 = vpop.f32.mrb[0].mxu0
    %v2722 = vadd.f32 0.0, %v2721
    %v2723 = vpop.f32.mrb[0].mxu0
    %2724 = vmatprep.mubr.f32.mxu0 %v1553
    %2725 = vmatmul.mubr.f32.gmra.mrb[0].mxu0 %v1817
    %v2726 = vpop.f32.mrb[0].mxu0
    %v2727 = vadd.f32 0.0, %v2726
    %v2728 = vpop.f32.mrb[0].mxu0
    %2729 = vmatprep.mubr.f32.mxu0 %v1556
    %2730 = vmatmul.mubr.f32.gmra.mrb[0].mxu0 %v1820
    %v2731 = vpop.f32.mrb[0].mxu0
    %v2732 = vadd.f32 0.0, %v2731
    %v2733 = vpop.f32.mrb[0].mxu0
    %2734 = vmatprep.mubr.f32.mxu0 %v1557
    %2735 = vmatmul.mubr.f32.gmra.mrb[0].mxu0 %v1822
    %v2736 = vpop.f32.mrb[0].mxu0
    %v2737 = vadd.f32 0.0, %v2736
    %v2738 = vpop.f32.mrb[0].mxu0
    %2739 = vmatprep.mubr.f32.mxu0 %v1560
    %2740 = vmatmul.mubr.f32.gmra.mrb[0].mxu0 %v1825
    %v2741 = vpop.f32.mrb[0].mxu0
    %v2742 = vadd.f32 0.0, %v2741
    %v2743 = vpop.f32.mrb[0].mxu0
    %2744 = vmatprep.mubr.f32.mxu0 %v1561
    %2745 = vmatmul.mubr.f32.gmra.mrb[0].mxu0 %v1827
    %v2746 = vpop.f32.mrb[0].mxu0
    %v2747 = vadd.f32 0.0, %v2746
    %v2748 = vpop.f32.mrb[0].mxu0
    %2749 = vdwg.mxu0
    %2750 = vmatprep.subr.mxu0 0.0
    %2751 = vmatpush1.msra.mxu0 %v2253
    %2752 = vmatprep.subr.mxu0 0.0
    %2753 = vmatpush1.msra.mxu0 %v2254
    %2754 = vmatprep.subr.mxu0 0.0
    %2755 = vmatpush1.msra.mxu0 %v2255
    %2756 = vmatprep.subr.mxu0 0.0
    %2757 = vmatpush1.msra.mxu0 %v2256
    %2758 = vmatprep.subr.mxu0 0.0
    %2759 = vmatpush1.msra.mxu0 %v2257
    %2760 = vmatprep.subr.mxu0 0.0
    %2761 = vmatpush1.msra.mxu0 %v2258
    %2762 = vmatprep.subr.mxu0 0.0
    %2763 = vmatpush1.msra.mxu0 %v2259
    %2764 = vmatprep.subr.mxu0 0.0
    %2765 = vmatpush1.msra.mxu0 %v2260
    %2766 = vmatprep.subr.mxu0 0.0
    %2767 = vmatpush1.msra.mxu0 %v2261
    %2768 = vmatprep.subr.mxu0 0.0
    %2769 = vmatpush1.msra.mxu0 %v2262
    %2770 = vmatprep.subr.mxu0 0.0
    %2771 = vmatpush1.msra.mxu0 %v2263
    %2772 = vmatprep.subr.mxu0 0.0
    %2773 = vmatpush1.msra.mxu0 %v2264
    %2774 = vmatprep.subr.mxu0 0.0
    %2775 = vmatpush1.msra.mxu0 %v2265
    %2776 = vmatprep.subr.mxu0 0.0
    %2777 = vmatpush1.msra.mxu0 %v2266
    %2778 = vmatprep.subr.mxu0 0.0
    %2779 = vmatpush1.msra.mxu0 %v2267
    %2780 = vmatprep.subr.mxu0 0.0
    %2781 = vmatpush1.msra.mxu0 %v2268
    %2782 = vmatprep.subr.mxu0 0.0
    %2783 = vmatpush1.msra.mxu0 %v2269
    %2784 = vmatprep.subr.mxu0 0.0
    %2785 = vmatpush1.msra.mxu0 %v2270
    %2786 = vmatprep.subr.mxu0 0.0
    %2787 = vmatpush1.msra.mxu0 %v2271
    %2788 = vmatprep.subr.mxu0 0.0
    %2789 = vmatpush1.msra.mxu0 %v2272
    %2790 = vmatprep.subr.mxu0 0.0
    %2791 = vmatpush1.msra.mxu0 %v2273
    %2792 = vmatprep.subr.mxu0 0.0
    %2793 = vmatpush1.msra.mxu0 %v2274
    %2794 = vmatprep.subr.mxu0 0.0
    %2795 = vmatpush1.msra.mxu0 %v2275
    %2796 = vmatprep.subr.mxu0 0.0
    %2797 = vmatpush1.msra.mxu0 %v2276
    %2798 = vmatprep.subr.mxu0 0.0
    %2799 = vmatpush1.msra.mxu0 %v2277
    %2800 = vmatprep.subr.mxu0 0.0
    %2801 = vmatpush1.msra.mxu0 %v2278
    %2802 = vmatprep.subr.mxu0 0.0
    %2803 = vmatpush1.msra.mxu0 %v2279
    %2804 = vmatprep.subr.mxu0 0.0
    %2805 = vmatpush1.msra.mxu0 %v2280
    %2806 = vmatprep.subr.mxu0 0.0
    %2807 = vmatpush1.msra.mxu0 %v2281
    %2808 = vmatprep.subr.mxu0 0.0
    %2809 = vmatpush1.msra.mxu0 %v2282
    %2810 = vmatprep.subr.mxu0 0.0
    %2811 = vmatpush1.msra.mxu0 %v2283
    %2812 = vmatprep.subr.mxu0 0.0
    %2813 = vmatpush1.msra.mxu0 %v2284
    %2814 = vmatprep.mubr.f32.mxu0 %v1675
    %2815 = vmatmul.mubr.f32.gmra.mrb[0].mxu0 %v1927
    %v2816 = vpop.f32.mrb[0].mxu0
    %v2817 = vadd.f32 %v2432, %v2816
    %v2818 = vpop.f32.mrb[0].mxu0
    %2819 = vmatprep.mubr.f32.mxu0 %v1677
    %2820 = vmatmul.mubr.f32.gmra.mrb[0].mxu0 %v1929
    %v2821 = vpop.f32.mrb[0].mxu0
    %v2822 = vadd.f32 %v2437, %v2821
    %v2823 = vpop.f32.mrb[0].mxu0
    %2824 = vmatprep.mubr.f32.mxu0 %v1680
    %2825 = vmatmul.mubr.f32.gmra.mrb[0].mxu0 %v1932
    %v2826 = vpop.f32.mrb[0].mxu0
    %v2827 = vadd.f32 %v2442, %v2826
    %v2828 = vpop.f32.mrb[0].mxu0
    %2829 = vmatprep.mubr.f32.mxu0 %v1682
    %2830 = vmatmul.mubr.f32.gmra.mrb[0].mxu0 %v1934
    %v2831 = vpop.f32.mrb[0].mxu0
    %v2832 = vadd.f32 %v2447, %v2831
    %v2833 = vpop.f32.mrb[0].mxu0
    %2834 = vmatprep.mubr.f32.mxu0 %v1685
    %2835 = vmatmul.mubr.f32.gmra.mrb[0].mxu0 %v1937
    %v2836 = vpop.f32.mrb[0].mxu0
    %v2837 = vadd.f32 %v2452, %v2836
    %v2838 = vpop.f32.mrb[0].mxu0
    %2839 = vmatprep.mubr.f32.mxu0 %v1687
    %2840 = vmatmul.mubr.f32.gmra.mrb[0].mxu0 %v1939
    %v2841 = vpop.f32.mrb[0].mxu0
    %v2842 = vadd.f32 %v2457, %v2841
    %v2843 = vpop.f32.mrb[0].mxu0
    %2844 = vmatprep.mubr.f32.mxu0 %v1690
    %2845 = vmatmul.mubr.f32.gmra.mrb[0].mxu0 %v1942
    %v2846 = vpop.f32.mrb[0].mxu0
    %v2847 = vadd.f32 %v2462, %v2846
    %v2848 = vpop.f32.mrb[0].mxu0
    %2849 = vmatprep.mubr.f32.mxu0 %v1692
    %2850 = vmatmul.mubr.f32.gmra.mrb[0].mxu0 %v1944
    %v2851 = vpop.f32.mrb[0].mxu0
    %v2852 = vadd.f32 %v2467, %v2851
    %v2853 = vpop.f32.mrb[0].mxu0
    %2854 = vmatprep.mubr.f32.mxu0 %v1695
    %2855 = vmatmul.mubr.f32.gmra.mrb[0].mxu0 %v1947
    %v2856 = vpop.f32.mrb[0].mxu0
    %v2857 = vadd.f32 %v2472, %v2856
    %v2858 = vpop.f32.mrb[0].mxu0
    %2859 = vmatprep.mubr.f32.mxu0 %v1697
    %2860 = vmatmul.mubr.f32.gmra.mrb[0].mxu0 %v1949
    %v2861 = vpop.f32.mrb[0].mxu0
    %v2862 = vadd.f32 %v2477, %v2861
    %v2863 = vpop.f32.mrb[0].mxu0
    %2864 = vmatprep.mubr.f32.mxu0 %v1700
    %2865 = vmatmul.mubr.f32.gmra.mrb[0].mxu0 %v1952
    %v2866 = vpop.f32.mrb[0].mxu0
    %v2867 = vadd.f32 %v2482, %v2866
    %v2868 = vpop.f32.mrb[0].mxu0
    %2869 = vmatprep.mubr.f32.mxu0 %v1702
    %2870 = vmatmul.mubr.f32.gmra.mrb[0].mxu0 %v1954
    %v2871 = vpop.f32.mrb[0].mxu0
    %v2872 = vadd.f32 %v2487, %v2871
    %v2873 = vpop.f32.mrb[0].mxu0
    %2874 = vmatprep.mubr.f32.mxu0 %v1705
    %2875 = vmatmul.mubr.f32.gmra.mrb[0].mxu0 %v1957
    %v2876 = vpop.f32.mrb[0].mxu0
    %v2877 = vadd.f32 %v2492, %v2876
    %v2878 = vpop.f32.mrb[0].mxu0
    %2879 = vmatprep.mubr.f32.mxu0 %v1707
    %2880 = vmatmul.mubr.f32.gmra.mrb[0].mxu0 %v1959
    %v2881 = vpop.f32.mrb[0].mxu0
    %v2882 = vadd.f32 %v2497, %v2881
    %v2883 = vpop.f32.mrb[0].mxu0
    %2884 = vmatprep.mubr.f32.mxu0 %v1710
    %2885 = vmatmul.mubr.f32.gmra.mrb[0].mxu0 %v1962
    %v2886 = vpop.f32.mrb[0].mxu0
    %v2887 = vadd.f32 %v2502, %v2886
    %v2888 = vpop.f32.mrb[0].mxu0
    %2889 = vmatprep.mubr.f32.mxu0 %v1712
    %2890 = vmatmul.mubr.f32.gmra.mrb[0].mxu0 %v1964
    %v2891 = vpop.f32.mrb[0].mxu0
    %v2892 = vadd.f32 %v2507, %v2891
    %v2893 = vpop.f32.mrb[0].mxu0
    %2894 = vmatprep.mubr.f32.mxu0 %v1715
    %2895 = vmatmul.mubr.f32.gmra.mrb[0].mxu0 %v1967
    %v2896 = vpop.f32.mrb[0].mxu0
    %v2897 = vadd.f32 %v2512, %v2896
    %v2898 = vpop.f32.mrb[0].mxu0
    %2899 = vmatprep.mubr.f32.mxu0 %v1717
    %2900 = vmatmul.mubr.f32.gmra.mrb[0].mxu0 %v1969
    %v2901 = vpop.f32.mrb[0].mxu0
    %v2902 = vadd.f32 %v2517, %v2901
    %v2903 = vpop.f32.mrb[0].mxu0
    %2904 = vmatprep.mubr.f32.mxu0 %v1720
    %2905 = vmatmul.mubr.f32.gmra.mrb[0].mxu0 %v1972
    %v2906 = vpop.f32.mrb[0].mxu0
    %v2907 = vadd.f32 %v2522, %v2906
    %v2908 = vpop.f32.mrb[0].mxu0
    %2909 = vmatprep.mubr.f32.mxu0 %v1722
    %2910 = vmatmul.mubr.f32.gmra.mrb[0].mxu0 %v1974
    %v2911 = vpop.f32.mrb[0].mxu0
    %v2912 = vadd.f32 %v2527, %v2911
    %v2913 = vpop.f32.mrb[0].mxu0
    %2914 = vmatprep.mubr.f32.mxu0 %v1725
    %2915 = vmatmul.mubr.f32.gmra.mrb[0].mxu0 %v1977
    %v2916 = vpop.f32.mrb[0].mxu0
    %v2917 = vadd.f32 %v2532, %v2916
    %v2918 = vpop.f32.mrb[0].mxu0
    %2919 = vmatprep.mubr.f32.mxu0 %v1727
    %2920 = vmatmul.mubr.f32.gmra.mrb[0].mxu0 %v1979
    %v2921 = vpop.f32.mrb[0].mxu0
    %v2922 = vadd.f32 %v2537, %v2921
    %v2923 = vpop.f32.mrb[0].mxu0
    %2924 = vmatprep.mubr.f32.mxu0 %v1730
    %2925 = vmatmul.mubr.f32.gmra.mrb[0].mxu0 %v1982
    %v2926 = vpop.f32.mrb[0].mxu0
    %v2927 = vadd.f32 %v2542, %v2926
    %v2928 = vpop.f32.mrb[0].mxu0
    %2929 = vmatprep.mubr.f32.mxu0 %v1732
    %2930 = vmatmul.mubr.f32.gmra.mrb[0].mxu0 %v1984
    %v2931 = vpop.f32.mrb[0].mxu0
    %v2932 = vadd.f32 %v2547, %v2931
    %v2933 = vpop.f32.mrb[0].mxu0
    %2934 = vmatprep.mubr.f32.mxu0 %v1735
    %2935 = vmatmul.mubr.f32.gmra.mrb[0].mxu0 %v1987
    %v2936 = vpop.f32.mrb[0].mxu0
    %v2937 = vadd.f32 %v2552, %v2936
    %v2938 = vpop.f32.mrb[0].mxu0
    %2939 = vmatprep.mubr.f32.mxu0 %v1737
    %2940 = vmatmul.mubr.f32.gmra.mrb[0].mxu0 %v1989
    %v2941 = vpop.f32.mrb[0].mxu0
    %v2942 = vadd.f32 %v2557, %v2941
    %v2943 = vpop.f32.mrb[0].mxu0
    %2944 = vmatprep.mubr.f32.mxu0 %v1740
    %2945 = vmatmul.mubr.f32.gmra.mrb[0].mxu0 %v1992
    %v2946 = vpop.f32.mrb[0].mxu0
    %v2947 = vadd.f32 %v2562, %v2946
    %v2948 = vpop.f32.mrb[0].mxu0
    %2949 = vmatprep.mubr.f32.mxu0 %v1742
    %2950 = vmatmul.mubr.f32.gmra.mrb[0].mxu0 %v1994
    %v2951 = vpop.f32.mrb[0].mxu0
    %v2952 = vadd.f32 %v2567, %v2951
    %v2953 = vpop.f32.mrb[0].mxu0
    %2954 = vmatprep.mubr.f32.mxu0 %v1745
    %2955 = vmatmul.mubr.f32.gmra.mrb[0].mxu0 %v1997
    %v2956 = vpop.f32.mrb[0].mxu0
    %v2957 = vadd.f32 %v2572, %v2956
    %v2958 = vpop.f32.mrb[0].mxu0
    %2959 = vmatprep.mubr.f32.mxu0 %v1747
    %2960 = vmatmul.mubr.f32.gmra.mrb[0].mxu0 %v1999
    %v2961 = vpop.f32.mrb[0].mxu0
    %v2962 = vadd.f32 %v2577, %v2961
    %v2963 = vpop.f32.mrb[0].mxu0
    %2964 = vmatprep.mubr.f32.mxu0 %v2157
    %2965 = vmatmul.mubr.f32.gmra.mrb[0].mxu0 %v2002
    %v2966 = vpop.f32.mrb[0].mxu0
    %v2967 = vadd.f32 %v2582, %v2966
    %v2968 = vpop.f32.mrb[0].mxu0
    %2969 = vmatprep.mubr.f32.mxu0 %v2159
    %2970 = vmatmul.mubr.f32.gmra.mrb[0].mxu0 %v2004
    %v2971 = vpop.f32.mrb[0].mxu0
    %v2972 = vadd.f32 %v2587, %v2971
    %v2973 = vpop.f32.mrb[0].mxu0
    %2974 = vmatprep.mubr.f32.mxu0 %v1755
    %2975 = vmatmul.mubr.f32.gmra.mrb[0].mxu0 %v2007
    %v2976 = vpop.f32.mrb[0].mxu0
    %v2977 = vadd.f32 %v2592, %v2976
    %v2978 = vpop.f32.mrb[0].mxu0
    %2979 = vmatprep.mubr.f32.mxu0 %v1757
    %2980 = vmatmul.mubr.f32.gmra.mrb[0].mxu0 %v2009
    %v2981 = vpop.f32.mrb[0].mxu0
    %v2982 = vadd.f32 %v2597, %v2981
    %v2983 = vpop.f32.mrb[0].mxu0
    %2984 = vmatprep.mubr.f32.mxu0 %v1760
    %2985 = vmatmul.mubr.f32.gmra.mrb[0].mxu0 %v2012
    %v2986 = vpop.f32.mrb[0].mxu0
    %v2987 = vadd.f32 %v2602, %v2986
    %v2988 = vpop.f32.mrb[0].mxu0
    %2989 = vmatprep.mubr.f32.mxu0 %v1762
    %2990 = vmatmul.mubr.f32.gmra.mrb[0].mxu0 %v2014
    %v2991 = vpop.f32.mrb[0].mxu0
    %v2992 = vadd.f32 %v2607, %v2991
    %v2993 = vpop.f32.mrb[0].mxu0
    %2994 = vmatprep.mubr.f32.mxu0 %v1765
    %2995 = vmatmul.mubr.f32.gmra.mrb[0].mxu0 %v2017
    %v2996 = vpop.f32.mrb[0].mxu0
    %v2997 = vadd.f32 %v2612, %v2996
    %v2998 = vpop.f32.mrb[0].mxu0
    %2999 = vmatprep.mubr.f32.mxu0 %v1767
    %3000 = vmatmul.mubr.f32.gmra.mrb[0].mxu0 %v2019
    %v3001 = vpop.f32.mrb[0].mxu0
    %v3002 = vadd.f32 %v2617, %v3001
    %v3003 = vpop.f32.mrb[0].mxu0
    %3004 = vmatprep.mubr.f32.mxu0 %v1770
    %3005 = vmatmul.mubr.f32.gmra.mrb[0].mxu0 %v2022
    %v3006 = vpop.f32.mrb[0].mxu0
    %v3007 = vadd.f32 %v2622, %v3006
    %v3008 = vpop.f32.mrb[0].mxu0
    %3009 = vmatprep.mubr.f32.mxu0 %v1772
    %3010 = vmatmul.mubr.f32.gmra.mrb[0].mxu0 %v2024
    %v3011 = vpop.f32.mrb[0].mxu0
    %v3012 = vadd.f32 %v2627, %v3011
    %v3013 = vpop.f32.mrb[0].mxu0
    %3014 = vmatprep.mubr.f32.mxu0 %v1775
    %3015 = vmatmul.mubr.f32.gmra.mrb[0].mxu0 %v2027
    %v3016 = vpop.f32.mrb[0].mxu0
    %v3017 = vadd.f32 %v2632, %v3016
    %v3018 = vpop.f32.mrb[0].mxu0
    %3019 = vmatprep.mubr.f32.mxu0 %v1777
    %3020 = vmatmul.mubr.f32.gmra.mrb[0].mxu0 %v2029
    %v3021 = vpop.f32.mrb[0].mxu0
    %v3022 = vadd.f32 %v2637, %v3021
    %v3023 = vpop.f32.mrb[0].mxu0
    %3024 = vmatprep.mubr.f32.mxu0 %v1780
    %3025 = vmatmul.mubr.f32.gmra.mrb[0].mxu0 %v2032
    %v3026 = vpop.f32.mrb[0].mxu0
    %v3027 = vadd.f32 %v2642, %v3026
    %v3028 = vpop.f32.mrb[0].mxu0
    %3029 = vmatprep.mubr.f32.mxu0 %v1782
    %3030 = vmatmul.mubr.f32.gmra.mrb[0].mxu0 %v2034
    %v3031 = vpop.f32.mrb[0].mxu0
    %v3032 = vadd.f32 %v2647, %v3031
    %v3033 = vpop.f32.mrb[0].mxu0
    %3034 = vmatprep.mubr.f32.mxu0 %v1785
    %3035 = vmatmul.mubr.f32.gmra.mrb[0].mxu0 %v2037
    %v3036 = vpop.f32.mrb[0].mxu0
    %v3037 = vadd.f32 %v2652, %v3036
    %v3038 = vpop.f32.mrb[0].mxu0
    %3039 = vmatprep.mubr.f32.mxu0 %v1787
    %3040 = vmatmul.mubr.f32.gmra.mrb[0].mxu0 %v2039
    %v3041 = vpop.f32.mrb[0].mxu0
    %v3042 = vadd.f32 %v2657, %v3041
    %v3043 = vpop.f32.mrb[0].mxu0
    %3044 = vmatprep.mubr.f32.mxu0 %v1790
    %3045 = vmatmul.mubr.f32.gmra.mrb[0].mxu0 %v2042
    %v3046 = vpop.f32.mrb[0].mxu0
    %v3047 = vadd.f32 %v2662, %v3046
    %v3048 = vpop.f32.mrb[0].mxu0
    %3049 = vmatprep.mubr.f32.mxu0 %v1792
    %3050 = vmatmul.mubr.f32.gmra.mrb[0].mxu0 %v2044
    %v3051 = vpop.f32.mrb[0].mxu0
    %v3052 = vadd.f32 %v2667, %v3051
    %v3053 = vpop.f32.mrb[0].mxu0
    %3054 = vmatprep.mubr.f32.mxu0 %v1795
    %3055 = vmatmul.mubr.f32.gmra.mrb[0].mxu0 %v2047
    %v3056 = vpop.f32.mrb[0].mxu0
    %v3057 = vadd.f32 %v2672, %v3056
    %v3058 = vpop.f32.mrb[0].mxu0
    %3059 = vmatprep.mubr.f32.mxu0 %v1797
    %3060 = vmatmul.mubr.f32.gmra.mrb[0].mxu0 %v2049
    %v3061 = vpop.f32.mrb[0].mxu0
    %v3062 = vadd.f32 %v2677, %v3061
    %v3063 = vpop.f32.mrb[0].mxu0
    %3064 = vmatprep.mubr.f32.mxu0 %v1800
    %3065 = vmatmul.mubr.f32.gmra.mrb[0].mxu0 %v2052
    %v3066 = vpop.f32.mrb[0].mxu0
    %v3067 = vadd.f32 %v2682, %v3066
    %v3068 = vpop.f32.mrb[0].mxu0
    %3069 = vmatprep.mubr.f32.mxu0 %v1802
    %3070 = vmatmul.mubr.f32.gmra.mrb[0].mxu0 %v2054
    %v3071 = vpop.f32.mrb[0].mxu0
    %v3072 = vadd.f32 %v2687, %v3071
    %v3073 = vpop.f32.mrb[0].mxu0
    %3074 = vmatprep.mubr.f32.mxu0 %v1805
    %3075 = vmatmul.mubr.f32.gmra.mrb[0].mxu0 %v2057
    %v3076 = vpop.f32.mrb[0].mxu0
    %v3077 = vadd.f32 %v2692, %v3076
    %v3078 = vpop.f32.mrb[0].mxu0
    %3079 = vmatprep.mubr.f32.mxu0 %v1807
    %3080 = vmatmul.mubr.f32.gmra.mrb[0].mxu0 %v2059
    %v3081 = vpop.f32.mrb[0].mxu0
    %v3082 = vadd.f32 %v2697, %v3081
    %v3083 = vpop.f32.mrb[0].mxu0
    %3084 = vmatprep.mubr.f32.mxu0 %v1810
    %3085 = vmatmul.mubr.f32.gmra.mrb[0].mxu0 %v2062
    %v3086 = vpop.f32.mrb[0].mxu0
    %v3087 = vadd.f32 %v2702, %v3086
    %v3088 = vpop.f32.mrb[0].mxu0
    %3089 = vmatprep.mubr.f32.mxu0 %v1812
    %3090 = vmatmul.mubr.f32.gmra.mrb[0].mxu0 %v2064
    %v3091 = vpop.f32.mrb[0].mxu0
    %v3092 = vadd.f32 %v2707, %v3091
    %v3093 = vpop.f32.mrb[0].mxu0
    %3094 = vmatprep.mubr.f32.mxu0 %v1815
    %3095 = vmatmul.mubr.f32.gmra.mrb[0].mxu0 %v2067
    %v3096 = vpop.f32.mrb[0].mxu0
    %v3097 = vadd.f32 %v2712, %v3096
    %v3098 = vpop.f32.mrb[0].mxu0
    %3099 = vmatprep.mubr.f32.mxu0 %v1817
    %3100 = vmatmul.mubr.f32.gmra.mrb[0].mxu0 %v2069
    %v3101 = vpop.f32.mrb[0].mxu0
    %v3102 = vadd.f32 %v2717, %v3101
    %v3103 = vpop.f32.mrb[0].mxu0
    %3104 = vmatprep.mubr.f32.mxu0 %v1820
    %3105 = vmatmul.mubr.f32.gmra.mrb[0].mxu0 %v2072
    %v3106 = vpop.f32.mrb[0].mxu0
    %v3107 = vadd.f32 %v2722, %v3106
    %v3108 = vpop.f32.mrb[0].mxu0
    %3109 = vmatprep.mubr.f32.mxu0 %v1822
    %3110 = vmatmul.mubr.f32.gmra.mrb[0].mxu0 %v2074
    %v3111 = vpop.f32.mrb[0].mxu0
    %v3112 = vadd.f32 %v2727, %v3111
    %v3113 = vpop.f32.mrb[0].mxu0
    %3114 = vmatprep.mubr.f32.mxu0 %v1825
    %3115 = vmatmul.mubr.f32.gmra.mrb[0].mxu0 %v2077
    %v3116 = vpop.f32.mrb[0].mxu0
    %v3117 = vadd.f32 %v2732, %v3116
    %v3118 = vpop.f32.mrb[0].mxu0
    %3119 = vmatprep.mubr.f32.mxu0 %v1827
    %3120 = vmatmul.mubr.f32.gmra.mrb[0].mxu0 %v2079
    %v3121 = vpop.f32.mrb[0].mxu0
    %v3122 = vadd.f32 %v2737, %v3121
    %v3123 = vpop.f32.mrb[0].mxu0
    %3124 = vmatprep.mubr.f32.mxu0 %v2162
    %3125 = vmatmul.mubr.f32.gmra.mrb[0].mxu0 %v2082
    %v3126 = vpop.f32.mrb[0].mxu0
    %v3127 = vadd.f32 %v2742, %v3126
    %v3128 = vpop.f32.mrb[0].mxu0
    %3129 = vmatprep.mubr.f32.mxu0 %v2164
    %3130 = vmatmul.mubr.f32.gmra.mrb[0].mxu0 %v2084
    %v3131 = vpop.f32.mrb[0].mxu0
    %v3132 = vadd.f32 %v2747, %v3131
    %v3133 = vpop.f32.mrb[0].mxu0
    %3134 = vdwg.mxu0
    %3135 = vmatprep.subr.mxu0 0.0
    %3136 = vmatpush1.msra.mxu0 %v2285
    %3137 = vmatprep.subr.mxu0 0.0
    %3138 = vmatpush1.msra.mxu0 %v2286
    %3139 = vmatprep.subr.mxu0 0.0
    %3140 = vmatpush1.msra.mxu0 %v2287
    %3141 = vmatprep.subr.mxu0 0.0
    %3142 = vmatpush1.msra.mxu0 %v2288
    %3143 = vmatprep.subr.mxu0 0.0
    %3144 = vmatpush1.msra.mxu0 %v2289
    %3145 = vmatprep.subr.mxu0 0.0
    %3146 = vmatpush1.msra.mxu0 %v2290
    %3147 = vmatprep.subr.mxu0 0.0
    %3148 = vmatpush1.msra.mxu0 %v2291
    %3149 = vmatprep.subr.mxu0 0.0
    %3150 = vmatpush1.msra.mxu0 %v2292
    %3151 = vmatprep.subr.mxu0 0.0
    %3152 = vmatpush1.msra.mxu0 %v2293
    %3153 = vmatprep.subr.mxu0 0.0
    %3154 = vmatpush1.msra.mxu0 %v2294
    %3155 = vmatprep.subr.mxu0 0.0
    %3156 = vmatpush1.msra.mxu0 %v2295
    %3157 = vmatprep.subr.mxu0 0.0
    %3158 = vmatpush1.msra.mxu0 %v2296
    %3159 = vmatprep.subr.mxu0 0.0
    %3160 = vmatpush1.msra.mxu0 %v2297
    %3161 = vmatprep.subr.mxu0 0.0
    %3162 = vmatpush1.msra.mxu0 %v2298
    %3163 = vmatprep.subr.mxu0 0.0
    %3164 = vmatpush1.msra.mxu0 %v2299
    %3165 = vmatprep.subr.mxu0 0.0
    %3166 = vmatpush1.msra.mxu0 %v2300
    %3167 = vmatprep.subr.mxu0 0.0
    %3168 = vmatpush1.msra.mxu0 %v2301
    %3169 = vmatprep.subr.mxu0 0.0
    %3170 = vmatpush1.msra.mxu0 %v2302
    %3171 = vmatprep.subr.mxu0 0.0
    %3172 = vmatpush1.msra.mxu0 %v2303
    %3173 = vmatprep.subr.mxu0 0.0
    %3174 = vmatpush1.msra.mxu0 %v2304
    %3175 = vmatprep.subr.mxu0 0.0
    %3176 = vmatpush1.msra.mxu0 %v2305
    %3177 = vmatprep.subr.mxu0 0.0
    %3178 = vmatpush1.msra.mxu0 %v2306
    %3179 = vmatprep.subr.mxu0 0.0
    %3180 = vmatpush1.msra.mxu0 %v2307
    %3181 = vmatprep.subr.mxu0 0.0
    %3182 = vmatpush1.msra.mxu0 %v2308
    %3183 = vmatprep.subr.mxu0 0.0
    %3184 = vmatpush1.msra.mxu0 %v2309
    %3185 = vmatprep.subr.mxu0 0.0
    %3186 = vmatpush1.msra.mxu0 %v2310
    %3187 = vmatprep.subr.mxu0 0.0
    %3188 = vmatpush1.msra.mxu0 %v2311
    %3189 = vmatprep.subr.mxu0 0.0
    %3190 = vmatpush1.msra.mxu0 %v2312
    %3191 = vmatprep.subr.mxu0 0.0
    %3192 = vmatpush1.msra.mxu0 %v2313
    %3193 = vmatprep.subr.mxu0 0.0
    %3194 = vmatpush1.msra.mxu0 %v2314
    %3195 = vmatprep.subr.mxu0 0.0
    %3196 = vmatpush1.msra.mxu0 %v2315
    %3197 = vmatprep.subr.mxu0 0.0
    %3198 = vmatpush1.msra.mxu0 %v2316
    %3199 = vmatprep.mubr.f32.mxu0 %v1932
    %3200 = vmatmul.mubr.f32.gmra.mrb[0].mxu0 %v1432
    %v3201 = vpop.f32.mrb[0].mxu0
    %v3202 = vadd.f32 %v2817, %v3201
    %v3203 = vpop.f32.mrb[0].mxu0
    %3204 = vmatprep.mubr.f32.mxu0 %v1934
    %3205 = vmatmul.mubr.f32.gmra.mrb[0].mxu0 %v1433
    %v3206 = vpop.f32.mrb[0].mxu0
    %v3207 = vadd.f32 %v2822, %v3206
    %v3208 = vpop.f32.mrb[0].mxu0
    %3209 = vmatprep.mubr.f32.mxu0 %v1937
    %3210 = vmatmul.mubr.f32.gmra.mrb[0].mxu0 %v1436
    %v3211 = vpop.f32.mrb[0].mxu0
    %v3212 = vadd.f32 %v2827, %v3211
    %v3213 = vpop.f32.mrb[0].mxu0
    %3214 = vmatprep.mubr.f32.mxu0 %v1939
    %3215 = vmatmul.mubr.f32.gmra.mrb[0].mxu0 %v1437
    %v3216 = vpop.f32.mrb[0].mxu0
    %v3217 = vadd.f32 %v2832, %v3216
    %v3218 = vpop.f32.mrb[0].mxu0
    %3219 = vmatprep.mubr.f32.mxu0 %v1942
    %3220 = vmatmul.mubr.f32.gmra.mrb[0].mxu0 %v1440
    %v3221 = vpop.f32.mrb[0].mxu0
    %v3222 = vadd.f32 %v2837, %v3221
    %v3223 = vpop.f32.mrb[0].mxu0
    %3224 = vmatprep.mubr.f32.mxu0 %v1944
    %3225 = vmatmul.mubr.f32.gmra.mrb[0].mxu0 %v1441
    %v3226 = vpop.f32.mrb[0].mxu0
    %v3227 = vadd.f32 %v2842, %v3226
    %v3228 = vpop.f32.mrb[0].mxu0
    %3229 = vmatprep.mubr.f32.mxu0 %v1947
    %3230 = vmatmul.mubr.f32.gmra.mrb[0].mxu0 %v1444
    %v3231 = vpop.f32.mrb[0].mxu0
    %v3232 = vadd.f32 %v2847, %v3231
    %v3233 = vpop.f32.mrb[0].mxu0
    %3234 = vmatprep.mubr.f32.mxu0 %v1949
    %3235 = vmatmul.mubr.f32.gmra.mrb[0].mxu0 %v1445
    %v3236 = vpop.f32.mrb[0].mxu0
    %v3237 = vadd.f32 %v2852, %v3236
    %v3238 = vpop.f32.mrb[0].mxu0
    %3239 = vmatprep.mubr.f32.mxu0 %v1952
    %3240 = vmatmul.mubr.f32.gmra.mrb[0].mxu0 %v1448
    %v3241 = vpop.f32.mrb[0].mxu0
    %v3242 = vadd.f32 %v2857, %v3241
    %v3243 = vpop.f32.mrb[0].mxu0
    %3244 = vmatprep.mubr.f32.mxu0 %v1954
    %3245 = vmatmul.mubr.f32.gmra.mrb[0].mxu0 %v1449
    %v3246 = vpop.f32.mrb[0].mxu0
    %v3247 = vadd.f32 %v2862, %v3246
    %v3248 = vpop.f32.mrb[0].mxu0
    %3249 = vmatprep.mubr.f32.mxu0 %v1957
    %3250 = vmatmul.mubr.f32.gmra.mrb[0].mxu0 %v1452
    %v3251 = vpop.f32.mrb[0].mxu0
    %v3252 = vadd.f32 %v2867, %v3251
    %v3253 = vpop.f32.mrb[0].mxu0
    %3254 = vmatprep.mubr.f32.mxu0 %v1959
    %3255 = vmatmul.mubr.f32.gmra.mrb[0].mxu0 %v1453
    %v3256 = vpop.f32.mrb[0].mxu0
    %v3257 = vadd.f32 %v2872, %v3256
    %v3258 = vpop.f32.mrb[0].mxu0
    %3259 = vmatprep.mubr.f32.mxu0 %v1962
    %3260 = vmatmul.mubr.f32.gmra.mrb[0].mxu0 %v1456
    %v3261 = vpop.f32.mrb[0].mxu0
    %v3262 = vadd.f32 %v2877, %v3261
    %v3263 = vpop.f32.mrb[0].mxu0
    %3264 = vmatprep.mubr.f32.mxu0 %v1964
    %3265 = vmatmul.mubr.f32.gmra.mrb[0].mxu0 %v1457
    %v3266 = vpop.f32.mrb[0].mxu0
    %v3267 = vadd.f32 %v2882, %v3266
    %v3268 = vpop.f32.mrb[0].mxu0
    %3269 = vmatprep.mubr.f32.mxu0 %v1967
    %3270 = vmatmul.mubr.f32.gmra.mrb[0].mxu0 %v1460
    %v3271 = vpop.f32.mrb[0].mxu0
    %v3272 = vadd.f32 %v2887, %v3271
    %v3273 = vpop.f32.mrb[0].mxu0
    %3274 = vmatprep.mubr.f32.mxu0 %v1969
    %3275 = vmatmul.mubr.f32.gmra.mrb[0].mxu0 %v1461
    %v3276 = vpop.f32.mrb[0].mxu0
    %v3277 = vadd.f32 %v2892, %v3276
    %v3278 = vpop.f32.mrb[0].mxu0
    %3279 = vmatprep.mubr.f32.mxu0 %v1972
    %3280 = vmatmul.mubr.f32.gmra.mrb[0].mxu0 %v1464
    %v3281 = vpop.f32.mrb[0].mxu0
    %v3282 = vadd.f32 %v2897, %v3281
    %v3283 = vpop.f32.mrb[0].mxu0
    %3284 = vmatprep.mubr.f32.mxu0 %v1974
    %3285 = vmatmul.mubr.f32.gmra.mrb[0].mxu0 %v1465
    %v3286 = vpop.f32.mrb[0].mxu0
    %v3287 = vadd.f32 %v2902, %v3286
    %v3288 = vpop.f32.mrb[0].mxu0
    %3289 = vmatprep.mubr.f32.mxu0 %v1977
    %3290 = vmatmul.mubr.f32.gmra.mrb[0].mxu0 %v1468
    %v3291 = vpop.f32.mrb[0].mxu0
    %v3292 = vadd.f32 %v2907, %v3291
    %v3293 = vpop.f32.mrb[0].mxu0
    %3294 = vmatprep.mubr.f32.mxu0 %v1979
    %3295 = vmatmul.mubr.f32.gmra.mrb[0].mxu0 %v1469
    %v3296 = vpop.f32.mrb[0].mxu0
    %v3297 = vadd.f32 %v2912, %v3296
    %v3298 = vpop.f32.mrb[0].mxu0
    %3299 = vmatprep.mubr.f32.mxu0 %v1982
    %3300 = vmatmul.mubr.f32.gmra.mrb[0].mxu0 %v1472
    %v3301 = vpop.f32.mrb[0].mxu0
    %v3302 = vadd.f32 %v2917, %v3301
    %v3303 = vpop.f32.mrb[0].mxu0
    %3304 = vmatprep.mubr.f32.mxu0 %v1984
    %3305 = vmatmul.mubr.f32.gmra.mrb[0].mxu0 %v1473
    %v3306 = vpop.f32.mrb[0].mxu0
    %v3307 = vadd.f32 %v2922, %v3306
    %v3308 = vpop.f32.mrb[0].mxu0
    %3309 = vmatprep.mubr.f32.mxu0 %v1987
    %3310 = vmatmul.mubr.f32.gmra.mrb[0].mxu0 %v1476
    %v3311 = vpop.f32.mrb[0].mxu0
    %v3312 = vadd.f32 %v2927, %v3311
    %v3313 = vpop.f32.mrb[0].mxu0
    %3314 = vmatprep.mubr.f32.mxu0 %v1989
    %3315 = vmatmul.mubr.f32.gmra.mrb[0].mxu0 %v1477
    %v3316 = vpop.f32.mrb[0].mxu0
    %v3317 = vadd.f32 %v2932, %v3316
    %v3318 = vpop.f32.mrb[0].mxu0
    %3319 = vmatprep.mubr.f32.mxu0 %v1992
    %3320 = vmatmul.mubr.f32.gmra.mrb[0].mxu0 %v1480
    %v3321 = vpop.f32.mrb[0].mxu0
    %v3322 = vadd.f32 %v2937, %v3321
    %v3323 = vpop.f32.mrb[0].mxu0
    %3324 = vmatprep.mubr.f32.mxu0 %v1994
    %3325 = vmatmul.mubr.f32.gmra.mrb[0].mxu0 %v1481
    %v3326 = vpop.f32.mrb[0].mxu0
    %v3327 = vadd.f32 %v2942, %v3326
    %v3328 = vpop.f32.mrb[0].mxu0
    %3329 = vmatprep.mubr.f32.mxu0 %v1997
    %3330 = vmatmul.mubr.f32.gmra.mrb[0].mxu0 %v1484
    %v3331 = vpop.f32.mrb[0].mxu0
    %v3332 = vadd.f32 %v2947, %v3331
    %v3333 = vpop.f32.mrb[0].mxu0
    %3334 = vmatprep.mubr.f32.mxu0 %v1999
    %3335 = vmatmul.mubr.f32.gmra.mrb[0].mxu0 %v1485
    %v3336 = vpop.f32.mrb[0].mxu0
    %v3337 = vadd.f32 %v2952, %v3336
    %v3338 = vpop.f32.mrb[0].mxu0
    %3339 = vmatprep.mubr.f32.mxu0 %v2002
    %3340 = vmatmul.mubr.f32.gmra.mrb[0].mxu0 %v1488
    %v3341 = vpop.f32.mrb[0].mxu0
    %v3342 = vadd.f32 %v2957, %v3341
    %v3343 = vpop.f32.mrb[0].mxu0
    %3344 = vmatprep.mubr.f32.mxu0 %v2004
    %3345 = vmatmul.mubr.f32.gmra.mrb[0].mxu0 %v1489
    %v3346 = vpop.f32.mrb[0].mxu0
    %v3347 = vadd.f32 %v2962, %v3346
    %v3348 = vpop.f32.mrb[0].mxu0
    %3349 = vmatprep.mubr.f32.mxu0 %v2173
    %3350 = vmatmul.mubr.f32.gmra.mrb[0].mxu0 %v1492
    %v3351 = vpop.f32.mrb[0].mxu0
    %v3352 = vadd.f32 %v2967, %v3351
    %v3353 = vpop.f32.mrb[0].mxu0
    %3354 = vmatprep.mubr.f32.mxu0 %v2175
    %3355 = vmatmul.mubr.f32.gmra.mrb[0].mxu0 %v1493
    %v3356 = vpop.f32.mrb[0].mxu0
    %v3357 = vadd.f32 %v2972, %v3356
    %v3358 = vpop.f32.mrb[0].mxu0
    %3359 = vmatprep.mubr.f32.mxu0 %v2012
    %3360 = vmatmul.mubr.f32.gmra.mrb[0].mxu0 %v1504
    %v3361 = vpop.f32.mrb[0].mxu0
    %v3362 = vadd.f32 %v2977, %v3361
    %v3363 = vpop.f32.mrb[0].mxu0
    %3364 = vmatprep.mubr.f32.mxu0 %v2014
    %3365 = vmatmul.mubr.f32.gmra.mrb[0].mxu0 %v1505
    %v3366 = vpop.f32.mrb[0].mxu0
    %v3367 = vadd.f32 %v2982, %v3366
    %v3368 = vpop.f32.mrb[0].mxu0
    %3369 = vmatprep.mubr.f32.mxu0 %v2017
    %3370 = vmatmul.mubr.f32.gmra.mrb[0].mxu0 %v1508
    %v3371 = vpop.f32.mrb[0].mxu0
    %v3372 = vadd.f32 %v2987, %v3371
    %v3373 = vpop.f32.mrb[0].mxu0
    %3374 = vmatprep.mubr.f32.mxu0 %v2019
    %3375 = vmatmul.mubr.f32.gmra.mrb[0].mxu0 %v1509
    %v3376 = vpop.f32.mrb[0].mxu0
    %v3377 = vadd.f32 %v2992, %v3376
    %v3378 = vpop.f32.mrb[0].mxu0
    %3379 = vmatprep.mubr.f32.mxu0 %v2022
    %3380 = vmatmul.mubr.f32.gmra.mrb[0].mxu0 %v1512
    %v3381 = vpop.f32.mrb[0].mxu0
    %v3382 = vadd.f32 %v2997, %v3381
    %v3383 = vpop.f32.mrb[0].mxu0
    %3384 = vmatprep.mubr.f32.mxu0 %v2024
    %3385 = vmatmul.mubr.f32.gmra.mrb[0].mxu0 %v1513
    %v3386 = vpop.f32.mrb[0].mxu0
    %v3387 = vadd.f32 %v3002, %v3386
    %v3388 = vpop.f32.mrb[0].mxu0
    %3389 = vmatprep.mubr.f32.mxu0 %v2027
    %3390 = vmatmul.mubr.f32.gmra.mrb[0].mxu0 %v1516
    %v3391 = vpop.f32.mrb[0].mxu0
    %v3392 = vadd.f32 %v3007, %v3391
    %v3393 = vpop.f32.mrb[0].mxu0
    %3394 = vmatprep.mubr.f32.mxu0 %v2029
    %3395 = vmatmul.mubr.f32.gmra.mrb[0].mxu0 %v1517
    %v3396 = vpop.f32.mrb[0].mxu0
    %v3397 = vadd.f32 %v3012, %v3396
    %v3398 = vpop.f32.mrb[0].mxu0
    %3399 = vmatprep.mubr.f32.mxu0 %v2032
    %3400 = vmatmul.mubr.f32.gmra.mrb[0].mxu0 %v1520
    %v3401 = vpop.f32.mrb[0].mxu0
    %v3402 = vadd.f32 %v3017, %v3401
    %v3403 = vpop.f32.mrb[0].mxu0
    %3404 = vmatprep.mubr.f32.mxu0 %v2034
    %3405 = vmatmul.mubr.f32.gmra.mrb[0].mxu0 %v1521
    %v3406 = vpop.f32.mrb[0].mxu0
    %v3407 = vadd.f32 %v3022, %v3406
    %v3408 = vpop.f32.mrb[0].mxu0
    %3409 = vmatprep.mubr.f32.mxu0 %v2037
    %3410 = vmatmul.mubr.f32.gmra.mrb[0].mxu0 %v1524
    %v3411 = vpop.f32.mrb[0].mxu0
    %v3412 = vadd.f32 %v3027, %v3411
    %v3413 = vpop.f32.mrb[0].mxu0
    %3414 = vmatprep.mubr.f32.mxu0 %v2039
    %3415 = vmatmul.mubr.f32.gmra.mrb[0].mxu0 %v1525
    %v3416 = vpop.f32.mrb[0].mxu0
    %v3417 = vadd.f32 %v3032, %v3416
    %v3418 = vpop.f32.mrb[0].mxu0
    %3419 = vmatprep.mubr.f32.mxu0 %v2042
    %3420 = vmatmul.mubr.f32.gmra.mrb[0].mxu0 %v1528
    %v3421 = vpop.f32.mrb[0].mxu0
    %v3422 = vadd.f32 %v3037, %v3421
    %v3423 = vpop.f32.mrb[0].mxu0
    %3424 = vmatprep.mubr.f32.mxu0 %v2044
    %3425 = vmatmul.mubr.f32.gmra.mrb[0].mxu0 %v1529
    %v3426 = vpop.f32.mrb[0].mxu0
    %v3427 = vadd.f32 %v3042, %v3426
    %v3428 = vpop.f32.mrb[0].mxu0
    %3429 = vmatprep.mubr.f32.mxu0 %v2047
    %3430 = vmatmul.mubr.f32.gmra.mrb[0].mxu0 %v1532
    %v3431 = vpop.f32.mrb[0].mxu0
    %v3432 = vadd.f32 %v3047, %v3431
    %v3433 = vpop.f32.mrb[0].mxu0
    %3434 = vmatprep.mubr.f32.mxu0 %v2049
    %3435 = vmatmul.mubr.f32.gmra.mrb[0].mxu0 %v1533
    %v3436 = vpop.f32.mrb[0].mxu0
    %v3437 = vadd.f32 %v3052, %v3436
    %v3438 = vpop.f32.mrb[0].mxu0
    %3439 = vmatprep.mubr.f32.mxu0 %v2052
    %3440 = vmatmul.mubr.f32.gmra.mrb[0].mxu0 %v1536
    %v3441 = vpop.f32.mrb[0].mxu0
    %v3442 = vadd.f32 %v3057, %v3441
    %v3443 = vpop.f32.mrb[0].mxu0
    %3444 = vmatprep.mubr.f32.mxu0 %v2054
    %3445 = vmatmul.mubr.f32.gmra.mrb[0].mxu0 %v1537
    %v3446 = vpop.f32.mrb[0].mxu0
    %v3447 = vadd.f32 %v3062, %v3446
    %v3448 = vpop.f32.mrb[0].mxu0
    %3449 = vmatprep.mubr.f32.mxu0 %v2057
    %3450 = vmatmul.mubr.f32.gmra.mrb[0].mxu0 %v1540
    %v3451 = vpop.f32.mrb[0].mxu0
    %v3452 = vadd.f32 %v3067, %v3451
    %v3453 = vpop.f32.mrb[0].mxu0
    %3454 = vmatprep.mubr.f32.mxu0 %v2059
    %3455 = vmatmul.mubr.f32.gmra.mrb[0].mxu0 %v1541
    %v3456 = vpop.f32.mrb[0].mxu0
    %v3457 = vadd.f32 %v3072, %v3456
    %v3458 = vpop.f32.mrb[0].mxu0
    %3459 = vmatprep.mubr.f32.mxu0 %v2062
    %3460 = vmatmul.mubr.f32.gmra.mrb[0].mxu0 %v1544
    %v3461 = vpop.f32.mrb[0].mxu0
    %v3462 = vadd.f32 %v3077, %v3461
    %v3463 = vpop.f32.mrb[0].mxu0
    %3464 = vmatprep.mubr.f32.mxu0 %v2064
    %3465 = vmatmul.mubr.f32.gmra.mrb[0].mxu0 %v1545
    %v3466 = vpop.f32.mrb[0].mxu0
    %v3467 = vadd.f32 %v3082, %v3466
    %v3468 = vpop.f32.mrb[0].mxu0
    %3469 = vmatprep.mubr.f32.mxu0 %v2067
    %3470 = vmatmul.mubr.f32.gmra.mrb[0].mxu0 %v1548
    %v3471 = vpop.f32.mrb[0].mxu0
    %v3472 = vadd.f32 %v3087, %v3471
    %v3473 = vpop.f32.mrb[0].mxu0
    %3474 = vmatprep.mubr.f32.mxu0 %v2069
    %3475 = vmatmul.mubr.f32.gmra.mrb[0].mxu0 %v1549
    %v3476 = vpop.f32.mrb[0].mxu0
    %v3477 = vadd.f32 %v3092, %v3476
    %v3478 = vpop.f32.mrb[0].mxu0
    %3479 = vmatprep.mubr.f32.mxu0 %v2072
    %3480 = vmatmul.mubr.f32.gmra.mrb[0].mxu0 %v1552
    %v3481 = vpop.f32.mrb[0].mxu0
    %v3482 = vadd.f32 %v3097, %v3481
    %v3483 = vpop.f32.mrb[0].mxu0
    %3484 = vmatprep.mubr.f32.mxu0 %v2074
    %3485 = vmatmul.mubr.f32.gmra.mrb[0].mxu0 %v1553
    %v3486 = vpop.f32.mrb[0].mxu0
    %v3487 = vadd.f32 %v3102, %v3486
    %v3488 = vpop.f32.mrb[0].mxu0
    %3489 = vmatprep.mubr.f32.mxu0 %v2077
    %3490 = vmatmul.mubr.f32.gmra.mrb[0].mxu0 %v1556
    %v3491 = vpop.f32.mrb[0].mxu0
    %v3492 = vadd.f32 %v3107, %v3491
    %v3493 = vpop.f32.mrb[0].mxu0
    %3494 = vmatprep.mubr.f32.mxu0 %v2079
    %3495 = vmatmul.mubr.f32.gmra.mrb[0].mxu0 %v1557
    %v3496 = vpop.f32.mrb[0].mxu0
    %v3497 = vadd.f32 %v3112, %v3496
    %v3498 = vpop.f32.mrb[0].mxu0
    %3499 = vmatprep.mubr.f32.mxu0 %v2082
    %3500 = vmatmul.mubr.f32.gmra.mrb[0].mxu0 %v1560
    %v3501 = vpop.f32.mrb[0].mxu0
    %v3502 = vadd.f32 %v3117, %v3501
    %v3503 = vpop.f32.mrb[0].mxu0
    %3504 = vmatprep.mubr.f32.mxu0 %v2084
    %3505 = vmatmul.mubr.f32.gmra.mrb[0].mxu0 %v1561
    %v3506 = vpop.f32.mrb[0].mxu0
    %v3507 = vadd.f32 %v3122, %v3506
    %v3508 = vpop.f32.mrb[0].mxu0
    %3509 = vmatprep.mubr.f32.mxu0 %v2178
    %3510 = vmatmul.mubr.f32.gmra.mrb[0].mxu0 %v1564
    %v3511 = vpop.f32.mrb[0].mxu0
    %v3512 = vadd.f32 %v3127, %v3511
    %v3513 = vpop.f32.mrb[0].mxu0
    %3514 = vmatprep.mubr.f32.mxu0 %v2180
    %3515 = vmatmul.mubr.f32.gmra.mrb[0].mxu0 %v1565
    %v3516 = vpop.f32.mrb[0].mxu0
    %v3517 = vadd.f32 %v3132, %v3516
    %v3518 = vpop.f32.mrb[0].mxu0
    %3519 = vdwg.mxu0
    %3520 = vmatprep.subr.mxu0 0.0
    %3521 = vmatpush1.msra.mxu0 %v2317
    %3522 = vmatprep.subr.mxu0 0.0
    %3523 = vmatpush1.msra.mxu0 %v2318
    %3524 = vmatprep.subr.mxu0 0.0
    %3525 = vmatpush1.msra.mxu0 %v2319
    %3526 = vmatprep.subr.mxu0 0.0
    %3527 = vmatpush1.msra.mxu0 %v2320
    %3528 = vmatprep.subr.mxu0 0.0
    %3529 = vmatpush1.msra.mxu0 %v2321
    %3530 = vmatprep.subr.mxu0 0.0
    %3531 = vmatpush1.msra.mxu0 %v2322
    %3532 = vmatprep.subr.mxu0 0.0
    %3533 = vmatpush1.msra.mxu0 %v2323
    %3534 = vmatprep.subr.mxu0 0.0
    %3535 = vmatpush1.msra.mxu0 %v2324
    %3536 = vmatprep.subr.mxu0 0.0
    %3537 = vmatpush1.msra.mxu0 %v2325
    %3538 = vmatprep.subr.mxu0 0.0
    %3539 = vmatpush1.msra.mxu0 %v2326
    %3540 = vmatprep.subr.mxu0 0.0
    %3541 = vmatpush1.msra.mxu0 %v2327
    %3542 = vmatprep.subr.mxu0 0.0
    %3543 = vmatpush1.msra.mxu0 %v2328
    %3544 = vmatprep.subr.mxu0 0.0
    %3545 = vmatpush1.msra.mxu0 %v2329
    %3546 = vmatprep.subr.mxu0 0.0
    %3547 = vmatpush1.msra.mxu0 %v2330
    %3548 = vmatprep.subr.mxu0 0.0
    %3549 = vmatpush1.msra.mxu0 %v2331
    %3550 = vmatprep.subr.mxu0 0.0
    %3551 = vmatpush1.msra.mxu0 %v2332
    %3552 = vmatprep.subr.mxu0 0.0
    %3553 = vmatpush1.msra.mxu0 %v2333
    %3554 = vmatprep.subr.mxu0 0.0
    %3555 = vmatpush1.msra.mxu0 %v2334
    %3556 = vmatprep.subr.mxu0 0.0
    %3557 = vmatpush1.msra.mxu0 %v2335
    %3558 = vmatprep.subr.mxu0 0.0
    %3559 = vmatpush1.msra.mxu0 %v2336
    %3560 = vmatprep.subr.mxu0 0.0
    %3561 = vmatpush1.msra.mxu0 %v2337
    %3562 = vmatprep.subr.mxu0 0.0
    %3563 = vmatpush1.msra.mxu0 %v2338
    %3564 = vmatprep.subr.mxu0 0.0
    %3565 = vmatpush1.msra.mxu0 %v2339
    %3566 = vmatprep.subr.mxu0 0.0
    %3567 = vmatpush1.msra.mxu0 %v2340
    %3568 = vmatprep.subr.mxu0 0.0
    %3569 = vmatpush1.msra.mxu0 %v2341
    %3570 = vmatprep.subr.mxu0 0.0
    %3571 = vmatpush1.msra.mxu0 %v2342
    %3572 = vmatprep.subr.mxu0 0.0
    %3573 = vmatpush1.msra.mxu0 %v2343
    %3574 = vmatprep.subr.mxu0 0.0
    %3575 = vmatpush1.msra.mxu0 %v2344
    %3576 = vmatprep.subr.mxu0 0.0
    %3577 = vmatpush1.msra.mxu0 %v2345
    %3578 = vmatprep.subr.mxu0 0.0
    %3579 = vmatpush1.msra.mxu0 %v2346
    %3580 = vmatprep.subr.mxu0 0.0
    %3581 = vmatpush1.msra.mxu0 %v2347
    %3582 = vmatprep.subr.mxu0 0.0
    %3583 = vmatpush1.msra.mxu0 %v2348
    %3584 = vmatprep.mubr.f32.mxu0 %v1436
    %3585 = vmatmul.mubr.f32.gmra.mrb[0].mxu0 %v1680
    %v3586 = vpop.f32.mrb[0].mxu0
    %v3587 = vadd.f32 %v3202, %v3586
    %v3588 = vpop.f32.mrb[0].mxu0
    %3589 = vmatprep.mubr.f32.mxu0 %v1437
    %3590 = vmatmul.mubr.f32.gmra.mrb[0].mxu0 %v1682
    %v3591 = vpop.f32.mrb[0].mxu0
    %v3592 = vadd.f32 %v3207, %v3591
    %v3593 = vpop.f32.mrb[0].mxu0
    %3594 = vmatprep.mubr.f32.mxu0 %v1440
    %3595 = vmatmul.mubr.f32.gmra.mrb[0].mxu0 %v1685
    %v3596 = vpop.f32.mrb[0].mxu0
    %v3597 = vadd.f32 %v3212, %v3596
    %v3598 = vpop.f32.mrb[0].mxu0
    %3599 = vmatprep.mubr.f32.mxu0 %v1441
    %3600 = vmatmul.mubr.f32.gmra.mrb[0].mxu0 %v1687
    %v3601 = vpop.f32.mrb[0].mxu0
    %v3602 = vadd.f32 %v3217, %v3601
    %v3603 = vpop.f32.mrb[0].mxu0
    %3604 = vmatprep.mubr.f32.mxu0 %v1444
    %3605 = vmatmul.mubr.f32.gmra.mrb[0].mxu0 %v1690
    %v3606 = vpop.f32.mrb[0].mxu0
    %v3607 = vadd.f32 %v3222, %v3606
    %v3608 = vpop.f32.mrb[0].mxu0
    %3609 = vmatprep.mubr.f32.mxu0 %v1445
    %3610 = vmatmul.mubr.f32.gmra.mrb[0].mxu0 %v1692
    %v3611 = vpop.f32.mrb[0].mxu0
    %v3612 = vadd.f32 %v3227, %v3611
    %v3613 = vpop.f32.mrb[0].mxu0
    %3614 = vmatprep.mubr.f32.mxu0 %v1448
    %3615 = vmatmul.mubr.f32.gmra.mrb[0].mxu0 %v1695
    %v3616 = vpop.f32.mrb[0].mxu0
    %v3617 = vadd.f32 %v3232, %v3616
    %v3618 = vpop.f32.mrb[0].mxu0
    %3619 = vmatprep.mubr.f32.mxu0 %v1449
    %3620 = vmatmul.mubr.f32.gmra.mrb[0].mxu0 %v1697
    %v3621 = vpop.f32.mrb[0].mxu0
    %v3622 = vadd.f32 %v3237, %v3621
    %v3623 = vpop.f32.mrb[0].mxu0
    %3624 = vmatprep.mubr.f32.mxu0 %v1452
    %3625 = vmatmul.mubr.f32.gmra.mrb[0].mxu0 %v1700
    %v3626 = vpop.f32.mrb[0].mxu0
    %v3627 = vadd.f32 %v3242, %v3626
    %v3628 = vpop.f32.mrb[0].mxu0
    %3629 = vmatprep.mubr.f32.mxu0 %v1453
    %3630 = vmatmul.mubr.f32.gmra.mrb[0].mxu0 %v1702
    %v3631 = vpop.f32.mrb[0].mxu0
    %v3632 = vadd.f32 %v3247, %v3631
    %v3633 = vpop.f32.mrb[0].mxu0
    %3634 = vmatprep.mubr.f32.mxu0 %v1456
    %3635 = vmatmul.mubr.f32.gmra.mrb[0].mxu0 %v1705
    %v3636 = vpop.f32.mrb[0].mxu0
    %v3637 = vadd.f32 %v3252, %v3636
    %v3638 = vpop.f32.mrb[0].mxu0
    %3639 = vmatprep.mubr.f32.mxu0 %v1457
    %3640 = vmatmul.mubr.f32.gmra.mrb[0].mxu0 %v1707
    %v3641 = vpop.f32.mrb[0].mxu0
    %v3642 = vadd.f32 %v3257, %v3641
    %v3643 = vpop.f32.mrb[0].mxu0
    %3644 = vmatprep.mubr.f32.mxu0 %v1460
    %3645 = vmatmul.mubr.f32.gmra.mrb[0].mxu0 %v1710
    %v3646 = vpop.f32.mrb[0].mxu0
    %v3647 = vadd.f32 %v3262, %v3646
    %v3648 = vpop.f32.mrb[0].mxu0
    %3649 = vmatprep.mubr.f32.mxu0 %v1461
    %3650 = vmatmul.mubr.f32.gmra.mrb[0].mxu0 %v1712
    %v3651 = vpop.f32.mrb[0].mxu0
    %v3652 = vadd.f32 %v3267, %v3651
    %v3653 = vpop.f32.mrb[0].mxu0
    %3654 = vmatprep.mubr.f32.mxu0 %v1464
    %3655 = vmatmul.mubr.f32.gmra.mrb[0].mxu0 %v1715
    %v3656 = vpop.f32.mrb[0].mxu0
    %v3657 = vadd.f32 %v3272, %v3656
    %v3658 = vpop.f32.mrb[0].mxu0
    %3659 = vmatprep.mubr.f32.mxu0 %v1465
    %3660 = vmatmul.mubr.f32.gmra.mrb[0].mxu0 %v1717
    %v3661 = vpop.f32.mrb[0].mxu0
    %v3662 = vadd.f32 %v3277, %v3661
    %v3663 = vpop.f32.mrb[0].mxu0
    %3664 = vmatprep.mubr.f32.mxu0 %v1468
    %3665 = vmatmul.mubr.f32.gmra.mrb[0].mxu0 %v1720
    %v3666 = vpop.f32.mrb[0].mxu0
    %v3667 = vadd.f32 %v3282, %v3666
    %v3668 = vpop.f32.mrb[0].mxu0
    %3669 = vmatprep.mubr.f32.mxu0 %v1469
    %3670 = vmatmul.mubr.f32.gmra.mrb[0].mxu0 %v1722
    %v3671 = vpop.f32.mrb[0].mxu0
    %v3672 = vadd.f32 %v3287, %v3671
    %v3673 = vpop.f32.mrb[0].mxu0
    %3674 = vmatprep.mubr.f32.mxu0 %v1472
    %3675 = vmatmul.mubr.f32.gmra.mrb[0].mxu0 %v1725
    %v3676 = vpop.f32.mrb[0].mxu0
    %v3677 = vadd.f32 %v3292, %v3676
    %v3678 = vpop.f32.mrb[0].mxu0
    %3679 = vmatprep.mubr.f32.mxu0 %v1473
    %3680 = vmatmul.mubr.f32.gmra.mrb[0].mxu0 %v1727
    %v3681 = vpop.f32.mrb[0].mxu0
    %v3682 = vadd.f32 %v3297, %v3681
    %v3683 = vpop.f32.mrb[0].mxu0
    %3684 = vmatprep.mubr.f32.mxu0 %v1476
    %3685 = vmatmul.mubr.f32.gmra.mrb[0].mxu0 %v1730
    %v3686 = vpop.f32.mrb[0].mxu0
    %v3687 = vadd.f32 %v3302, %v3686
    %v3688 = vpop.f32.mrb[0].mxu0
    %3689 = vmatprep.mubr.f32.mxu0 %v1477
    %3690 = vmatmul.mubr.f32.gmra.mrb[0].mxu0 %v1732
    %v3691 = vpop.f32.mrb[0].mxu0
    %v3692 = vadd.f32 %v3307, %v3691
    %v3693 = vpop.f32.mrb[0].mxu0
    %3694 = vmatprep.mubr.f32.mxu0 %v1480
    %3695 = vmatmul.mubr.f32.gmra.mrb[0].mxu0 %v1735
    %v3696 = vpop.f32.mrb[0].mxu0
    %v3697 = vadd.f32 %v3312, %v3696
    %v3698 = vpop.f32.mrb[0].mxu0
    %3699 = vmatprep.mubr.f32.mxu0 %v1481
    %3700 = vmatmul.mubr.f32.gmra.mrb[0].mxu0 %v1737
    %v3701 = vpop.f32.mrb[0].mxu0
    %v3702 = vadd.f32 %v3317, %v3701
    %v3703 = vpop.f32.mrb[0].mxu0
    %3704 = vmatprep.mubr.f32.mxu0 %v1484
    %3705 = vmatmul.mubr.f32.gmra.mrb[0].mxu0 %v1740
    %v3706 = vpop.f32.mrb[0].mxu0
    %v3707 = vadd.f32 %v3322, %v3706
    %v3708 = vpop.f32.mrb[0].mxu0
    %3709 = vmatprep.mubr.f32.mxu0 %v1485
    %3710 = vmatmul.mubr.f32.gmra.mrb[0].mxu0 %v1742
    %v3711 = vpop.f32.mrb[0].mxu0
    %v3712 = vadd.f32 %v3327, %v3711
    %v3713 = vpop.f32.mrb[0].mxu0
    %3714 = vmatprep.mubr.f32.mxu0 %v1488
    %3715 = vmatmul.mubr.f32.gmra.mrb[0].mxu0 %v1745
    %v3716 = vpop.f32.mrb[0].mxu0
    %v3717 = vadd.f32 %v3332, %v3716
    %v3718 = vpop.f32.mrb[0].mxu0
    %3719 = vmatprep.mubr.f32.mxu0 %v1489
    %3720 = vmatmul.mubr.f32.gmra.mrb[0].mxu0 %v1747
    %v3721 = vpop.f32.mrb[0].mxu0
    %v3722 = vadd.f32 %v3337, %v3721
    %v3723 = vpop.f32.mrb[0].mxu0
    %3724 = vmatprep.mubr.f32.mxu0 %v1492
    %3725 = vmatmul.mubr.f32.gmra.mrb[0].mxu0 %v2157
    %v3726 = vpop.f32.mrb[0].mxu0
    %v3727 = vadd.f32 %v3342, %v3726
    %v3728 = vpop.f32.mrb[0].mxu0
    %3729 = vmatprep.mubr.f32.mxu0 %v1493
    %3730 = vmatmul.mubr.f32.gmra.mrb[0].mxu0 %v2159
    %v3731 = vpop.f32.mrb[0].mxu0
    %v3732 = vadd.f32 %v3347, %v3731
    %v3733 = vpop.f32.mrb[0].mxu0
    %3734 = vmatprep.mubr.f32.mxu0 %v1496
    %3735 = vmatmul.mubr.f32.gmra.mrb[0].mxu0 %v2193
    %v3736 = vpop.f32.mrb[0].mxu0
    %v3737 = vadd.f32 %v3352, %v3736
    %v3738 = vpop.f32.mrb[0].mxu0
    %3739 = vmatprep.mubr.f32.mxu0 %v1497
    %3740 = vmatmul.mubr.f32.gmra.mrb[0].mxu0 %v2195
    %v3741 = vpop.f32.mrb[0].mxu0
    %v3742 = vadd.f32 %v3357, %v3741
    %v3743 = vpop.f32.mrb[0].mxu0
    %3744 = vmatprep.mubr.f32.mxu0 %v1508
    %3745 = vmatmul.mubr.f32.gmra.mrb[0].mxu0 %v1760
    %v3746 = vpop.f32.mrb[0].mxu0
    %v3747 = vadd.f32 %v3362, %v3746
    %v3748 = vpop.f32.mrb[0].mxu0
    %3749 = vmatprep.mubr.f32.mxu0 %v1509
    %3750 = vmatmul.mubr.f32.gmra.mrb[0].mxu0 %v1762
    %v3751 = vpop.f32.mrb[0].mxu0
    %v3752 = vadd.f32 %v3367, %v3751
    %v3753 = vpop.f32.mrb[0].mxu0
    %3754 = vmatprep.mubr.f32.mxu0 %v1512
    %3755 = vmatmul.mubr.f32.gmra.mrb[0].mxu0 %v1765
    %v3756 = vpop.f32.mrb[0].mxu0
    %v3757 = vadd.f32 %v3372, %v3756
    %v3758 = vpop.f32.mrb[0].mxu0
    %3759 = vmatprep.mubr.f32.mxu0 %v1513
    %3760 = vmatmul.mubr.f32.gmra.mrb[0].mxu0 %v1767
    %v3761 = vpop.f32.mrb[0].mxu0
    %v3762 = vadd.f32 %v3377, %v3761
    %v3763 = vpop.f32.mrb[0].mxu0
    %3764 = vmatprep.mubr.f32.mxu0 %v1516
    %3765 = vmatmul.mubr.f32.gmra.mrb[0].mxu0 %v1770
    %v3766 = vpop.f32.mrb[0].mxu0
    %v3767 = vadd.f32 %v3382, %v3766
    %v3768 = vpop.f32.mrb[0].mxu0
    %3769 = vmatprep.mubr.f32.mxu0 %v1517
    %3770 = vmatmul.mubr.f32.gmra.mrb[0].mxu0 %v1772
    %v3771 = vpop.f32.mrb[0].mxu0
    %v3772 = vadd.f32 %v3387, %v3771
    %v3773 = vpop.f32.mrb[0].mxu0
    %3774 = vmatprep.mubr.f32.mxu0 %v1520
    %3775 = vmatmul.mubr.f32.gmra.mrb[0].mxu0 %v1775
    %v3776 = vpop.f32.mrb[0].mxu0
    %v3777 = vadd.f32 %v3392, %v3776
    %v3778 = vpop.f32.mrb[0].mxu0
    %3779 = vmatprep.mubr.f32.mxu0 %v1521
    %3780 = vmatmul.mubr.f32.gmra.mrb[0].mxu0 %v1777
    %v3781 = vpop.f32.mrb[0].mxu0
    %v3782 = vadd.f32 %v3397, %v3781
    %v3783 = vpop.f32.mrb[0].mxu0
    %3784 = vmatprep.mubr.f32.mxu0 %v1524
    %3785 = vmatmul.mubr.f32.gmra.mrb[0].mxu0 %v1780
    %v3786 = vpop.f32.mrb[0].mxu0
    %v3787 = vadd.f32 %v3402, %v3786
    %v3788 = vpop.f32.mrb[0].mxu0
    %3789 = vmatprep.mubr.f32.mxu0 %v1525
    %3790 = vmatmul.mubr.f32.gmra.mrb[0].mxu0 %v1782
    %v3791 = vpop.f32.mrb[0].mxu0
    %v3792 = vadd.f32 %v3407, %v3791
    %v3793 = vpop.f32.mrb[0].mxu0
    %3794 = vmatprep.mubr.f32.mxu0 %v1528
    %3795 = vmatmul.mubr.f32.gmra.mrb[0].mxu0 %v1785
    %v3796 = vpop.f32.mrb[0].mxu0
    %v3797 = vadd.f32 %v3412, %v3796
    %v3798 = vpop.f32.mrb[0].mxu0
    %3799 = vmatprep.mubr.f32.mxu0 %v1529
    %3800 = vmatmul.mubr.f32.gmra.mrb[0].mxu0 %v1787
    %v3801 = vpop.f32.mrb[0].mxu0
    %v3802 = vadd.f32 %v3417, %v3801
    %v3803 = vpop.f32.mrb[0].mxu0
    %3804 = vmatprep.mubr.f32.mxu0 %v1532
    %3805 = vmatmul.mubr.f32.gmra.mrb[0].mxu0 %v1790
    %v3806 = vpop.f32.mrb[0].mxu0
    %v3807 = vadd.f32 %v3422, %v3806
    %v3808 = vpop.f32.mrb[0].mxu0
    %3809 = vmatprep.mubr.f32.mxu0 %v1533
    %3810 = vmatmul.mubr.f32.gmra.mrb[0].mxu0 %v1792
    %v3811 = vpop.f32.mrb[0].mxu0
    %v3812 = vadd.f32 %v3427, %v3811
    %v3813 = vpop.f32.mrb[0].mxu0
    %3814 = vmatprep.mubr.f32.mxu0 %v1536
    %3815 = vmatmul.mubr.f32.gmra.mrb[0].mxu0 %v1795
    %v3816 = vpop.f32.mrb[0].mxu0
    %v3817 = vadd.f32 %v3432, %v3816
    %v3818 = vpop.f32.mrb[0].mxu0
    %3819 = vmatprep.mubr.f32.mxu0 %v1537
    %3820 = vmatmul.mubr.f32.gmra.mrb[0].mxu0 %v1797
    %v3821 = vpop.f32.mrb[0].mxu0
    %v3822 = vadd.f32 %v3437, %v3821
    %v3823 = vpop.f32.mrb[0].mxu0
    %3824 = vmatprep.mubr.f32.mxu0 %v1540
    %3825 = vmatmul.mubr.f32.gmra.mrb[0].mxu0 %v1800
    %v3826 = vpop.f32.mrb[0].mxu0
    %v3827 = vadd.f32 %v3442, %v3826
    %v3828 = vpop.f32.mrb[0].mxu0
    %3829 = vmatprep.mubr.f32.mxu0 %v1541
    %3830 = vmatmul.mubr.f32.gmra.mrb[0].mxu0 %v1802
    %v3831 = vpop.f32.mrb[0].mxu0
    %v3832 = vadd.f32 %v3447, %v3831
    %v3833 = vpop.f32.mrb[0].mxu0
    %3834 = vmatprep.mubr.f32.mxu0 %v1544
    %3835 = vmatmul.mubr.f32.gmra.mrb[0].mxu0 %v1805
    %v3836 = vpop.f32.mrb[0].mxu0
    %v3837 = vadd.f32 %v3452, %v3836
    %v3838 = vpop.f32.mrb[0].mxu0
    %3839 = vmatprep.mubr.f32.mxu0 %v1545
    %3840 = vmatmul.mubr.f32.gmra.mrb[0].mxu0 %v1807
    %v3841 = vpop.f32.mrb[0].mxu0
    %v3842 = vadd.f32 %v3457, %v3841
    %v3843 = vpop.f32.mrb[0].mxu0
    %3844 = vmatprep.mubr.f32.mxu0 %v1548
    %3845 = vmatmul.mubr.f32.gmra.mrb[0].mxu0 %v1810
    %v3846 = vpop.f32.mrb[0].mxu0
    %v3847 = vadd.f32 %v3462, %v3846
    %v3848 = vpop.f32.mrb[0].mxu0
    %3849 = vmatprep.mubr.f32.mxu0 %v1549
    %3850 = vmatmul.mubr.f32.gmra.mrb[0].mxu0 %v1812
    %v3851 = vpop.f32.mrb[0].mxu0
    %v3852 = vadd.f32 %v3467, %v3851
    %v3853 = vpop.f32.mrb[0].mxu0
    %3854 = vmatprep.mubr.f32.mxu0 %v1552
    %3855 = vmatmul.mubr.f32.gmra.mrb[0].mxu0 %v1815
    %v3856 = vpop.f32.mrb[0].mxu0
    %v3857 = vadd.f32 %v3472, %v3856
    %v3858 = vpop.f32.mrb[0].mxu0
    %3859 = vmatprep.mubr.f32.mxu0 %v1553
    %3860 = vmatmul.mubr.f32.gmra.mrb[0].mxu0 %v1817
    %v3861 = vpop.f32.mrb[0].mxu0
    %v3862 = vadd.f32 %v3477, %v3861
    %v3863 = vpop.f32.mrb[0].mxu0
    %3864 = vmatprep.mubr.f32.mxu0 %v1556
    %3865 = vmatmul.mubr.f32.gmra.mrb[0].mxu0 %v1820
    %v3866 = vpop.f32.mrb[0].mxu0
    %v3867 = vadd.f32 %v3482, %v3866
    %v3868 = vpop.f32.mrb[0].mxu0
    %3869 = vmatprep.mubr.f32.mxu0 %v1557
    %3870 = vmatmul.mubr.f32.gmra.mrb[0].mxu0 %v1822
    %v3871 = vpop.f32.mrb[0].mxu0
    %v3872 = vadd.f32 %v3487, %v3871
    %v3873 = vpop.f32.mrb[0].mxu0
    %3874 = vmatprep.mubr.f32.mxu0 %v1560
    %3875 = vmatmul.mubr.f32.gmra.mrb[0].mxu0 %v1825
    %v3876 = vpop.f32.mrb[0].mxu0
    %v3877 = vadd.f32 %v3492, %v3876
    %v3878 = vpop.f32.mrb[0].mxu0
    %3879 = vmatprep.mubr.f32.mxu0 %v1561
    %3880 = vmatmul.mubr.f32.gmra.mrb[0].mxu0 %v1827
    %v3881 = vpop.f32.mrb[0].mxu0
    %v3882 = vadd.f32 %v3497, %v3881
    %v3883 = vpop.f32.mrb[0].mxu0
    %3884 = vmatprep.mubr.f32.mxu0 %v1564
    %3885 = vmatmul.mubr.f32.gmra.mrb[0].mxu0 %v2162
    %v3886 = vpop.f32.mrb[0].mxu0
    %v3887 = vadd.f32 %v3502, %v3886
    %v3888 = vpop.f32.mrb[0].mxu0
    %3889 = vmatprep.mubr.f32.mxu0 %v1565
    %3890 = vmatmul.mubr.f32.gmra.mrb[0].mxu0 %v2164
    %v3891 = vpop.f32.mrb[0].mxu0
    %v3892 = vadd.f32 %v3507, %v3891
    %v3893 = vpop.f32.mrb[0].mxu0
    %3894 = vmatprep.mubr.f32.mxu0 %v1568
    %3895 = vmatmul.mubr.f32.gmra.mrb[0].mxu0 %v2198
    %v3896 = vpop.f32.mrb[0].mxu0
    %v3897 = vadd.f32 %v3512, %v3896
    %v3898 = vpop.f32.mrb[0].mxu0
    %3899 = vmatprep.mubr.f32.mxu0 %v1569
    %3900 = vmatmul.mubr.f32.gmra.mrb[0].mxu0 %v2200
    %v3901 = vpop.f32.mrb[0].mxu0
    %v3902 = vadd.f32 %v3517, %v3901
    %v3903 = vpop.f32.mrb[0].mxu0
    %3904 = vdwg.mxu0
    %3905 = vmatprep.subr.mxu0 0.0
    %3906 = vmatpush1.msra.mxu0 %v2349
    %3907 = vmatprep.subr.mxu0 0.0
    %3908 = vmatpush1.msra.mxu0 %v2350
    %3909 = vmatprep.subr.mxu0 0.0
    %3910 = vmatpush1.msra.mxu0 %v2351
    %3911 = vmatprep.subr.mxu0 0.0
    %3912 = vmatpush1.msra.mxu0 %v2352
    %3913 = vmatprep.subr.mxu0 0.0
    %3914 = vmatpush1.msra.mxu0 %v2353
    %3915 = vmatprep.subr.mxu0 0.0
    %3916 = vmatpush1.msra.mxu0 %v2354
    %3917 = vmatprep.subr.mxu0 0.0
    %3918 = vmatpush1.msra.mxu0 %v2355
    %3919 = vmatprep.subr.mxu0 0.0
    %3920 = vmatpush1.msra.mxu0 %v2356
    %3921 = vmatprep.subr.mxu0 0.0
    %3922 = vmatpush1.msra.mxu0 %v2357
    %3923 = vmatprep.subr.mxu0 0.0
    %3924 = vmatpush1.msra.mxu0 %v2358
    %3925 = vmatprep.subr.mxu0 0.0
    %3926 = vmatpush1.msra.mxu0 %v2359
    %3927 = vmatprep.subr.mxu0 0.0
    %3928 = vmatpush1.msra.mxu0 %v2360
    %3929 = vmatprep.subr.mxu0 0.0
    %3930 = vmatpush1.msra.mxu0 %v2361
    %3931 = vmatprep.subr.mxu0 0.0
    %3932 = vmatpush1.msra.mxu0 %v2362
    %3933 = vmatprep.subr.mxu0 0.0
    %3934 = vmatpush1.msra.mxu0 %v2363
    %3935 = vmatprep.subr.mxu0 0.0
    %3936 = vmatpush1.msra.mxu0 %v2364
    %3937 = vmatprep.subr.mxu0 0.0
    %3938 = vmatpush1.msra.mxu0 0.0
    %3939 = vmatprep.subr.mxu0 0.0
    %3940 = vmatpush1.msra.mxu0 0.0
    %3941 = vmatprep.subr.mxu0 0.0
    %3942 = vmatpush1.msra.mxu0 0.0
    %3943 = vmatprep.subr.mxu0 0.0
    %3944 = vmatpush1.msra.mxu0 0.0
    %3945 = vmatprep.subr.mxu0 0.0
    %3946 = vmatpush1.msra.mxu0 0.0
    %3947 = vmatprep.subr.mxu0 0.0
    %3948 = vmatpush1.msra.mxu0 0.0
    %3949 = vmatprep.subr.mxu0 0.0
    %3950 = vmatpush1.msra.mxu0 0.0
    %3951 = vmatprep.subr.mxu0 0.0
    %3952 = vmatpush1.msra.mxu0 0.0
    %3953 = vmatprep.subr.mxu0 0.0
    %3954 = vmatpush1.msra.mxu0 0.0
    %3955 = vmatprep.subr.mxu0 0.0
    %3956 = vmatpush1.msra.mxu0 0.0
    %3957 = vmatprep.subr.mxu0 0.0
    %3958 = vmatpush1.msra.mxu0 0.0
    %3959 = vmatprep.subr.mxu0 0.0
    %3960 = vmatpush1.msra.mxu0 0.0
    %3961 = vmatprep.subr.mxu0 0.0
    %3962 = vmatpush1.msra.mxu0 0.0
    %3963 = vmatprep.subr.mxu0 0.0
    %3964 = vmatpush1.msra.mxu0 0.0
    %3965 = vmatprep.subr.mxu0 0.0
    %3966 = vmatpush1.msra.mxu0 0.0
    %3967 = vmatprep.subr.mxu0 0.0
    %3968 = vmatpush1.msra.mxu0 0.0
    %3969 = vmatprep.mubr.f32.mxu0 0.0
    %3970 = vmatmul.mubr.f32.gmra.mrb[0].mxu0 %v1937
    %v3971 = vpop.f32.mrb[0].mxu0
    %v3972 = vadd.f32 %v3587, %v3971
    %v3973 = vpop.f32.mrb[0].mxu0
    %3974 = vmatprep.mubr.f32.mxu0 0.0
    %3975 = vmatmul.mubr.f32.gmra.mrb[0].mxu0 %v1939
    %v3976 = vpop.f32.mrb[0].mxu0
    %v3977 = vadd.f32 %v3592, %v3976
    %v3978 = vpop.f32.mrb[0].mxu0
    %3979 = vmatprep.mubr.f32.mxu0 0.0
    %3980 = vmatmul.mubr.f32.gmra.mrb[0].mxu0 %v1942
    %v3981 = vpop.f32.mrb[0].mxu0
    %v3982 = vadd.f32 %v3597, %v3981
    %v3983 = vpop.f32.mrb[0].mxu0
    %3984 = vmatprep.mubr.f32.mxu0 0.0
    %3985 = vmatmul.mubr.f32.gmra.mrb[0].mxu0 %v1944
    %v3986 = vpop.f32.mrb[0].mxu0
    %v3987 = vadd.f32 %v3602, %v3986
    %v3988 = vpop.f32.mrb[0].mxu0
    %3989 = vmatprep.mubr.f32.mxu0 0.0
    %3990 = vmatmul.mubr.f32.gmra.mrb[0].mxu0 %v1947
    %v3991 = vpop.f32.mrb[0].mxu0
    %v3992 = vadd.f32 %v3607, %v3991
    %v3993 = vpop.f32.mrb[0].mxu0
    %3994 = vmatprep.mubr.f32.mxu0 0.0
    %3995 = vmatmul.mubr.f32.gmra.mrb[0].mxu0 %v1949
    %v3996 = vpop.f32.mrb[0].mxu0
    %v3997 = vadd.f32 %v3612, %v3996
    %v3998 = vpop.f32.mrb[0].mxu0
    %3999 = vmatprep.mubr.f32.mxu0 0.0
    %4000 = vmatmul.mubr.f32.gmra.mrb[0].mxu0 %v1952
    %v4001 = vpop.f32.mrb[0].mxu0
    %v4002 = vadd.f32 %v3617, %v4001
    %v4003 = vpop.f32.mrb[0].mxu0
    %4004 = vmatprep.mubr.f32.mxu0 0.0
    %4005 = vmatmul.mubr.f32.gmra.mrb[0].mxu0 %v1954
    %v4006 = vpop.f32.mrb[0].mxu0
    %v4007 = vadd.f32 %v3622, %v4006
    %v4008 = vpop.f32.mrb[0].mxu0
    %4009 = vmatprep.mubr.f32.mxu0 0.0
    %4010 = vmatmul.mubr.f32.gmra.mrb[0].mxu0 %v1957
    %v4011 = vpop.f32.mrb[0].mxu0
    %v4012 = vadd.f32 %v3627, %v4011
    %v4013 = vpop.f32.mrb[0].mxu0
    %4014 = vmatprep.mubr.f32.mxu0 0.0
    %4015 = vmatmul.mubr.f32.gmra.mrb[0].mxu0 %v1959
    %v4016 = vpop.f32.mrb[0].mxu0
    %v4017 = vadd.f32 %v3632, %v4016
    %v4018 = vpop.f32.mrb[0].mxu0
    %4019 = vmatprep.mubr.f32.mxu0 0.0
    %4020 = vmatmul.mubr.f32.gmra.mrb[0].mxu0 %v1962
    %v4021 = vpop.f32.mrb[0].mxu0
    %v4022 = vadd.f32 %v3637, %v4021
    %v4023 = vpop.f32.mrb[0].mxu0
    %4024 = vmatprep.mubr.f32.mxu0 0.0
    %4025 = vmatmul.mubr.f32.gmra.mrb[0].mxu0 %v1964
    %v4026 = vpop.f32.mrb[0].mxu0
    %v4027 = vadd.f32 %v3642, %v4026
    %v4028 = vpop.f32.mrb[0].mxu0
    %4029 = vmatprep.mubr.f32.mxu0 0.0
    %4030 = vmatmul.mubr.f32.gmra.mrb[0].mxu0 %v1967
    %v4031 = vpop.f32.mrb[0].mxu0
    %v4032 = vadd.f32 %v3647, %v4031
    %v4033 = vpop.f32.mrb[0].mxu0
    %4034 = vmatprep.mubr.f32.mxu0 0.0
    %4035 = vmatmul.mubr.f32.gmra.mrb[0].mxu0 %v1969
    %v4036 = vpop.f32.mrb[0].mxu0
    %v4037 = vadd.f32 %v3652, %v4036
    %v4038 = vpop.f32.mrb[0].mxu0
    %4039 = vmatprep.mubr.f32.mxu0 0.0
    %4040 = vmatmul.mubr.f32.gmra.mrb[0].mxu0 %v1972
    %v4041 = vpop.f32.mrb[0].mxu0
    %v4042 = vadd.f32 %v3657, %v4041
    %v4043 = vpop.f32.mrb[0].mxu0
    %4044 = vmatprep.mubr.f32.mxu0 0.0
    %4045 = vmatmul.mubr.f32.gmra.mrb[0].mxu0 %v1974
    %v4046 = vpop.f32.mrb[0].mxu0
    %v4047 = vadd.f32 %v3662, %v4046
    %v4048 = vpop.f32.mrb[0].mxu0
    %4049 = vmatprep.mubr.f32.mxu0 0.0
    %4050 = vmatmul.mubr.f32.gmra.mrb[0].mxu0 %v1977
    %v4051 = vpop.f32.mrb[0].mxu0
    %v4052 = vadd.f32 %v3667, %v4051
    %v4053 = vpop.f32.mrb[0].mxu0
    %4054 = vmatprep.mubr.f32.mxu0 0.0
    %4055 = vmatmul.mubr.f32.gmra.mrb[0].mxu0 %v1979
    %v4056 = vpop.f32.mrb[0].mxu0
    %v4057 = vadd.f32 %v3672, %v4056
    %v4058 = vpop.f32.mrb[0].mxu0
    %4059 = vmatprep.mubr.f32.mxu0 0.0
    %4060 = vmatmul.mubr.f32.gmra.mrb[0].mxu0 %v1982
    %v4061 = vpop.f32.mrb[0].mxu0
    %v4062 = vadd.f32 %v3677, %v4061
    %v4063 = vpop.f32.mrb[0].mxu0
    %4064 = vmatprep.mubr.f32.mxu0 0.0
    %4065 = vmatmul.mubr.f32.gmra.mrb[0].mxu0 %v1984
    %v4066 = vpop.f32.mrb[0].mxu0
    %v4067 = vadd.f32 %v3682, %v4066
    %v4068 = vpop.f32.mrb[0].mxu0
    %4069 = vmatprep.mubr.f32.mxu0 0.0
    %4070 = vmatmul.mubr.f32.gmra.mrb[0].mxu0 %v1987
    %v4071 = vpop.f32.mrb[0].mxu0
    %v4072 = vadd.f32 %v3687, %v4071
    %v4073 = vpop.f32.mrb[0].mxu0
    %4074 = vmatprep.mubr.f32.mxu0 0.0
    %4075 = vmatmul.mubr.f32.gmra.mrb[0].mxu0 %v1989
    %v4076 = vpop.f32.mrb[0].mxu0
    %v4077 = vadd.f32 %v3692, %v4076
    %v4078 = vpop.f32.mrb[0].mxu0
    %4079 = vmatprep.mubr.f32.mxu0 0.0
    %4080 = vmatmul.mubr.f32.gmra.mrb[0].mxu0 %v1992
    %v4081 = vpop.f32.mrb[0].mxu0
    %v4082 = vadd.f32 %v3697, %v4081
    %v4083 = vpop.f32.mrb[0].mxu0
    %4084 = vmatprep.mubr.f32.mxu0 0.0
    %4085 = vmatmul.mubr.f32.gmra.mrb[0].mxu0 %v1994
    %v4086 = vpop.f32.mrb[0].mxu0
    %v4087 = vadd.f32 %v3702, %v4086
    %v4088 = vpop.f32.mrb[0].mxu0
    %4089 = vmatprep.mubr.f32.mxu0 0.0
    %4090 = vmatmul.mubr.f32.gmra.mrb[0].mxu0 %v1997
    %v4091 = vpop.f32.mrb[0].mxu0
    %v4092 = vadd.f32 %v3707, %v4091
    %v4093 = vpop.f32.mrb[0].mxu0
    %4094 = vmatprep.mubr.f32.mxu0 0.0
    %4095 = vmatmul.mubr.f32.gmra.mrb[0].mxu0 %v1999
    %v4096 = vpop.f32.mrb[0].mxu0
    %v4097 = vadd.f32 %v3712, %v4096
    %v4098 = vpop.f32.mrb[0].mxu0
    %4099 = vmatprep.mubr.f32.mxu0 0.0
    %4100 = vmatmul.mubr.f32.gmra.mrb[0].mxu0 %v2002
    %v4101 = vpop.f32.mrb[0].mxu0
    %v4102 = vadd.f32 %v3717, %v4101
    %v4103 = vpop.f32.mrb[0].mxu0
    %4104 = vmatprep.mubr.f32.mxu0 0.0
    %4105 = vmatmul.mubr.f32.gmra.mrb[0].mxu0 %v2004
    %v4106 = vpop.f32.mrb[0].mxu0
    %v4107 = vadd.f32 %v3722, %v4106
    %v4108 = vpop.f32.mrb[0].mxu0
    %4109 = vmatprep.mubr.f32.mxu0 0.0
    %4110 = vmatmul.mubr.f32.gmra.mrb[0].mxu0 %v2173
    %v4111 = vpop.f32.mrb[0].mxu0
    %v4112 = vadd.f32 %v3727, %v4111
    %v4113 = vpop.f32.mrb[0].mxu0
    %4114 = vmatprep.mubr.f32.mxu0 0.0
    %4115 = vmatmul.mubr.f32.gmra.mrb[0].mxu0 %v2175
    %v4116 = vpop.f32.mrb[0].mxu0
    %v4117 = vadd.f32 %v3732, %v4116
    %v4118 = vpop.f32.mrb[0].mxu0
    %4119 = vmatprep.mubr.f32.mxu0 0.0
    %4120 = vmatmul.mubr.f32.gmra.mrb[0].mxu0 %v2209
    %v4121 = vpop.f32.mrb[0].mxu0
    %v4122 = vadd.f32 %v3737, %v4121
    %v4123 = vpop.f32.mrb[0].mxu0
    %4124 = vmatprep.mubr.f32.mxu0 0.0
    %4125 = vmatmul.mubr.f32.gmra.mrb[0].mxu0 %v2211
    %v4126 = vpop.f32.mrb[0].mxu0
    %v4127 = vadd.f32 %v3742, %v4126
    %v4128 = vpop.f32.mrb[0].mxu0
    %4129 = vmatprep.mubr.f32.mxu0 0.0
    %4130 = vmatmul.mubr.f32.gmra.mrb[0].mxu0 %v2017
    %v4131 = vpop.f32.mrb[0].mxu0
    %v4132 = vadd.f32 %v3747, %v4131
    %v4133 = vpop.f32.mrb[0].mxu0
    %4134 = vmatprep.mubr.f32.mxu0 0.0
    %4135 = vmatmul.mubr.f32.gmra.mrb[0].mxu0 %v2019
    %v4136 = vpop.f32.mrb[0].mxu0
    %v4137 = vadd.f32 %v3752, %v4136
    %v4138 = vpop.f32.mrb[0].mxu0
    %4139 = vmatprep.mubr.f32.mxu0 0.0
    %4140 = vmatmul.mubr.f32.gmra.mrb[0].mxu0 %v2022
    %v4141 = vpop.f32.mrb[0].mxu0
    %v4142 = vadd.f32 %v3757, %v4141
    %v4143 = vpop.f32.mrb[0].mxu0
    %4144 = vmatprep.mubr.f32.mxu0 0.0
    %4145 = vmatmul.mubr.f32.gmra.mrb[0].mxu0 %v2024
    %v4146 = vpop.f32.mrb[0].mxu0
    %v4147 = vadd.f32 %v3762, %v4146
    %v4148 = vpop.f32.mrb[0].mxu0
    %4149 = vmatprep.mubr.f32.mxu0 0.0
    %4150 = vmatmul.mubr.f32.gmra.mrb[0].mxu0 %v2027
    %v4151 = vpop.f32.mrb[0].mxu0
    %v4152 = vadd.f32 %v3767, %v4151
    %v4153 = vpop.f32.mrb[0].mxu0
    %4154 = vmatprep.mubr.f32.mxu0 0.0
    %4155 = vmatmul.mubr.f32.gmra.mrb[0].mxu0 %v2029
    %v4156 = vpop.f32.mrb[0].mxu0
    %v4157 = vadd.f32 %v3772, %v4156
    %v4158 = vpop.f32.mrb[0].mxu0
    %4159 = vmatprep.mubr.f32.mxu0 0.0
    %4160 = vmatmul.mubr.f32.gmra.mrb[0].mxu0 %v2032
    %v4161 = vpop.f32.mrb[0].mxu0
    %v4162 = vadd.f32 %v3777, %v4161
    %v4163 = vpop.f32.mrb[0].mxu0
    %4164 = vmatprep.mubr.f32.mxu0 0.0
    %4165 = vmatmul.mubr.f32.gmra.mrb[0].mxu0 %v2034
    %v4166 = vpop.f32.mrb[0].mxu0
    %v4167 = vadd.f32 %v3782, %v4166
    %v4168 = vpop.f32.mrb[0].mxu0
    %4169 = vmatprep.mubr.f32.mxu0 0.0
    %4170 = vmatmul.mubr.f32.gmra.mrb[0].mxu0 %v2037
    %v4171 = vpop.f32.mrb[0].mxu0
    %v4172 = vadd.f32 %v3787, %v4171
    %v4173 = vpop.f32.mrb[0].mxu0
    %4174 = vmatprep.mubr.f32.mxu0 0.0
    %4175 = vmatmul.mubr.f32.gmra.mrb[0].mxu0 %v2039
    %v4176 = vpop.f32.mrb[0].mxu0
    %v4177 = vadd.f32 %v3792, %v4176
    %v4178 = vpop.f32.mrb[0].mxu0
    %4179 = vmatprep.mubr.f32.mxu0 0.0
    %4180 = vmatmul.mubr.f32.gmra.mrb[0].mxu0 %v2042
    %v4181 = vpop.f32.mrb[0].mxu0
    %v4182 = vadd.f32 %v3797, %v4181
    %v4183 = vpop.f32.mrb[0].mxu0
    %4184 = vmatprep.mubr.f32.mxu0 0.0
    %4185 = vmatmul.mubr.f32.gmra.mrb[0].mxu0 %v2044
    %v4186 = vpop.f32.mrb[0].mxu0
    %v4187 = vadd.f32 %v3802, %v4186
    %v4188 = vpop.f32.mrb[0].mxu0
    %4189 = vmatprep.mubr.f32.mxu0 0.0
    %4190 = vmatmul.mubr.f32.gmra.mrb[0].mxu0 %v2047
    %v4191 = vpop.f32.mrb[0].mxu0
    %v4192 = vadd.f32 %v3807, %v4191
    %v4193 = vpop.f32.mrb[0].mxu0
    %4194 = vmatprep.mubr.f32.mxu0 0.0
    %4195 = vmatmul.mubr.f32.gmra.mrb[0].mxu0 %v2049
    %v4196 = vpop.f32.mrb[0].mxu0
    %v4197 = vadd.f32 %v3812, %v4196
    %v4198 = vpop.f32.mrb[0].mxu0
    %4199 = vmatprep.mubr.f32.mxu0 0.0
    %4200 = vmatmul.mubr.f32.gmra.mrb[0].mxu0 %v2052
    %v4201 = vpop.f32.mrb[0].mxu0
    %v4202 = vadd.f32 %v3817, %v4201
    %v4203 = vpop.f32.mrb[0].mxu0
    %4204 = vmatprep.mubr.f32.mxu0 0.0
    %4205 = vmatmul.mubr.f32.gmra.mrb[0].mxu0 %v2054
    %v4206 = vpop.f32.mrb[0].mxu0
    %v4207 = vadd.f32 %v3822, %v4206
    %v4208 = vpop.f32.mrb[0].mxu0
    %4209 = vmatprep.mubr.f32.mxu0 0.0
    %4210 = vmatmul.mubr.f32.gmra.mrb[0].mxu0 %v2057
    %v4211 = vpop.f32.mrb[0].mxu0
    %v4212 = vadd.f32 %v3827, %v4211
    %v4213 = vpop.f32.mrb[0].mxu0
    %4214 = vmatprep.mubr.f32.mxu0 0.0
    %4215 = vmatmul.mubr.f32.gmra.mrb[0].mxu0 %v2059
    %v4216 = vpop.f32.mrb[0].mxu0
    %v4217 = vadd.f32 %v3832, %v4216
    %v4218 = vpop.f32.mrb[0].mxu0
    %4219 = vmatprep.mubr.f32.mxu0 0.0
    %4220 = vmatmul.mubr.f32.gmra.mrb[0].mxu0 %v2062
    %v4221 = vpop.f32.mrb[0].mxu0
    %v4222 = vadd.f32 %v3837, %v4221
    %v4223 = vpop.f32.mrb[0].mxu0
    %4224 = vmatprep.mubr.f32.mxu0 0.0
    %4225 = vmatmul.mubr.f32.gmra.mrb[0].mxu0 %v2064
    %v4226 = vpop.f32.mrb[0].mxu0
    %v4227 = vadd.f32 %v3842, %v4226
    %v4228 = vpop.f32.mrb[0].mxu0
    %4229 = vmatprep.mubr.f32.mxu0 0.0
    %4230 = vmatmul.mubr.f32.gmra.mrb[0].mxu0 %v2067
    %v4231 = vpop.f32.mrb[0].mxu0
    %v4232 = vadd.f32 %v3847, %v4231
    %v4233 = vpop.f32.mrb[0].mxu0
    %4234 = vmatprep.mubr.f32.mxu0 0.0
    %4235 = vmatmul.mubr.f32.gmra.mrb[0].mxu0 %v2069
    %v4236 = vpop.f32.mrb[0].mxu0
    %v4237 = vadd.f32 %v3852, %v4236
    %v4238 = vpop.f32.mrb[0].mxu0
    %4239 = vmatprep.mubr.f32.mxu0 0.0
    %4240 = vmatmul.mubr.f32.gmra.mrb[0].mxu0 %v2072
    %v4241 = vpop.f32.mrb[0].mxu0
    %v4242 = vadd.f32 %v3857, %v4241
    %v4243 = vpop.f32.mrb[0].mxu0
    %4244 = vmatprep.mubr.f32.mxu0 0.0
    %4245 = vmatmul.mubr.f32.gmra.mrb[0].mxu0 %v2074
    %v4246 = vpop.f32.mrb[0].mxu0
    %v4247 = vadd.f32 %v3862, %v4246
    %v4248 = vpop.f32.mrb[0].mxu0
    %4249 = vmatprep.mubr.f32.mxu0 0.0
    %4250 = vmatmul.mubr.f32.gmra.mrb[0].mxu0 %v2077
    %v4251 = vpop.f32.mrb[0].mxu0
    %v4252 = vadd.f32 %v3867, %v4251
    %v4253 = vpop.f32.mrb[0].mxu0
    %4254 = vmatprep.mubr.f32.mxu0 0.0
    %4255 = vmatmul.mubr.f32.gmra.mrb[0].mxu0 %v2079
    %v4256 = vpop.f32.mrb[0].mxu0
    %v4257 = vadd.f32 %v3872, %v4256
    %v4258 = vpop.f32.mrb[0].mxu0
    %4259 = vmatprep.mubr.f32.mxu0 0.0
    %4260 = vmatmul.mubr.f32.gmra.mrb[0].mxu0 %v2082
    %v4261 = vpop.f32.mrb[0].mxu0
    %v4262 = vadd.f32 %v3877, %v4261
    %v4263 = vpop.f32.mrb[0].mxu0
    %4264 = vmatprep.mubr.f32.mxu0 0.0
    %4265 = vmatmul.mubr.f32.gmra.mrb[0].mxu0 %v2084
    %v4266 = vpop.f32.mrb[0].mxu0
    %v4267 = vadd.f32 %v3882, %v4266
    %v4268 = vpop.f32.mrb[0].mxu0
    %4269 = vmatprep.mubr.f32.mxu0 0.0
    %4270 = vmatmul.mubr.f32.gmra.mrb[0].mxu0 %v2178
    %v4271 = vpop.f32.mrb[0].mxu0
    %v4272 = vadd.f32 %v3887, %v4271
    %v4273 = vpop.f32.mrb[0].mxu0
    %4274 = vmatprep.mubr.f32.mxu0 0.0
    %4275 = vmatmul.mubr.f32.gmra.mrb[0].mxu0 %v2180
    %v4276 = vpop.f32.mrb[0].mxu0
    %v4277 = vadd.f32 %v3892, %v4276
    %v4278 = vpop.f32.mrb[0].mxu0
    %4279 = vmatprep.mubr.f32.mxu0 0.0
    %4280 = vmatmul.mubr.f32.gmra.mrb[0].mxu0 %v2214
    %v4281 = vpop.f32.mrb[0].mxu0
    %v4282 = vadd.f32 %v3897, %v4281
    %v4283 = vpop.f32.mrb[0].mxu0
    %4284 = vmatprep.mubr.f32.mxu0 0.0
    %4285 = vmatmul.mubr.f32.gmra.mrb[0].mxu0 %v2216
    %v4286 = vpop.f32.mrb[0].mxu0
    %v4287 = vadd.f32 %v3902, %v4286
    %v4288 = vpop.f32.mrb[0].mxu0
    %4289 = vdwg.mxu0
    %v4290 = vld [vmem:[%s5] sm:$0x1]
    %v4291 = vld [vmem:[%s6] sm:$0x1]
    %v4292 = vadd.f32 %v3972, %v3977
    %v4293 = vadd.f32 %v4292, %v3982
    %v4294 = vadd.f32 %v4293, %v3987
    %v4295 = vadd.f32 %v4294, %v3992
    %v4296 = vadd.f32 %v4295, %v3997
    %v4297 = vadd.f32 %v4296, %v4002
    %v4298 = vadd.f32 %v4297, %v4007
    %v4299 = vadd.f32 %v4298, %v4012
    %v4300 = vadd.f32 %v4299, %v4017
    %v4301 = vadd.f32 %v4300, %v4022
    %v4302 = vadd.f32 %v4301, %v4027
    %v4303 = vadd.f32 %v4302, %v4032
    %v4304 = vadd.f32 %v4303, %v4037
    %v4305 = vadd.f32 %v4304, %v4042
    %v4306 = vadd.f32 %v4305, %v4047
    %v4307 = vadd.f32 %v4306, %v4052
    %v4308 = vadd.f32 %v4307, %v4057
    %v4309 = vadd.f32 %v4308, %v4062
    %v4310 = vadd.f32 %v4309, %v4067
    %v4311 = vadd.f32 %v4310, %v4072
    %v4312 = vadd.f32 %v4311, %v4077
    %v4313 = vadd.f32 %v4312, %v4082
    %v4314 = vadd.f32 %v4313, %v4087
    %v4315 = vadd.f32 %v4314, %v4092
    %v4316 = vadd.f32 %v4315, %v4097
    %v4317 = vadd.f32 %v4316, %v4102
    %v4318 = vadd.f32 %v4317, %v4107
    %v4319 = vadd.f32 %v4318, %v4112
    %v4320 = vadd.f32 %v4319, %v4117
    %v4321 = vadd.f32 %v4320, %v4122
    %v4322 = vadd.f32 %v4321, %v4127
    %v4323 = vadd.f32 %v4322, %v4132
    %v4324 = vadd.f32 %v4323, %v4137
    %v4325 = vadd.f32 %v4324, %v4142
    %v4326 = vadd.f32 %v4325, %v4147
    %v4327 = vadd.f32 %v4326, %v4152
    %v4328 = vadd.f32 %v4327, %v4157
    %v4329 = vadd.f32 %v4328, %v4162
    %v4330 = vadd.f32 %v4329, %v4167
    %v4331 = vadd.f32 %v4330, %v4172
    %v4332 = vadd.f32 %v4331, %v4177
    %v4333 = vadd.f32 %v4332, %v4182
    %v4334 = vadd.f32 %v4333, %v4187
    %v4335 = vadd.f32 %v4334, %v4192
    %v4336 = vadd.f32 %v4335, %v4197
    %v4337 = vadd.f32 %v4336, %v4202
    %v4338 = vadd.f32 %v4337, %v4207
    %v4339 = vadd.f32 %v4338, %v4212
    %v4340 = vadd.f32 %v4339, %v4217
    %v4341 = vadd.f32 %v4340, %v4222
    %v4342 = vadd.f32 %v4341, %v4227
    %v4343 = vadd.f32 %v4342, %v4232
    %v4344 = vadd.f32 %v4343, %v4237
    %v4345 = vadd.f32 %v4344, %v4242
    %v4346 = vadd.f32 %v4345, %v4247
    %v4347 = vadd.f32 %v4346, %v4252
    %v4348 = vadd.f32 %v4347, %v4257
    %v4349 = vadd.f32 %v4348, %v4262
    %v4350 = vadd.f32 %v4349, %v4267
    %v4351 = vadd.f32 %v4350, %v4272
    %v4352 = vadd.f32 %v4351, %v4277
    %v4353 = vadd.f32 %v4352, %v4282
    %v4354 = vadd.f32 %v4353, %v4287
    %v4355 = vrot.slane %v4354, 4
    %v4356 = vadd.f32 %v4354, %v4355
    %v4357 = vrot.slane %v4356, 2
    %v4358 = vadd.f32 %v4356, %v4357
    %v4359 = vrot.slane %v4358, 1
    %v4360 = vadd.f32 %v4358, %v4359
    %v4361 = vmul.f32 %v4360, %v626
    %v4362 = vsub.f32 %v3972, %v4361
    %v4363 = vsub.f32 %v3977, %v4361
    %v4364 = vsub.f32 %v3982, %v4361
    %v4365 = vsub.f32 %v3987, %v4361
    %v4366 = vsub.f32 %v3992, %v4361
    %v4367 = vsub.f32 %v3997, %v4361
    %v4368 = vsub.f32 %v4002, %v4361
    %v4369 = vsub.f32 %v4007, %v4361
    %v4370 = vsub.f32 %v4012, %v4361
    %v4371 = vsub.f32 %v4017, %v4361
    %v4372 = vsub.f32 %v4022, %v4361
    %v4373 = vsub.f32 %v4027, %v4361
    %v4374 = vsub.f32 %v4032, %v4361
    %v4375 = vsub.f32 %v4037, %v4361
    %v4376 = vsub.f32 %v4042, %v4361
    %v4377 = vsub.f32 %v4047, %v4361
    %v4378 = vsub.f32 %v4052, %v4361
    %v4379 = vsub.f32 %v4057, %v4361
    %v4380 = vsub.f32 %v4062, %v4361
    %v4381 = vsub.f32 %v4067, %v4361
    %v4382 = vsub.f32 %v4072, %v4361
    %v4383 = vsub.f32 %v4077, %v4361
    %v4384 = vsub.f32 %v4082, %v4361
    %v4385 = vsub.f32 %v4087, %v4361
    %v4386 = vsub.f32 %v4092, %v4361
    %v4387 = vsub.f32 %v4097, %v4361
    %v4388 = vsub.f32 %v4102, %v4361
    %v4389 = vsub.f32 %v4107, %v4361
    %v4390 = vsub.f32 %v4112, %v4361
    %v4391 = vsub.f32 %v4117, %v4361
    %v4392 = vsub.f32 %v4122, %v4361
    %v4393 = vsub.f32 %v4127, %v4361
    %v4394 = vsub.f32 %v4132, %v4361
    %v4395 = vsub.f32 %v4137, %v4361
    %v4396 = vsub.f32 %v4142, %v4361
    %v4397 = vsub.f32 %v4147, %v4361
    %v4398 = vsub.f32 %v4152, %v4361
    %v4399 = vsub.f32 %v4157, %v4361
    %v4400 = vsub.f32 %v4162, %v4361
    %v4401 = vsub.f32 %v4167, %v4361
    %v4402 = vsub.f32 %v4172, %v4361
    %v4403 = vsub.f32 %v4177, %v4361
    %v4404 = vsub.f32 %v4182, %v4361
    %v4405 = vsub.f32 %v4187, %v4361
    %v4406 = vsub.f32 %v4192, %v4361
    %v4407 = vsub.f32 %v4197, %v4361
    %v4408 = vsub.f32 %v4202, %v4361
    %v4409 = vsub.f32 %v4207, %v4361
    %v4410 = vsub.f32 %v4212, %v4361
    %v4411 = vsub.f32 %v4217, %v4361
    %v4412 = vsub.f32 %v4222, %v4361
    %v4413 = vsub.f32 %v4227, %v4361
    %v4414 = vsub.f32 %v4232, %v4361
    %v4415 = vsub.f32 %v4237, %v4361
    %v4416 = vsub.f32 %v4242, %v4361
    %v4417 = vsub.f32 %v4247, %v4361
    %v4418 = vsub.f32 %v4252, %v4361
    %v4419 = vsub.f32 %v4257, %v4361
    %v4420 = vsub.f32 %v4262, %v4361
    %v4421 = vsub.f32 %v4267, %v4361
    %v4422 = vsub.f32 %v4272, %v4361
    %v4423 = vsub.f32 %v4277, %v4361
    %v4424 = vsub.f32 %v4282, %v4361
    %v4425 = vsub.f32 %v4287, %v4361
    %v4426 = vmul.f32 %v4362, %v4362
    %v4427 = vmul.f32 %v4363, %v4363
    %v4428 = vmul.f32 %v4364, %v4364
    %v4429 = vmul.f32 %v4365, %v4365
    %v4430 = vmul.f32 %v4366, %v4366
    %v4431 = vmul.f32 %v4367, %v4367
    %v4432 = vmul.f32 %v4368, %v4368
    %v4433 = vmul.f32 %v4369, %v4369
    %v4434 = vmul.f32 %v4370, %v4370
    %v4435 = vmul.f32 %v4371, %v4371
    %v4436 = vmul.f32 %v4372, %v4372
    %v4437 = vmul.f32 %v4373, %v4373
    %v4438 = vmul.f32 %v4374, %v4374
    %v4439 = vmul.f32 %v4375, %v4375
    %v4440 = vmul.f32 %v4376, %v4376
    %v4441 = vmul.f32 %v4377, %v4377
    %v4442 = vmul.f32 %v4378, %v4378
    %v4443 = vmul.f32 %v4379, %v4379
    %v4444 = vmul.f32 %v4380, %v4380
    %v4445 = vmul.f32 %v4381, %v4381
    %v4446 = vmul.f32 %v4382, %v4382
    %v4447 = vmul.f32 %v4383, %v4383
    %v4448 = vmul.f32 %v4384, %v4384
    %v4449 = vmul.f32 %v4385, %v4385
    %v4450 = vmul.f32 %v4386, %v4386
    %v4451 = vmul.f32 %v4387, %v4387
    %v4452 = vmul.f32 %v4388, %v4388
    %v4453 = vmul.f32 %v4389, %v4389
    %v4454 = vmul.f32 %v4390, %v4390
    %v4455 = vmul.f32 %v4391, %v4391
    %v4456 = vmul.f32 %v4392, %v4392
    %v4457 = vmul.f32 %v4393, %v4393
    %v4458 = vmul.f32 %v4394, %v4394
    %v4459 = vmul.f32 %v4395, %v4395
    %v4460 = vmul.f32 %v4396, %v4396
    %v4461 = vmul.f32 %v4397, %v4397
    %v4462 = vmul.f32 %v4398, %v4398
    %v4463 = vmul.f32 %v4399, %v4399
    %v4464 = vmul.f32 %v4400, %v4400
    %v4465 = vmul.f32 %v4401, %v4401
    %v4466 = vmul.f32 %v4402, %v4402
    %v4467 = vmul.f32 %v4403, %v4403
    %v4468 = vmul.f32 %v4404, %v4404
    %v4469 = vmul.f32 %v4405, %v4405
    %v4470 = vmul.f32 %v4406, %v4406
    %v4471 = vmul.f32 %v4407, %v4407
    %v4472 = vmul.f32 %v4408, %v4408
    %v4473 = vmul.f32 %v4409, %v4409
    %v4474 = vmul.f32 %v4410, %v4410
    %v4475 = vmul.f32 %v4411, %v4411
    %v4476 = vmul.f32 %v4412, %v4412
    %v4477 = vmul.f32 %v4413, %v4413
    %v4478 = vmul.f32 %v4414, %v4414
    %v4479 = vmul.f32 %v4415, %v4415
    %v4480 = vmul.f32 %v4416, %v4416
    %v4481 = vmul.f32 %v4417, %v4417
    %v4482 = vmul.f32 %v4418, %v4418
    %v4483 = vmul.f32 %v4419, %v4419
    %v4484 = vmul.f32 %v4420, %v4420
    %v4485 = vmul.f32 %v4421, %v4421
    %v4486 = vmul.f32 %v4422, %v4422
    %v4487 = vmul.f32 %v4423, %v4423
    %v4488 = vmul.f32 %v4424, %v4424
    %v4489 = vmul.f32 %v4425, %v4425
    %v4490 = vadd.f32 %v4426, %v4427
    %v4491 = vadd.f32 %v4490, %v4428
    %v4492 = vadd.f32 %v4491, %v4429
    %v4493 = vadd.f32 %v4492, %v4430
    %v4494 = vadd.f32 %v4493, %v4431
    %v4495 = vadd.f32 %v4494, %v4432
    %v4496 = vadd.f32 %v4495, %v4433
    %v4497 = vadd.f32 %v4496, %v4434
    %v4498 = vadd.f32 %v4497, %v4435
    %v4499 = vadd.f32 %v4498, %v4436
    %v4500 = vadd.f32 %v4499, %v4437
    %v4501 = vadd.f32 %v4500, %v4438
    %v4502 = vadd.f32 %v4501, %v4439
    %v4503 = vadd.f32 %v4502, %v4440
    %v4504 = vadd.f32 %v4503, %v4441
    %v4505 = vadd.f32 %v4504, %v4442
    %v4506 = vadd.f32 %v4505, %v4443
    %v4507 = vadd.f32 %v4506, %v4444
    %v4508 = vadd.f32 %v4507, %v4445
    %v4509 = vadd.f32 %v4508, %v4446
    %v4510 = vadd.f32 %v4509, %v4447
    %v4511 = vadd.f32 %v4510, %v4448
    %v4512 = vadd.f32 %v4511, %v4449
    %v4513 = vadd.f32 %v4512, %v4450
    %v4514 = vadd.f32 %v4513, %v4451
    %v4515 = vadd.f32 %v4514, %v4452
    %v4516 = vadd.f32 %v4515, %v4453
    %v4517 = vadd.f32 %v4516, %v4454
    %v4518 = vadd.f32 %v4517, %v4455
    %v4519 = vadd.f32 %v4518, %v4456
    %v4520 = vadd.f32 %v4519, %v4457
    %v4521 = vadd.f32 %v4520, %v4458
    %v4522 = vadd.f32 %v4521, %v4459
    %v4523 = vadd.f32 %v4522, %v4460
    %v4524 = vadd.f32 %v4523, %v4461
    %v4525 = vadd.f32 %v4524, %v4462
    %v4526 = vadd.f32 %v4525, %v4463
    %v4527 = vadd.f32 %v4526, %v4464
    %v4528 = vadd.f32 %v4527, %v4465
    %v4529 = vadd.f32 %v4528, %v4466
    %v4530 = vadd.f32 %v4529, %v4467
    %v4531 = vadd.f32 %v4530, %v4468
    %v4532 = vadd.f32 %v4531, %v4469
    %v4533 = vadd.f32 %v4532, %v4470
    %v4534 = vadd.f32 %v4533, %v4471
    %v4535 = vadd.f32 %v4534, %v4472
    %v4536 = vadd.f32 %v4535, %v4473
    %v4537 = vadd.f32 %v4536, %v4474
    %v4538 = vadd.f32 %v4537, %v4475
    %v4539 = vadd.f32 %v4538, %v4476
    %v4540 = vadd.f32 %v4539, %v4477
    %v4541 = vadd.f32 %v4540, %v4478
    %v4542 = vadd.f32 %v4541, %v4479
    %v4543 = vadd.f32 %v4542, %v4480
    %v4544 = vadd.f32 %v4543, %v4481
    %v4545 = vadd.f32 %v4544, %v4482
    %v4546 = vadd.f32 %v4545, %v4483
    %v4547 = vadd.f32 %v4546, %v4484
    %v4548 = vadd.f32 %v4547, %v4485
    %v4549 = vadd.f32 %v4548, %v4486
    %v4550 = vadd.f32 %v4549, %v4487
    %v4551 = vadd.f32 %v4550, %v4488
    %v4552 = vadd.f32 %v4551, %v4489
    %v4553 = vrot.slane %v4552, 4
    %v4554 = vadd.f32 %v4552, %v4553
    %v4555 = vrot.slane %v4554, 2
    %v4556 = vadd.f32 %v4554, %v4555
    %v4557 = vrot.slane %v4556, 1
    %v4558 = vadd.f32 %v4556, %v4557
    %v4559 = vmul.f32 %v4558, %v626
    %v4560 = vadd.f32 %v4559, 1e-05
    %v4561 = vrsqrt.pop %v4560
    %v4562 = vmul.f32 %v4290, %v4561
    %v4564 = vlaneseq
    %v4565 = vshrl.u32 %v4564, 7
    %v4566 = vsub.s32 0, %v4565
    %v4567 = vrot.slane %v4562, %v4566
    %v4569 = vmul.f32 %v4362, %v4567
    %v4570 = vmul.f32 %v4363, %v4567
    %v4571 = vmul.f32 %v4364, %v4567
    %v4572 = vmul.f32 %v4365, %v4567
    %v4573 = vmul.f32 %v4366, %v4567
    %v4574 = vmul.f32 %v4367, %v4567
    %v4575 = vmul.f32 %v4368, %v4567
    %v4576 = vmul.f32 %v4369, %v4567
    %v4577 = vmul.f32 %v4370, %v4567
    %v4578 = vmul.f32 %v4371, %v4567
    %v4579 = vmul.f32 %v4372, %v4567
    %v4580 = vmul.f32 %v4373, %v4567
    %v4581 = vmul.f32 %v4374, %v4567
    %v4582 = vmul.f32 %v4375, %v4567
    %v4583 = vmul.f32 %v4376, %v4567
    %v4584 = vmul.f32 %v4377, %v4567
    %v4585 = vmul.f32 %v4378, %v4567
    %v4586 = vmul.f32 %v4379, %v4567
    %v4587 = vmul.f32 %v4380, %v4567
    %v4588 = vmul.f32 %v4381, %v4567
    %v4589 = vmul.f32 %v4382, %v4567
    %v4590 = vmul.f32 %v4383, %v4567
    %v4591 = vmul.f32 %v4384, %v4567
    %v4592 = vmul.f32 %v4385, %v4567
    %v4593 = vmul.f32 %v4386, %v4567
    %v4594 = vmul.f32 %v4387, %v4567
    %v4595 = vmul.f32 %v4388, %v4567
    %v4596 = vmul.f32 %v4389, %v4567
    %v4597 = vmul.f32 %v4390, %v4567
    %v4598 = vmul.f32 %v4391, %v4567
    %v4599 = vmul.f32 %v4392, %v4567
    %v4600 = vmul.f32 %v4393, %v4567
    %v4601 = vmul.f32 %v4394, %v4567
    %v4602 = vmul.f32 %v4395, %v4567
    %v4603 = vmul.f32 %v4396, %v4567
    %v4604 = vmul.f32 %v4397, %v4567
    %v4605 = vmul.f32 %v4398, %v4567
    %v4606 = vmul.f32 %v4399, %v4567
    %v4607 = vmul.f32 %v4400, %v4567
    %v4608 = vmul.f32 %v4401, %v4567
    %v4609 = vmul.f32 %v4402, %v4567
    %v4610 = vmul.f32 %v4403, %v4567
    %v4611 = vmul.f32 %v4404, %v4567
    %v4612 = vmul.f32 %v4405, %v4567
    %v4613 = vmul.f32 %v4406, %v4567
    %v4614 = vmul.f32 %v4407, %v4567
    %v4615 = vmul.f32 %v4408, %v4567
    %v4616 = vmul.f32 %v4409, %v4567
    %v4617 = vmul.f32 %v4410, %v4567
    %v4618 = vmul.f32 %v4411, %v4567
    %v4619 = vmul.f32 %v4412, %v4567
    %v4620 = vmul.f32 %v4413, %v4567
    %v4621 = vmul.f32 %v4414, %v4567
    %v4622 = vmul.f32 %v4415, %v4567
    %v4623 = vmul.f32 %v4416, %v4567
    %v4624 = vmul.f32 %v4417, %v4567
    %v4625 = vmul.f32 %v4418, %v4567
    %v4626 = vmul.f32 %v4419, %v4567
    %v4627 = vmul.f32 %v4420, %v4567
    %v4628 = vmul.f32 %v4421, %v4567
    %v4629 = vmul.f32 %v4422, %v4567
    %v4630 = vmul.f32 %v4423, %v4567
    %v4631 = vmul.f32 %v4424, %v4567
    %v4632 = vmul.f32 %v4425, %v4567
    %v4634 = vlaneseq
    %v4635 = vshrl.u32 %v4634, 7
    %v4636 = vsub.s32 0, %v4635
    %v4637 = vrot.slane %v4291, %v4636
    %v4639 = vadd.f32 %v4569, %v4637
    %v4640 = vadd.f32 %v4570, %v4637
    %v4641 = vadd.f32 %v4571, %v4637
    %v4642 = vadd.f32 %v4572, %v4637
    %v4643 = vadd.f32 %v4573, %v4637
    %v4644 = vadd.f32 %v4574, %v4637
    %v4645 = vadd.f32 %v4575, %v4637
    %v4646 = vadd.f32 %v4576, %v4637
    %v4647 = vadd.f32 %v4577, %v4637
    %v4648 = vadd.f32 %v4578, %v4637
    %v4649 = vadd.f32 %v4579, %v4637
    %v4650 = vadd.f32 %v4580, %v4637
    %v4651 = vadd.f32 %v4581, %v4637
    %v4652 = vadd.f32 %v4582, %v4637
    %v4653 = vadd.f32 %v4583, %v4637
    %v4654 = vadd.f32 %v4584, %v4637
    %v4655 = vadd.f32 %v4585, %v4637
    %v4656 = vadd.f32 %v4586, %v4637
    %v4657 = vadd.f32 %v4587, %v4637
    %v4658 = vadd.f32 %v4588, %v4637
    %v4659 = vadd.f32 %v4589, %v4637
    %v4660 = vadd.f32 %v4590, %v4637
    %v4661 = vadd.f32 %v4591, %v4637
    %v4662 = vadd.f32 %v4592, %v4637
    %v4663 = vadd.f32 %v4593, %v4637
    %v4664 = vadd.f32 %v4594, %v4637
    %v4665 = vadd.f32 %v4595, %v4637
    %v4666 = vadd.f32 %v4596, %v4637
    %v4667 = vadd.f32 %v4597, %v4637
    %v4668 = vadd.f32 %v4598, %v4637
    %v4669 = vadd.f32 %v4599, %v4637
    %v4670 = vadd.f32 %v4600, %v4637
    %v4671 = vadd.f32 %v4601, %v4637
    %v4672 = vadd.f32 %v4602, %v4637
    %v4673 = vadd.f32 %v4603, %v4637
    %v4674 = vadd.f32 %v4604, %v4637
    %v4675 = vadd.f32 %v4605, %v4637
    %v4676 = vadd.f32 %v4606, %v4637
    %v4677 = vadd.f32 %v4607, %v4637
    %v4678 = vadd.f32 %v4608, %v4637
    %v4679 = vadd.f32 %v4609, %v4637
    %v4680 = vadd.f32 %v4610, %v4637
    %v4681 = vadd.f32 %v4611, %v4637
    %v4682 = vadd.f32 %v4612, %v4637
    %v4683 = vadd.f32 %v4613, %v4637
    %v4684 = vadd.f32 %v4614, %v4637
    %v4685 = vadd.f32 %v4615, %v4637
    %v4686 = vadd.f32 %v4616, %v4637
    %v4687 = vadd.f32 %v4617, %v4637
    %v4688 = vadd.f32 %v4618, %v4637
    %v4689 = vadd.f32 %v4619, %v4637
    %v4690 = vadd.f32 %v4620, %v4637
    %v4691 = vadd.f32 %v4621, %v4637
    %v4692 = vadd.f32 %v4622, %v4637
    %v4693 = vadd.f32 %v4623, %v4637
    %v4694 = vadd.f32 %v4624, %v4637
    %v4695 = vadd.f32 %v4625, %v4637
    %v4696 = vadd.f32 %v4626, %v4637
    %v4697 = vadd.f32 %v4627, %v4637
    %v4698 = vadd.f32 %v4628, %v4637
    %v4699 = vadd.f32 %v4629, %v4637
    %v4700 = vadd.f32 %v4630, %v4637
    %v4701 = vadd.f32 %v4631, %v4637
    %v4702 = vadd.f32 %v4632, %v4637
    %v4703 = vld [vmem:[#allocation10] sm:$0xff]
    %v4704 = vld [vmem:[#allocation10 + $0x8] sm:$0xff]
    %v4705 = vld [vmem:[#allocation10 + $0x10] sm:$0xff]
    %v4706 = vld [vmem:[#allocation10 + $0x18] sm:$0xff]
    %v4707 = vld [vmem:[#allocation10 + $0x20] sm:$0xff]
    %v4708 = vld [vmem:[#allocation10 + $0x28] sm:$0xff]
    %v4709 = vld [vmem:[#allocation10 + $0x30] sm:$0xff]
    %v4710 = vld [vmem:[#allocation10 + $0x38] sm:$0xff]
    %v4711 = vld [vmem:[#allocation10 + $0x40] sm:$0xff]
    %v4712 = vld [vmem:[#allocation10 + $0x48] sm:$0xff]
    %v4713 = vld [vmem:[#allocation10 + $0x50] sm:$0xff]
    %v4714 = vld [vmem:[#allocation10 + $0x58] sm:$0xff]
    %v4715 = vld [vmem:[#allocation10 + $0x60] sm:$0xff]
    %v4716 = vld [vmem:[#allocation10 + $0x68] sm:$0xff]
    %v4717 = vld [vmem:[#allocation10 + $0x70] sm:$0xff]
    %v4718 = vld [vmem:[#allocation10 + $0x78] sm:$0xff]
    %v4719 = vld [vmem:[#allocation10 + $0x80] sm:$0xff]
    %v4720 = vld [vmem:[#allocation10 + $0x88] sm:$0xff]
    %v4721 = vld [vmem:[#allocation10 + $0x90] sm:$0xff]
    %v4722 = vld [vmem:[#allocation10 + $0x98] sm:$0xff]
    %v4723 = vld [vmem:[#allocation10 + $0xa0] sm:$0xff]
    %v4724 = vld [vmem:[#allocation10 + $0xa8] sm:$0xff]
    %v4725 = vld [vmem:[#allocation10 + $0xb0] sm:$0xff]
    %v4726 = vld [vmem:[#allocation10 + $0xb8] sm:$0xff]
    %v4727 = vld [vmem:[#allocation10 + $0xc0] sm:$0xff]
    %v4728 = vld [vmem:[#allocation10 + $0xc8] sm:$0xff]
    %v4729 = vld [vmem:[#allocation10 + $0xd0] sm:$0xff]
    %v4730 = vld [vmem:[#allocation10 + $0xd8] sm:$0xff]
    %v4731 = vld [vmem:[#allocation10 + $0xe0] sm:$0xff]
    %v4732 = vld [vmem:[#allocation10 + $0xe8] sm:$0xff]
    %v4733 = vld [vmem:[#allocation10 + $0xf0] sm:$0xff]
    %v4734 = vld [vmem:[#allocation10 + $0xf8] sm:$0xff]
    %v4735 = vld [vmem:[#allocation10 + $0x100] sm:$0xff]
    %v4736 = vld [vmem:[#allocation10 + $0x108] sm:$0xff]
    %v4737 = vld [vmem:[#allocation10 + $0x110] sm:$0xff]
    %v4738 = vld [vmem:[#allocation10 + $0x118] sm:$0xff]
    %v4739 = vld [vmem:[#allocation10 + $0x120] sm:$0xff]
    %v4740 = vld [vmem:[#allocation10 + $0x128] sm:$0xff]
    %v4741 = vld [vmem:[#allocation10 + $0x130] sm:$0xff]
    %v4742 = vld [vmem:[#allocation10 + $0x138] sm:$0xff]
    %v4743 = vld [vmem:[#allocation10 + $0x140] sm:$0xff]
    %v4744 = vld [vmem:[#allocation10 + $0x148] sm:$0xff]
    %v4745 = vld [vmem:[#allocation10 + $0x150] sm:$0xff]
    %v4746 = vld [vmem:[#allocation10 + $0x158] sm:$0xff]
    %v4747 = vld [vmem:[#allocation10 + $0x160] sm:$0xff]
    %v4748 = vld [vmem:[#allocation10 + $0x168] sm:$0xff]
    %v4749 = vld [vmem:[#allocation10 + $0x170] sm:$0xff]
    %v4750 = vld [vmem:[#allocation10 + $0x178] sm:$0xff]
    %v4751 = vld [vmem:[#allocation10 + $0x180] sm:$0xff]
    %v4752 = vld [vmem:[#allocation10 + $0x188] sm:$0xff]
    %v4753 = vld [vmem:[#allocation10 + $0x190] sm:$0xff]
    %v4754 = vld [vmem:[#allocation10 + $0x198] sm:$0xff]
    %v4755 = vld [vmem:[#allocation10 + $0x1a0] sm:$0xff]
    %v4756 = vld [vmem:[#allocation10 + $0x1a8] sm:$0xff]
    %v4757 = vld [vmem:[#allocation10 + $0x1b0] sm:$0xff]
    %v4758 = vld [vmem:[#allocation10 + $0x1b8] sm:$0xff]
    %v4759 = vld [vmem:[#allocation10 + $0x1c0] sm:$0xff]
    %v4760 = vld [vmem:[#allocation10 + $0x1c8] sm:$0xff]
    %v4761 = vld [vmem:[#allocation10 + $0x1d0] sm:$0xff]
    %v4762 = vld [vmem:[#allocation10 + $0x1d8] sm:$0xff]
    %v4763 = vld [vmem:[#allocation10 + $0x1e0] sm:$0xff]
    %v4764 = vld [vmem:[#allocation10 + $0x1e8] sm:$0xff]
    %v4765 = vld [vmem:[#allocation10 + $0x1f0] sm:$0xff]
    %v4766 = vld [vmem:[#allocation10 + $0x1f8] sm:$0xff]
    %v4767 = vadd.f32 %v4639, %v4703
    %v4768 = vadd.f32 %v4640, %v4704
    %v4769 = vadd.f32 %v4641, %v4705
    %v4770 = vadd.f32 %v4642, %v4706
    %v4771 = vadd.f32 %v4643, %v4707
    %v4772 = vadd.f32 %v4644, %v4708
    %v4773 = vadd.f32 %v4645, %v4709
    %v4774 = vadd.f32 %v4646, %v4710
    %v4775 = vadd.f32 %v4647, %v4711
    %v4776 = vadd.f32 %v4648, %v4712
    %v4777 = vadd.f32 %v4649, %v4713
    %v4778 = vadd.f32 %v4650, %v4714
    %v4779 = vadd.f32 %v4651, %v4715
    %v4780 = vadd.f32 %v4652, %v4716
    %v4781 = vadd.f32 %v4653, %v4717
    %v4782 = vadd.f32 %v4654, %v4718
    %v4783 = vadd.f32 %v4655, %v4719
    %v4784 = vadd.f32 %v4656, %v4720
    %v4785 = vadd.f32 %v4657, %v4721
    %v4786 = vadd.f32 %v4658, %v4722
    %v4787 = vadd.f32 %v4659, %v4723
    %v4788 = vadd.f32 %v4660, %v4724
    %v4789 = vadd.f32 %v4661, %v4725
    %v4790 = vadd.f32 %v4662, %v4726
    %v4791 = vadd.f32 %v4663, %v4727
    %v4792 = vadd.f32 %v4664, %v4728
    %v4793 = vadd.f32 %v4665, %v4729
    %v4794 = vadd.f32 %v4666, %v4730
    %v4795 = vadd.f32 %v4667, %v4731
    %v4796 = vadd.f32 %v4668, %v4732
    %v4797 = vadd.f32 %v4669, %v4733
    %v4798 = vadd.f32 %v4670, %v4734
    %v4799 = vadd.f32 %v4671, %v4735
    %v4800 = vadd.f32 %v4672, %v4736
    %v4801 = vadd.f32 %v4673, %v4737
    %v4802 = vadd.f32 %v4674, %v4738
    %v4803 = vadd.f32 %v4675, %v4739
    %v4804 = vadd.f32 %v4676, %v4740
    %v4805 = vadd.f32 %v4677, %v4741
    %v4806 = vadd.f32 %v4678, %v4742
    %v4807 = vadd.f32 %v4679, %v4743
    %v4808 = vadd.f32 %v4680, %v4744
    %v4809 = vadd.f32 %v4681, %v4745
    %v4810 = vadd.f32 %v4682, %v4746
    %v4811 = vadd.f32 %v4683, %v4747
    %v4812 = vadd.f32 %v4684, %v4748
    %v4813 = vadd.f32 %v4685, %v4749
    %v4814 = vadd.f32 %v4686, %v4750
    %v4815 = vadd.f32 %v4687, %v4751
    %v4816 = vadd.f32 %v4688, %v4752
    %v4817 = vadd.f32 %v4689, %v4753
    %v4818 = vadd.f32 %v4690, %v4754
    %v4819 = vadd.f32 %v4691, %v4755
    %v4820 = vadd.f32 %v4692, %v4756
    %v4821 = vadd.f32 %v4693, %v4757
    %v4822 = vadd.f32 %v4694, %v4758
    %v4823 = vadd.f32 %v4695, %v4759
    %v4824 = vadd.f32 %v4696, %v4760
    %v4825 = vadd.f32 %v4697, %v4761
    %v4826 = vadd.f32 %v4698, %v4762
    %v4827 = vadd.f32 %v4699, %v4763
    %v4828 = vadd.f32 %v4700, %v4764
    %v4829 = vadd.f32 %v4701, %v4765
    %v4830 = vadd.f32 %v4702, %v4766
    %vm4831 = vcmp.ge.f32.partialorder %v4767, 0.0
    %vm4832 = vcmp.ge.f32.partialorder %v4768, 0.0
    %vm4833 = vcmp.ge.f32.partialorder %v4769, 0.0
    %vm4834 = vcmp.ge.f32.partialorder %v4770, 0.0
    %vm4835 = vcmp.ge.f32.partialorder %v4771, 0.0
    %vm4836 = vcmp.ge.f32.partialorder %v4772, 0.0
    %vm4837 = vcmp.ge.f32.partialorder %v4773, 0.0
    %vm4838 = vcmp.ge.f32.partialorder %v4774, 0.0
    %vm4839 = vcmp.ge.f32.partialorder %v4775, 0.0
    %vm4840 = vcmp.ge.f32.partialorder %v4776, 0.0
    %vm4841 = vcmp.ge.f32.partialorder %v4777, 0.0
    %vm4842 = vcmp.ge.f32.partialorder %v4778, 0.0
    %vm4843 = vcmp.ge.f32.partialorder %v4779, 0.0
    %vm4844 = vcmp.ge.f32.partialorder %v4780, 0.0
    %vm4845 = vcmp.ge.f32.partialorder %v4781, 0.0
    %vm4846 = vcmp.ge.f32.partialorder %v4782, 0.0
    %vm4847 = vcmp.ge.f32.partialorder %v4783, 0.0
    %vm4848 = vcmp.ge.f32.partialorder %v4784, 0.0
    %vm4849 = vcmp.ge.f32.partialorder %v4785, 0.0
    %vm4850 = vcmp.ge.f32.partialorder %v4786, 0.0
    %vm4851 = vcmp.ge.f32.partialorder %v4787, 0.0
    %vm4852 = vcmp.ge.f32.partialorder %v4788, 0.0
    %vm4853 = vcmp.ge.f32.partialorder %v4789, 0.0
    %vm4854 = vcmp.ge.f32.partialorder %v4790, 0.0
    %vm4855 = vcmp.ge.f32.partialorder %v4791, 0.0
    %vm4856 = vcmp.ge.f32.partialorder %v4792, 0.0
    %vm4857 = vcmp.ge.f32.partialorder %v4793, 0.0
    %vm4858 = vcmp.ge.f32.partialorder %v4794, 0.0
    %vm4859 = vcmp.ge.f32.partialorder %v4795, 0.0
    %vm4860 = vcmp.ge.f32.partialorder %v4796, 0.0
    %vm4861 = vcmp.ge.f32.partialorder %v4797, 0.0
    %vm4862 = vcmp.ge.f32.partialorder %v4798, 0.0
    %vm4863 = vcmp.ge.f32.partialorder %v4799, 0.0
    %vm4864 = vcmp.ge.f32.partialorder %v4800, 0.0
    %vm4865 = vcmp.ge.f32.partialorder %v4801, 0.0
    %vm4866 = vcmp.ge.f32.partialorder %v4802, 0.0
    %vm4867 = vcmp.ge.f32.partialorder %v4803, 0.0
    %vm4868 = vcmp.ge.f32.partialorder %v4804, 0.0
    %vm4869 = vcmp.ge.f32.partialorder %v4805, 0.0
    %vm4870 = vcmp.ge.f32.partialorder %v4806, 0.0
    %vm4871 = vcmp.ge.f32.partialorder %v4807, 0.0
    %vm4872 = vcmp.ge.f32.partialorder %v4808, 0.0
    %vm4873 = vcmp.ge.f32.partialorder %v4809, 0.0
    %vm4874 = vcmp.ge.f32.partialorder %v4810, 0.0
    %vm4875 = vcmp.ge.f32.partialorder %v4811, 0.0
    %vm4876 = vcmp.ge.f32.partialorder %v4812, 0.0
    %vm4877 = vcmp.ge.f32.partialorder %v4813, 0.0
    %vm4878 = vcmp.ge.f32.partialorder %v4814, 0.0
    %vm4879 = vcmp.ge.f32.partialorder %v4815, 0.0
    %vm4880 = vcmp.ge.f32.partialorder %v4816, 0.0
    %vm4881 = vcmp.ge.f32.partialorder %v4817, 0.0
    %vm4882 = vcmp.ge.f32.partialorder %v4818, 0.0
    %vm4883 = vcmp.ge.f32.partialorder %v4819, 0.0
    %vm4884 = vcmp.ge.f32.partialorder %v4820, 0.0
    %vm4885 = vcmp.ge.f32.partialorder %v4821, 0.0
    %vm4886 = vcmp.ge.f32.partialorder %v4822, 0.0
    %vm4887 = vcmp.ge.f32.partialorder %v4823, 0.0
    %vm4888 = vcmp.ge.f32.partialorder %v4824, 0.0
    %vm4889 = vcmp.ge.f32.partialorder %v4825, 0.0
    %vm4890 = vcmp.ge.f32.partialorder %v4826, 0.0
    %vm4891 = vcmp.ge.f32.partialorder %v4827, 0.0
    %vm4892 = vcmp.ge.f32.partialorder %v4828, 0.0
    %vm4893 = vcmp.ge.f32.partialorder %v4829, 0.0
    %vm4894 = vcmp.ge.f32.partialorder %v4830, 0.0
    %v4895 = vmul.f32 %v1033, %v4767
    %v4896 = vmul.f32 %v1033, %v4768
    %v4897 = vmul.f32 %v1033, %v4769
    %v4898 = vmul.f32 %v1033, %v4770
    %v4899 = vmul.f32 %v1033, %v4771
    %v4900 = vmul.f32 %v1033, %v4772
    %v4901 = vmul.f32 %v1033, %v4773
    %v4902 = vmul.f32 %v1033, %v4774
    %v4903 = vmul.f32 %v1033, %v4775
    %v4904 = vmul.f32 %v1033, %v4776
    %v4905 = vmul.f32 %v1033, %v4777
    %v4906 = vmul.f32 %v1033, %v4778
    %v4907 = vmul.f32 %v1033, %v4779
    %v4908 = vmul.f32 %v1033, %v4780
    %v4909 = vmul.f32 %v1033, %v4781
    %v4910 = vmul.f32 %v1033, %v4782
    %v4911 = vmul.f32 %v1033, %v4783
    %v4912 = vmul.f32 %v1033, %v4784
    %v4913 = vmul.f32 %v1033, %v4785
    %v4914 = vmul.f32 %v1033, %v4786
    %v4915 = vmul.f32 %v1033, %v4787
    %v4916 = vmul.f32 %v1033, %v4788
    %v4917 = vmul.f32 %v1033, %v4789
    %v4918 = vmul.f32 %v1033, %v4790
    %v4919 = vmul.f32 %v1033, %v4791
    %v4920 = vmul.f32 %v1033, %v4792
    %v4921 = vmul.f32 %v1033, %v4793
    %v4922 = vmul.f32 %v1033, %v4794
    %v4923 = vmul.f32 %v1033, %v4795
    %v4924 = vmul.f32 %v1033, %v4796
    %v4925 = vmul.f32 %v1033, %v4797
    %v4926 = vmul.f32 %v1033, %v4798
    %v4927 = vmul.f32 %v1033, %v4799
    %v4928 = vmul.f32 %v1033, %v4800
    %v4929 = vmul.f32 %v1033, %v4801
    %v4930 = vmul.f32 %v1033, %v4802
    %v4931 = vmul.f32 %v1033, %v4803
    %v4932 = vmul.f32 %v1033, %v4804
    %v4933 = vmul.f32 %v1033, %v4805
    %v4934 = vmul.f32 %v1033, %v4806
    %v4935 = vmul.f32 %v1033, %v4807
    %v4936 = vmul.f32 %v1033, %v4808
    %v4937 = vmul.f32 %v1033, %v4809
    %v4938 = vmul.f32 %v1033, %v4810
    %v4939 = vmul.f32 %v1033, %v4811
    %v4940 = vmul.f32 %v1033, %v4812
    %v4941 = vmul.f32 %v1033, %v4813
    %v4942 = vmul.f32 %v1033, %v4814
    %v4943 = vmul.f32 %v1033, %v4815
    %v4944 = vmul.f32 %v1033, %v4816
    %v4945 = vmul.f32 %v1033, %v4817
    %v4946 = vmul.f32 %v1033, %v4818
    %v4947 = vmul.f32 %v1033, %v4819
    %v4948 = vmul.f32 %v1033, %v4820
    %v4949 = vmul.f32 %v1033, %v4821
    %v4950 = vmul.f32 %v1033, %v4822
    %v4951 = vmul.f32 %v1033, %v4823
    %v4952 = vmul.f32 %v1033, %v4824
    %v4953 = vmul.f32 %v1033, %v4825
    %v4954 = vmul.f32 %v1033, %v4826
    %v4955 = vmul.f32 %v1033, %v4827
    %v4956 = vmul.f32 %v1033, %v4828
    %v4957 = vmul.f32 %v1033, %v4829
    %v4958 = vmul.f32 %v1033, %v4830
    %v4959 = vsel %vm4831, %v4767, %v4895
    %v4960 = vsel %vm4832, %v4768, %v4896
    %v4961 = vsel %vm4833, %v4769, %v4897
    %v4962 = vsel %vm4834, %v4770, %v4898
    %v4963 = vsel %vm4835, %v4771, %v4899
    %v4964 = vsel %vm4836, %v4772, %v4900
    %v4965 = vsel %vm4837, %v4773, %v4901
    %v4966 = vsel %vm4838, %v4774, %v4902
    %v4967 = vsel %vm4839, %v4775, %v4903
    %v4968 = vsel %vm4840, %v4776, %v4904
    %v4969 = vsel %vm4841, %v4777, %v4905
    %v4970 = vsel %vm4842, %v4778, %v4906
    %v4971 = vsel %vm4843, %v4779, %v4907
    %v4972 = vsel %vm4844, %v4780, %v4908
    %v4973 = vsel %vm4845, %v4781, %v4909
    %v4974 = vsel %vm4846, %v4782, %v4910
    %v4975 = vsel %vm4847, %v4783, %v4911
    %v4976 = vsel %vm4848, %v4784, %v4912
    %v4977 = vsel %vm4849, %v4785, %v4913
    %v4978 = vsel %vm4850, %v4786, %v4914
    %v4979 = vsel %vm4851, %v4787, %v4915
    %v4980 = vsel %vm4852, %v4788, %v4916
    %v4981 = vsel %vm4853, %v4789, %v4917
    %v4982 = vsel %vm4854, %v4790, %v4918
    %v4983 = vsel %vm4855, %v4791, %v4919
    %v4984 = vsel %vm4856, %v4792, %v4920
    %v4985 = vsel %vm4857, %v4793, %v4921
    %v4986 = vsel %vm4858, %v4794, %v4922
    %v4987 = vsel %vm4859, %v4795, %v4923
    %v4988 = vsel %vm4860, %v4796, %v4924
    %v4989 = vsel %vm4861, %v4797, %v4925
    %v4990 = vsel %vm4862, %v4798, %v4926
    %v4991 = vsel %vm4863, %v4799, %v4927
    %v4992 = vsel %vm4864, %v4800, %v4928
    %v4993 = vsel %vm4865, %v4801, %v4929
    %v4994 = vsel %vm4866, %v4802, %v4930
    %v4995 = vsel %vm4867, %v4803, %v4931
    %v4996 = vsel %vm4868, %v4804, %v4932
    %v4997 = vsel %vm4869, %v4805, %v4933
    %v4998 = vsel %vm4870, %v4806, %v4934
    %v4999 = vsel %vm4871, %v4807, %v4935
    %v5000 = vsel %vm4872, %v4808, %v4936
    %v5001 = vsel %vm4873, %v4809, %v4937
    %v5002 = vsel %vm4874, %v4810, %v4938
    %v5003 = vsel %vm4875, %v4811, %v4939
    %v5004 = vsel %vm4876, %v4812, %v4940
    %v5005 = vsel %vm4877, %v4813, %v4941
    %v5006 = vsel %vm4878, %v4814, %v4942
    %v5007 = vsel %vm4879, %v4815, %v4943
    %v5008 = vsel %vm4880, %v4816, %v4944
    %v5009 = vsel %vm4881, %v4817, %v4945
    %v5010 = vsel %vm4882, %v4818, %v4946
    %v5011 = vsel %vm4883, %v4819, %v4947
    %v5012 = vsel %vm4884, %v4820, %v4948
    %v5013 = vsel %vm4885, %v4821, %v4949
    %v5014 = vsel %vm4886, %v4822, %v4950
    %v5015 = vsel %vm4887, %v4823, %v4951
    %v5016 = vsel %vm4888, %v4824, %v4952
    %v5017 = vsel %vm4889, %v4825, %v4953
    %v5018 = vsel %vm4890, %v4826, %v4954
    %v5019 = vsel %vm4891, %v4827, %v4955
    %v5020 = vsel %vm4892, %v4828, %v4956
    %v5021 = vsel %vm4893, %v4829, %v4957
    %v5022 = vsel %vm4894, %v4830, %v4958
    %5023 = vst [vmem:[#allocation12] sm:$0xff] %v4959
    %5024 = vst [vmem:[#allocation12 + $0x8] sm:$0xff] %v4960
    %5025 = vst [vmem:[#allocation12 + $0x10] sm:$0xff] %v4961
    %5026 = vst [vmem:[#allocation12 + $0x18] sm:$0xff] %v4962
    %5027 = vst [vmem:[#allocation12 + $0x20] sm:$0xff] %v4963
    %5028 = vst [vmem:[#allocation12 + $0x28] sm:$0xff] %v4964
    %5029 = vst [vmem:[#allocation12 + $0x30] sm:$0xff] %v4965
    %5030 = vst [vmem:[#allocation12 + $0x38] sm:$0xff] %v4966
    %5031 = vst [vmem:[#allocation12 + $0x40] sm:$0xff] %v4967
    %5032 = vst [vmem:[#allocation12 + $0x48] sm:$0xff] %v4968
    %5033 = vst [vmem:[#allocation12 + $0x50] sm:$0xff] %v4969
    %5034 = vst [vmem:[#allocation12 + $0x58] sm:$0xff] %v4970
    %5035 = vst [vmem:[#allocation12 + $0x60] sm:$0xff] %v4971
    %5036 = vst [vmem:[#allocation12 + $0x68] sm:$0xff] %v4972
    %5037 = vst [vmem:[#allocation12 + $0x70] sm:$0xff] %v4973
    %5038 = vst [vmem:[#allocation12 + $0x78] sm:$0xff] %v4974
    %5039 = vst [vmem:[#allocation12 + $0x80] sm:$0xff] %v4975
    %5040 = vst [vmem:[#allocation12 + $0x88] sm:$0xff] %v4976
    %5041 = vst [vmem:[#allocation12 + $0x90] sm:$0xff] %v4977
    %5042 = vst [vmem:[#allocation12 + $0x98] sm:$0xff] %v4978
    %5043 = vst [vmem:[#allocation12 + $0xa0] sm:$0xff] %v4979
    %5044 = vst [vmem:[#allocation12 + $0xa8] sm:$0xff] %v4980
    %5045 = vst [vmem:[#allocation12 + $0xb0] sm:$0xff] %v4981
    %5046 = vst [vmem:[#allocation12 + $0xb8] sm:$0xff] %v4982
    %5047 = vst [vmem:[#allocation12 + $0xc0] sm:$0xff] %v4983
    %5048 = vst [vmem:[#allocation12 + $0xc8] sm:$0xff] %v4984
    %5049 = vst [vmem:[#allocation12 + $0xd0] sm:$0xff] %v4985
    %5050 = vst [vmem:[#allocation12 + $0xd8] sm:$0xff] %v4986
    %5051 = vst [vmem:[#allocation12 + $0xe0] sm:$0xff] %v4987
    %5052 = vst [vmem:[#allocation12 + $0xe8] sm:$0xff] %v4988
    %5053 = vst [vmem:[#allocation12 + $0xf0] sm:$0xff] %v4989
    %5054 = vst [vmem:[#allocation12 + $0xf8] sm:$0xff] %v4990
    %5055 = vst [vmem:[#allocation12 + $0x100] sm:$0xff] %v4991
    %5056 = vst [vmem:[#allocation12 + $0x108] sm:$0xff] %v4992
    %5057 = vst [vmem:[#allocation12 + $0x110] sm:$0xff] %v4993
    %5058 = vst [vmem:[#allocation12 + $0x118] sm:$0xff] %v4994
    %5059 = vst [vmem:[#allocation12 + $0x120] sm:$0xff] %v4995
    %5060 = vst [vmem:[#allocation12 + $0x128] sm:$0xff] %v4996
    %5061 = vst [vmem:[#allocation12 + $0x130] sm:$0xff] %v4997
    %5062 = vst [vmem:[#allocation12 + $0x138] sm:$0xff] %v4998
    %5063 = vst [vmem:[#allocation12 + $0x140] sm:$0xff] %v4999
    %5064 = vst [vmem:[#allocation12 + $0x148] sm:$0xff] %v5000
    %5065 = vst [vmem:[#allocation12 + $0x150] sm:$0xff] %v5001
    %5066 = vst [vmem:[#allocation12 + $0x158] sm:$0xff] %v5002
    %5067 = vst [vmem:[#allocation12 + $0x160] sm:$0xff] %v5003
    %5068 = vst [vmem:[#allocation12 + $0x168] sm:$0xff] %v5004
    %5069 = vst [vmem:[#allocation12 + $0x170] sm:$0xff] %v5005
    %5070 = vst [vmem:[#allocation12 + $0x178] sm:$0xff] %v5006
    %5071 = vst [vmem:[#allocation12 + $0x180] sm:$0xff] %v5007
    %5072 = vst [vmem:[#allocation12 + $0x188] sm:$0xff] %v5008
    %5073 = vst [vmem:[#allocation12 + $0x190] sm:$0xff] %v5009
    %5074 = vst [vmem:[#allocation12 + $0x198] sm:$0xff] %v5010
    %5075 = vst [vmem:[#allocation12 + $0x1a0] sm:$0xff] %v5011
    %5076 = vst [vmem:[#allocation12 + $0x1a8] sm:$0xff] %v5012
    %5077 = vst [vmem:[#allocation12 + $0x1b0] sm:$0xff] %v5013
    %5078 = vst [vmem:[#allocation12 + $0x1b8] sm:$0xff] %v5014
    %5079 = vst [vmem:[#allocation12 + $0x1c0] sm:$0xff] %v5015
    %5080 = vst [vmem:[#allocation12 + $0x1c8] sm:$0xff] %v5016
    %5081 = vst [vmem:[#allocation12 + $0x1d0] sm:$0xff] %v5017
    %5082 = vst [vmem:[#allocation12 + $0x1d8] sm:$0xff] %v5018
    %5083 = vst [vmem:[#allocation12 + $0x1e0] sm:$0xff] %v5019
    %5084 = vst [vmem:[#allocation12 + $0x1e8] sm:$0xff] %v5020
    %5085 = vst [vmem:[#allocation12 + $0x1f0] sm:$0xff] %v5021
    %5086 = vst [vmem:[#allocation12 + $0x1f8] sm:$0xff] %v5022
    // Predicated region
    $region54: #{tpu_custom_call.1} parent=1 // pred_check
      _
    $region55: #{tpu_custom_call.1} parent=1 // pred_check_branch
      %5088 = sbr.rel (0) target = $region57
    $region56: #{tpu_custom_call.1} parent=1 // pred_region
      %s5090 = ssub.s32 8192, 8192
      %5091 = vsyncadd [#allocation6], %s5090
      %s5092 = sshll.u32 [#allocation12], 4
      %s5093 = int_to_ptr.vmem [resolvable:$true] %s5092
      %5098 = dma.vmem_to_hbm [thread:$0]  %s5093, 8192, %s9, [#allocation6], 128, 128, 8
    $region57: #{tpu_custom_call.1} parent=1 // pred_fallthru
      _
    // Predicated region
    $region58: #{tpu_custom_call.1} parent=1 // pred_check
      _
    $region59: #{tpu_custom_call.1} parent=1 // pred_check_branch
      %5100 = sbr.rel (0) target = $region61
    $region60: #{tpu_custom_call.1} parent=1 // pred_region
      %5101 = dma.done [#allocation6], 8192
    $region61: #{tpu_custom_call.1} parent=1 // pred_fallthru
      _
    %5102 = vsyncpa [#allocation5], 1
    %5103 = vsyncpa [#allocation8], 1
    %5104 = vsyncpa [#allocation11], 1
    %5105 = vsyncpa [#allocation6], 1

</llo_original>
